<compile_context>
chip_gen: v7x
topology: tpu7x:2x2x1
jax: 0.10.0
libtpu: 0.0.40
codegen_flags: <defaults>
</compile_context>

<pallas_src>
import functools

import jax
import jax.numpy as jnp
from jax import lax
from jax.experimental import pallas as pl
from jax.experimental.pallas import tpu as pltpu

KERNEL_SIZES = (5, 9, 13)   # the cascade below realizes exactly these sizes
NEG = -1e30                 # stands in for the -inf padding of MaxPool2d
W_LEFT = 8                  # left halo of the pooling scratch (multiple of 8 -> aligned stores)


def _spp_kernel(x_ref, w1_ref, b1_ref, w2_ref, b2_ref, o_ref, pad_ref, acc_ref,
                *, pool_dtype):
    """One batch element per grid step (steps are independent -> megacore-parallel).

    x_ref  : (1, H, W, Cin)        bf16
    w1_ref : (Cin, Ch)             bf16, folded conv1+BN1 weight
    b1_ref : (1, Ch)               f32,  folded conv1+BN1 bias
    w2_ref : (4, Ch, Cout)         bf16, folded conv2+BN2 weight split per SPP branch
    b2_ref : (1, Cout)             f32,  folded conv2+BN2 bias
    o_ref  : (1, H, W, Cout)       f32
    pad_ref: (H+4, WP, Ch)         pool_dtype scratch with -inf halo (refilled per step)
    acc_ref: (H*W, Cout)           f32 accumulator for the 4 conv2 branch matmuls
    """
    _, H, W, Cin = x_ref.shape
    Ch = w1_ref.shape[1]
    Cout = w2_ref.shape[2]
    HP, WP, _ = pad_ref.shape

    # ---- per-step -inf halo: 4 small strip stores (top/bottom rows, left/right ----
    # ---- column blocks).  Rewriting them every step removes all cross-step     ----
    # ---- scratch state, so the batch grid axis is safely "parallel" (v7x 2-TC).----
    pad_ref[pl.ds(0, 2), :, :] = jnp.full((2, WP, Ch), NEG, pool_dtype)
    pad_ref[pl.ds(H + 2, 2), :, :] = jnp.full((2, WP, Ch), NEG, pool_dtype)
    pad_ref[pl.ds(2, H), pl.ds(0, W_LEFT), :] = jnp.full((H, W_LEFT, Ch), NEG, pool_dtype)
    w_right = WP - W_LEFT - W                        # >= 2 by construction of WP
    pad_ref[pl.ds(2, H), pl.ds(W_LEFT + W, w_right), :] = jnp.full(
        (H, w_right, Ch), NEG, pool_dtype)

    # ---- conv1 (1x1) + BN + SiLU : (H*W, Cin) @ (Cin, Ch), bf16 -> f32 acc ----
    x = x_ref[...].reshape(H * W, Cin)
    y = jnp.dot(x, w1_ref[...], preferred_element_type=jnp.float32) + b1_ref[...]
    y = y * jax.nn.sigmoid(y)                                   # SiLU (logistic -> EUP)

    # conv2 branch 0 (identity branch), accumulated in the f32 VMEM scratch.
    acc_ref[...] = jnp.dot(y.astype(jnp.bfloat16), w2_ref[0],
                           preferred_element_type=jnp.float32)

    # stage input for the pooling cascade (aligned interior store at col 8).
    pad_ref[pl.ds(2, H), pl.ds(W_LEFT, W), :] = y.astype(pool_dtype).reshape(H, W, Ch)

    # ---- SPPF cascade: pool5, pool5∘pool5 (=pool9), pool5∘pool9 (=pool13) ----
    # Each stage: separable 5-max with log-doubling (window widths 1->2->4->5).
    for stage in range(3):
        a = pad_ref[:, pl.ds(W_LEFT - 2, W + 4), :]             # (H+4, W+4, Ch), -inf halo
        # rows (leading dim -> vreg-to-vreg maxima)
        s = jnp.maximum(a[:-1], a[1:])                          # (H+3, W+4, Ch)
        s = jnp.maximum(s[:-2], s[2:])                          # (H+1, W+4, Ch)
        r = jnp.maximum(s[:-1], s[1:])                          # (H,   W+4, Ch)
        # cols (sublane dim -> XLU shifts)
        t = jnp.maximum(r[:, :-1, :], r[:, 1:, :])              # (H, W+3, Ch)
        t = jnp.maximum(t[:, :-2, :], t[:, 2:, :])              # (H, W+1, Ch)
        m = jnp.maximum(t[:, :-1, :], t[:, 1:, :])              # (H, W,   Ch)

        acc_ref[...] += jnp.dot(m.reshape(H * W, Ch).astype(jnp.bfloat16),
                                w2_ref[stage + 1],
                                preferred_element_type=jnp.float32)
        if stage < 2:                                           # feed next cascade stage
            pad_ref[pl.ds(2, H), pl.ds(W_LEFT, W), :] = m

    # ---- conv2 bias + SiLU -> output ----
    z = acc_ref[...] + b2_ref[...]
    z = z * jax.nn.sigmoid(z)
    o_ref[...] = z.reshape(1, H, W, Cout)


def _pool_in_bf16():
    """bf16 pooling on v6e/v7x (bf16 VPU); f32 on v5e and older."""
    try:
        kind = jax.devices()[0].device_kind.lower()
    except Exception:
        return True
    return not any(v in kind for v in ("v2", "v3", "v4", "v5"))


@functools.partial(jax.jit, static_argnames=("pool_bf16",))
def _spp_impl(x_nchw, w1, b1, w2, b2, *, pool_bf16):
    N, Cin, H, W = x_nchw.shape
    Ch = w1.shape[1]
    Cout = w2.shape[1]
    pool_dtype = jnp.bfloat16 if pool_bf16 else jnp.float32

    x_nhwc = jnp.transpose(x_nchw, (0, 2, 3, 1)).astype(jnp.bfloat16)
    w1b = w1.astype(jnp.bfloat16)
    w2b = w2.reshape(4, Ch, Cout).astype(jnp.bfloat16)
    b1r = b1.reshape(1, Ch).astype(jnp.float32)
    b2r = b2.reshape(1, Cout).astype(jnp.float32)

    HP = H + 4                                   # +/-2 row halo for the 5-pools
    WP = ((W_LEFT + W + 2) + 7) // 8 * 8         # aligned left halo + >=2 right halo

    kernel = functools.partial(_spp_kernel, pool_dtype=pool_dtype)
    out_nhwc = pl.pallas_call(
        kernel,
        out_shape=jax.ShapeDtypeStruct((N, H, W, Cout), jnp.float32),
        grid_spec=pltpu.PrefetchScalarGridSpec(
            num_scalar_prefetch=0,
            grid=(N,),
            in_specs=[
                pl.BlockSpec((1, H, W, Cin), lambda n: (n, 0, 0, 0)),
                pl.BlockSpec((Cin, Ch), lambda n: (0, 0)),
                pl.BlockSpec((1, Ch), lambda n: (0, 0)),
                pl.BlockSpec((4, Ch, Cout), lambda n: (0, 0, 0)),
                pl.BlockSpec((1, Cout), lambda n: (0, 0)),
            ],
            out_specs=pl.BlockSpec((1, H, W, Cout), lambda n: (n, 0, 0, 0)),
            scratch_shapes=[
                pltpu.VMEM((HP, WP, Ch), pool_dtype),    # -inf padded pooling scratch
                pltpu.VMEM((H * W, Cout), jnp.float32),  # conv2 branch accumulator
            ],
        ),
        compiler_params=pltpu.CompilerParams(
            # Batch steps are fully independent (halo rewritten every step), so
            # the grid axis can be split across both TensorCores on v7x.
            dimension_semantics=("parallel",),
            vmem_limit_bytes=48 * 1024 * 1024,
        ),
    )(x_nhwc, w1b, b1r, w2b, b2r)

    return jnp.transpose(out_nhwc, (0, 3, 1, 2))   # back to NCHW


def spp_bottleneck(x_nchw, w1, b1, w2, b2):
    """x_nchw: (N, Cin, H, W) f32. w1:(Cin,Ch) b1:(Ch,) w2:(4*Ch,Cout) b2:(Cout,)"""
    return _spp_impl(x_nchw, w1, b1, w2, b2, pool_bf16=_pool_in_bf16())


# ---------------- parameter construction (deterministic, synthetic) ----------------
def make_params(key, in_channels, out_channels):
    hidden = in_channels // 2
    cat_ch = hidden * (len(KERNEL_SIZES) + 1)
    ks = jax.random.split(key, 10)
    eps = 1e-5

    # conv1 (hidden, in, 1, 1) + BN(hidden)
    wc1 = 0.1 * jax.random.normal(ks[0], (hidden, in_channels), jnp.float32)
    g1 = 1.0 + 0.1 * jax.random.normal(ks[1], (hidden,), jnp.float32)
    be1 = 0.1 * jax.random.normal(ks[2], (hidden,), jnp.float32)
    mu1 = 0.1 * jax.random.normal(ks[3], (hidden,), jnp.float32)
    var1 = jax.random.uniform(ks[4], (hidden,), jnp.float32, 0.5, 1.5)

    # conv2 (out, cat_ch, 1, 1) + BN(out)
    wc2 = 0.1 * jax.random.normal(ks[5], (out_channels, cat_ch), jnp.float32)
    g2 = 1.0 + 0.1 * jax.random.normal(ks[6], (out_channels,), jnp.float32)
    be2 = 0.1 * jax.random.normal(ks[7], (out_channels,), jnp.float32)
    mu2 = 0.1 * jax.random.normal(ks[8], (out_channels,), jnp.float32)
    var2 = jax.random.uniform(ks[9], (out_channels,), jnp.float32, 0.5, 1.5)

    # fold BN (eval mode) into the 1x1 conv -> matmul weight/bias
    s1 = g1 / jnp.sqrt(var1 + eps)
    w1 = (wc1 * s1[:, None]).T                     # (Cin, Ch)
    b1 = be1 - mu1 * s1                            # (Ch,)
    s2 = g2 / jnp.sqrt(var2 + eps)
    w2 = (wc2 * s2[:, None]).T                     # (4*Ch, Cout)
    b2 = be2 - mu2 * s2                            # (Cout,)
    return w1, b1, w2, b2


# ---------------- pure-JAX reference (NCHW, mirrors the PyTorch forward) ----------------
def reference(x_nchw, w1, b1, w2, b2):
    def silu(v):
        return v * jax.nn.sigmoid(v)

    y = jnp.einsum('nchw,co->nohw', x_nchw, w1) + b1[None, :, None, None]
    y = silu(y)
    feats = [y]
    for k in KERNEL_SIZES:
        p = k // 2
        pooled = lax.reduce_window(
            y, -jnp.inf, lax.max,
            window_dimensions=(1, 1, k, k),
            window_strides=(1, 1, 1, 1),
            padding=((0, 0), (0, 0), (p, p), (p, p)))
        feats.append(pooled)
    cat = jnp.concatenate(feats, axis=1)
    z = jnp.einsum('nchw,co->nohw', cat, w2) + b2[None, :, None, None]
    return silu(z)


if __name__ == "__main__":
    key = jax.random.PRNGKey(0)
    k_x, k_p = jax.random.split(key)

    N, Cin, H, W = 2, 8, 16, 16
    Cout = 8
    x = jax.random.normal(k_x, (N, Cin, H, W), jnp.float32)
    w1, b1, w2, b2 = make_params(k_p, Cin, Cout)

    out = spp_bottleneck(x, w1, b1, w2, b2)
    out = jax.block_until_ready(out)

    ref = reference(x, w1, b1, w2, b2)
    assert out.shape == (N, Cout, H, W), out.shape

    err = jnp.abs(out - ref)
    max_err = float(jnp.max(err))
    mean_err = float(jnp.mean(err))
    # bf16 matmul operands (and bf16 pooling on v6e/v7x) -> looser tolerance
    # than a pure-f32 comparison against the f32 reference.
    assert max_err < 5e-2, f"max mismatch vs reference: {max_err}"
    assert mean_err < 5e-3, f"mean mismatch vs reference: {mean_err}"

    print("KERNEL_OK")
</pallas_src>

<mosaic_0001>
module attributes {stable_mosaic.version = 11 : i64} {
  func.func @_spp_kernel(%arg0: i32, %arg1: memref<1x16x16x8xbf16, #tpu.memory_space<vmem>>, %arg2: memref<8x4xbf16, #tpu.memory_space<vmem>>, %arg3: memref<1x4xf32, #tpu.memory_space<vmem>>, %arg4: memref<4x4x8xbf16, #tpu.memory_space<vmem>>, %arg5: memref<1x8xf32, #tpu.memory_space<vmem>>, %arg6: memref<1x16x16x8xf32, #tpu.memory_space<vmem>>, %arg7: memref<20x32x4xbf16, #tpu.memory_space<vmem>>, %arg8: memref<256x8xf32, #tpu.memory_space<vmem>>) attributes {dimension_semantics = [#tpu.dimension_semantics<parallel>], iteration_bounds = array<i64: 2>, scalar_prefetch = 0 : i64, scratch_operands = 2 : i64, tpu.core_type = #tpu.core_type<tc>, window_params = [{transform_indices = @transform_0, window_bounds = array<i64: 1, 16, 16, 8>}, {pipeline_mode = #tpu.pipeline_mode<synchronous>, transform_indices = @transform_1, window_bounds = array<i64: 8, 4>}, {pipeline_mode = #tpu.pipeline_mode<synchronous>, transform_indices = @transform_2, window_bounds = array<i64: 1, 4>}, {pipeline_mode = #tpu.pipeline_mode<synchronous>, transform_indices = @transform_3, window_bounds = array<i64: 4, 4, 8>}, {pipeline_mode = #tpu.pipeline_mode<synchronous>, transform_indices = @transform_4, window_bounds = array<i64: 1, 8>}, {transform_indices = @transform_5, window_bounds = array<i64: 1, 16, 16, 8>}]} {
    %cst = arith.constant -1.000260e+30 : bf16
    %0 = vector.broadcast %cst : bf16 to vector<2x32x4xbf16>
    %c0 = arith.constant 0 : index
    %c0_0 = arith.constant 0 : index
    %c0_1 = arith.constant 0 : index
    %1 = vector.load %arg7[%c0, %c0_0, %c0_1] : memref<20x32x4xbf16, #tpu.memory_space<vmem>>, vector<2x32x4xbf16>
    tpu.vector_store %arg7[%c0, %c0_0, %c0_1], %0 {strides = array<i32>} : memref<20x32x4xbf16, #tpu.memory_space<vmem>>, vector<2x32x4xbf16>,
    %cst_2 = arith.constant -1.000260e+30 : bf16
    %2 = vector.broadcast %cst_2 : bf16 to vector<2x32x4xbf16>
    %c18 = arith.constant 18 : index
    %c0_3 = arith.constant 0 : index
    %c0_4 = arith.constant 0 : index
    %3 = vector.load %arg7[%c18, %c0_3, %c0_4] : memref<20x32x4xbf16, #tpu.memory_space<vmem>>, vector<2x32x4xbf16>
    tpu.vector_store %arg7[%c18, %c0_3, %c0_4], %2 {strides = array<i32>} : memref<20x32x4xbf16, #tpu.memory_space<vmem>>, vector<2x32x4xbf16>,
    %cst_5 = arith.constant -1.000260e+30 : bf16
    %4 = vector.broadcast %cst_5 : bf16 to vector<16x8x4xbf16>
    %c2 = arith.constant 2 : index
    %c0_6 = arith.constant 0 : index
    %c0_7 = arith.constant 0 : index
    %5 = vector.load %arg7[%c2, %c0_6, %c0_7] : memref<20x32x4xbf16, #tpu.memory_space<vmem>>, vector<16x8x4xbf16>
    tpu.vector_store %arg7[%c2, %c0_6, %c0_7], %4 {strides = array<i32>} : memref<20x32x4xbf16, #tpu.memory_space<vmem>>, vector<16x8x4xbf16>,
    %cst_8 = arith.constant -1.000260e+30 : bf16
    %6 = vector.broadcast %cst_8 : bf16 to vector<16x8x4xbf16>
    %c2_9 = arith.constant 2 : index
    %c24 = arith.constant 24 : index
    %c0_10 = arith.constant 0 : index
    %7 = vector.load %arg7[%c2_9, %c24, %c0_10] : memref<20x32x4xbf16, #tpu.memory_space<vmem>>, vector<16x8x4xbf16>
    tpu.vector_store %arg7[%c2_9, %c24, %c0_10], %6 {strides = array<i32>} : memref<20x32x4xbf16, #tpu.memory_space<vmem>>, vector<16x8x4xbf16>,
    %c0_11 = arith.constant 0 : index
    %c0_12 = arith.constant 0 : index
    %c0_13 = arith.constant 0 : index
    %c0_14 = arith.constant 0 : index
    %8 = vector.load %arg1[%c0_11, %c0_12, %c0_13, %c0_14] : memref<1x16x16x8xbf16, #tpu.memory_space<vmem>>, vector<1x16x16x8xbf16>
    %9 = vector.shape_cast %8 : vector<1x16x16x8xbf16> to vector<256x8xbf16>
    %c0_15 = arith.constant 0 : index
    %c0_16 = arith.constant 0 : index
    %10 = vector.load %arg2[%c0_15, %c0_16] : memref<8x4xbf16, #tpu.memory_space<vmem>>, vector<8x4xbf16>
    %cst_17 = arith.constant dense<0.000000e+00> : vector<256x4xf32>
    %11 = tpu.matmul %9, %10, %cst_17 {dimension_numbers = #tpu.dot_dimension_numbers<[1], [0], [0], [1], [0, 0, 1, 1], [], []>} : vector<256x8xbf16>, vector<8x4xbf16>, vector<256x4xf32> -> vector<256x4xf32>
    %c0_18 = arith.constant 0 : index
    %c0_19 = arith.constant 0 : index
    %12 = vector.load %arg3[%c0_18, %c0_19] : memref<1x4xf32, #tpu.memory_space<vmem>>, vector<1x4xf32>
    %13 = vector.broadcast %12 : vector<1x4xf32> to vector<256x4xf32>
    %14 = arith.addf %11, %13 : vector<256x4xf32>
    %15 = arith.negf %14 : vector<256x4xf32>
    %16 = math.exp %15 : vector<256x4xf32>
    %cst_20 = arith.constant 1.000000e+00 : f32
    %17 = vector.broadcast %cst_20 : f32 to vector<256x4xf32>
    %18 = arith.addf %17, %16 : vector<256x4xf32>
    %19 = arith.divf %17, %18 : vector<256x4xf32>
    %20 = arith.mulf %14, %19 : vector<256x4xf32>
    %21 = arith.truncf %20 : vector<256x4xf32> to vector<256x4xbf16>
    %c0_21 = arith.constant 0 : index
    %c0_22 = arith.constant 0 : index
    %c0_23 = arith.constant 0 : index
    %22 = vector.load %arg4[%c0_21, %c0_22, %c0_23] : memref<4x4x8xbf16, #tpu.memory_space<vmem>>, vector<1x4x8xbf16>
    %23 = vector.shape_cast %22 : vector<1x4x8xbf16> to vector<4x8xbf16>
    %cst_24 = arith.constant dense<0.000000e+00> : vector<256x8xf32>
    %24 = tpu.matmul %21, %23, %cst_24 {dimension_numbers = #tpu.dot_dimension_numbers<[1], [0], [0], [1], [0, 0, 1, 1], [], []>} : vector<256x4xbf16>, vector<4x8xbf16>, vector<256x8xf32> -> vector<256x8xf32>
    %c0_25 = arith.constant 0 : index
    %c0_26 = arith.constant 0 : index
    %25 = vector.load %arg8[%c0_25, %c0_26] : memref<256x8xf32, #tpu.memory_space<vmem>>, vector<256x8xf32>
    tpu.vector_store %arg8[%c0_25, %c0_26], %24 {strides = array<i32>} : memref<256x8xf32, #tpu.memory_space<vmem>>, vector<256x8xf32>,
    %26 = arith.truncf %20 : vector<256x4xf32> to vector<256x4xbf16>
    %27 = vector.shape_cast %26 : vector<256x4xbf16> to vector<16x16x4xbf16>
    %c2_27 = arith.constant 2 : index
    %c8 = arith.constant 8 : index
    %c0_28 = arith.constant 0 : index
    %28 = vector.load %arg7[%c2_27, %c8, %c0_28] : memref<20x32x4xbf16, #tpu.memory_space<vmem>>, vector<16x16x4xbf16>
    tpu.vector_store %arg7[%c2_27, %c8, %c0_28], %27 {strides = array<i32>} : memref<20x32x4xbf16, #tpu.memory_space<vmem>>, vector<16x16x4xbf16>,
    %c0_29 = arith.constant 0 : index
    %c6 = arith.constant 6 : index
    %c0_30 = arith.constant 0 : index
    %29 = vector.load %arg7[%c0_29, %c6, %c0_30] : memref<20x32x4xbf16, #tpu.memory_space<vmem>>, vector<20x20x4xbf16>
    %30 = vector.extract_strided_slice %29 {offsets = [0, 0, 0], sizes = [19, 20, 4], strides = [1, 1, 1]} : vector<20x20x4xbf16> to vector<19x20x4xbf16>
    %31 = vector.extract_strided_slice %29 {offsets = [1, 0, 0], sizes = [19, 20, 4], strides = [1, 1, 1]} : vector<20x20x4xbf16> to vector<19x20x4xbf16>
    %32 = arith.maximumf %30, %31 : vector<19x20x4xbf16>
    %33 = vector.extract_strided_slice %32 {offsets = [0, 0, 0], sizes = [17, 20, 4], strides = [1, 1, 1]} : vector<19x20x4xbf16> to vector<17x20x4xbf16>
    %34 = vector.extract_strided_slice %32 {offsets = [2, 0, 0], sizes = [17, 20, 4], strides = [1, 1, 1]} : vector<19x20x4xbf16> to vector<17x20x4xbf16>
    %35 = arith.maximumf %33, %34 : vector<17x20x4xbf16>
    %36 = vector.extract_strided_slice %35 {offsets = [0, 0, 0], sizes = [16, 20, 4], strides = [1, 1, 1]} : vector<17x20x4xbf16> to vector<16x20x4xbf16>
    %37 = vector.extract_strided_slice %35 {offsets = [1, 0, 0], sizes = [16, 20, 4], strides = [1, 1, 1]} : vector<17x20x4xbf16> to vector<16x20x4xbf16>
    %38 = arith.maximumf %36, %37 : vector<16x20x4xbf16>
    %39 = vector.extract_strided_slice %38 {offsets = [0, 0, 0], sizes = [16, 19, 4], strides = [1, 1, 1]} : vector<16x20x4xbf16> to vector<16x19x4xbf16>
    %40 = vector.extract_strided_slice %38 {offsets = [0, 1, 0], sizes = [16, 19, 4], strides = [1, 1, 1]} : vector<16x20x4xbf16> to vector<16x19x4xbf16>
    %41 = arith.maximumf %39, %40 : vector<16x19x4xbf16>
    %42 = vector.extract_strided_slice %41 {offsets = [0, 0, 0], sizes = [16, 17, 4], strides = [1, 1, 1]} : vector<16x19x4xbf16> to vector<16x17x4xbf16>
    %43 = vector.extract_strided_slice %41 {offsets = [0, 2, 0], sizes = [16, 17, 4], strides = [1, 1, 1]} : vector<16x19x4xbf16> to vector<16x17x4xbf16>
    %44 = arith.maximumf %42, %43 : vector<16x17x4xbf16>
    %45 = vector.extract_strided_slice %44 {offsets = [0, 0, 0], sizes = [16, 16, 4], strides = [1, 1, 1]} : vector<16x17x4xbf16> to vector<16x16x4xbf16>
    %46 = vector.extract_strided_slice %44 {offsets = [0, 1, 0], sizes = [16, 16, 4], strides = [1, 1, 1]} : vector<16x17x4xbf16> to vector<16x16x4xbf16>
    %47 = arith.maximumf %45, %46 : vector<16x16x4xbf16>
    %c0_31 = arith.constant 0 : index
    %c0_32 = arith.constant 0 : index
    %48 = vector.load %arg8[%c0_31, %c0_32] : memref<256x8xf32, #tpu.memory_space<vmem>>, vector<256x8xf32>
    %49 = vector.shape_cast %47 : vector<16x16x4xbf16> to vector<256x4xbf16>
    %c1 = arith.constant 1 : index
    %c0_33 = arith.constant 0 : index
    %c0_34 = arith.constant 0 : index
    %50 = vector.load %arg4[%c1, %c0_33, %c0_34] : memref<4x4x8xbf16, #tpu.memory_space<vmem>>, vector<1x4x8xbf16>
    %51 = vector.shape_cast %50 : vector<1x4x8xbf16> to vector<4x8xbf16>
    %cst_35 = arith.constant dense<0.000000e+00> : vector<256x8xf32>
    %52 = tpu.matmul %49, %51, %cst_35 {dimension_numbers = #tpu.dot_dimension_numbers<[1], [0], [0], [1], [0, 0, 1, 1], [], []>} : vector<256x4xbf16>, vector<4x8xbf16>, vector<256x8xf32> -> vector<256x8xf32>
    %53 = arith.addf %48, %52 : vector<256x8xf32>
    %c0_36 = arith.constant 0 : index
    %c0_37 = arith.constant 0 : index
    %54 = vector.load %arg8[%c0_36, %c0_37] : memref<256x8xf32, #tpu.memory_space<vmem>>, vector<256x8xf32>
    tpu.vector_store %arg8[%c0_36, %c0_37], %53 {strides = array<i32>} : memref<256x8xf32, #tpu.memory_space<vmem>>, vector<256x8xf32>,
    %c2_38 = arith.constant 2 : index
    %c8_39 = arith.constant 8 : index
    %c0_40 = arith.constant 0 : index
    %55 = vector.load %arg7[%c2_38, %c8_39, %c0_40] : memref<20x32x4xbf16, #tpu.memory_space<vmem>>, vector<16x16x4xbf16>
    tpu.vector_store %arg7[%c2_38, %c8_39, %c0_40], %47 {strides = array<i32>} : memref<20x32x4xbf16, #tpu.memory_space<vmem>>, vector<16x16x4xbf16>,
    %c0_41 = arith.constant 0 : index
    %c6_42 = arith.constant 6 : index
    %c0_43 = arith.constant 0 : index
    %56 = vector.load %arg7[%c0_41, %c6_42, %c0_43] : memref<20x32x4xbf16, #tpu.memory_space<vmem>>, vector<20x20x4xbf16>
    %57 = vector.extract_strided_slice %56 {offsets = [0, 0, 0], sizes = [19, 20, 4], strides = [1, 1, 1]} : vector<20x20x4xbf16> to vector<19x20x4xbf16>
    %58 = vector.extract_strided_slice %56 {offsets = [1, 0, 0], sizes = [19, 20, 4], strides = [1, 1, 1]} : vector<20x20x4xbf16> to vector<19x20x4xbf16>
    %59 = arith.maximumf %57, %58 : vector<19x20x4xbf16>
    %60 = vector.extract_strided_slice %59 {offsets = [0, 0, 0], sizes = [17, 20, 4], strides = [1, 1, 1]} : vector<19x20x4xbf16> to vector<17x20x4xbf16>
    %61 = vector.extract_strided_slice %59 {offsets = [2, 0, 0], sizes = [17, 20, 4], strides = [1, 1, 1]} : vector<19x20x4xbf16> to vector<17x20x4xbf16>
    %62 = arith.maximumf %60, %61 : vector<17x20x4xbf16>
    %63 = vector.extract_strided_slice %62 {offsets = [0, 0, 0], sizes = [16, 20, 4], strides = [1, 1, 1]} : vector<17x20x4xbf16> to vector<16x20x4xbf16>
    %64 = vector.extract_strided_slice %62 {offsets = [1, 0, 0], sizes = [16, 20, 4], strides = [1, 1, 1]} : vector<17x20x4xbf16> to vector<16x20x4xbf16>
    %65 = arith.maximumf %63, %64 : vector<16x20x4xbf16>
    %66 = vector.extract_strided_slice %65 {offsets = [0, 0, 0], sizes = [16, 19, 4], strides = [1, 1, 1]} : vector<16x20x4xbf16> to vector<16x19x4xbf16>
    %67 = vector.extract_strided_slice %65 {offsets = [0, 1, 0], sizes = [16, 19, 4], strides = [1, 1, 1]} : vector<16x20x4xbf16> to vector<16x19x4xbf16>
    %68 = arith.maximumf %66, %67 : vector<16x19x4xbf16>
    %69 = vector.extract_strided_slice %68 {offsets = [0, 0, 0], sizes = [16, 17, 4], strides = [1, 1, 1]} : vector<16x19x4xbf16> to vector<16x17x4xbf16>
    %70 = vector.extract_strided_slice %68 {offsets = [0, 2, 0], sizes = [16, 17, 4], strides = [1, 1, 1]} : vector<16x19x4xbf16> to vector<16x17x4xbf16>
    %71 = arith.maximumf %69, %70 : vector<16x17x4xbf16>
    %72 = vector.extract_strided_slice %71 {offsets = [0, 0, 0], sizes = [16, 16, 4], strides = [1, 1, 1]} : vector<16x17x4xbf16> to vector<16x16x4xbf16>
    %73 = vector.extract_strided_slice %71 {offsets = [0, 1, 0], sizes = [16, 16, 4], strides = [1, 1, 1]} : vector<16x17x4xbf16> to vector<16x16x4xbf16>
    %74 = arith.maximumf %72, %73 : vector<16x16x4xbf16>
    %c0_44 = arith.constant 0 : index
    %c0_45 = arith.constant 0 : index
    %75 = vector.load %arg8[%c0_44, %c0_45] : memref<256x8xf32, #tpu.memory_space<vmem>>, vector<256x8xf32>
    %76 = vector.shape_cast %74 : vector<16x16x4xbf16> to vector<256x4xbf16>
    %c2_46 = arith.constant 2 : index
    %c0_47 = arith.constant 0 : index
    %c0_48 = arith.constant 0 : index
    %77 = vector.load %arg4[%c2_46, %c0_47, %c0_48] : memref<4x4x8xbf16, #tpu.memory_space<vmem>>, vector<1x4x8xbf16>
    %78 = vector.shape_cast %77 : vector<1x4x8xbf16> to vector<4x8xbf16>
    %cst_49 = arith.constant dense<0.000000e+00> : vector<256x8xf32>
    %79 = tpu.matmul %76, %78, %cst_49 {dimension_numbers = #tpu.dot_dimension_numbers<[1], [0], [0], [1], [0, 0, 1, 1], [], []>} : vector<256x4xbf16>, vector<4x8xbf16>, vector<256x8xf32> -> vector<256x8xf32>
    %80 = arith.addf %75, %79 : vector<256x8xf32>
    %c0_50 = arith.constant 0 : index
    %c0_51 = arith.constant 0 : index
    %81 = vector.load %arg8[%c0_50, %c0_51] : memref<256x8xf32, #tpu.memory_space<vmem>>, vector<256x8xf32>
    tpu.vector_store %arg8[%c0_50, %c0_51], %80 {strides = array<i32>} : memref<256x8xf32, #tpu.memory_space<vmem>>, vector<256x8xf32>,
    %c2_52 = arith.constant 2 : index
    %c8_53 = arith.constant 8 : index
    %c0_54 = arith.constant 0 : index
    %82 = vector.load %arg7[%c2_52, %c8_53, %c0_54] : memref<20x32x4xbf16, #tpu.memory_space<vmem>>, vector<16x16x4xbf16>
    tpu.vector_store %arg7[%c2_52, %c8_53, %c0_54], %74 {strides = array<i32>} : memref<20x32x4xbf16, #tpu.memory_space<vmem>>, vector<16x16x4xbf16>,
    %c0_55 = arith.constant 0 : index
    %c6_56 = arith.constant 6 : index
    %c0_57 = arith.constant 0 : index
    %83 = vector.load %arg7[%c0_55, %c6_56, %c0_57] : memref<20x32x4xbf16, #tpu.memory_space<vmem>>, vector<20x20x4xbf16>
    %84 = vector.extract_strided_slice %83 {offsets = [0, 0, 0], sizes = [19, 20, 4], strides = [1, 1, 1]} : vector<20x20x4xbf16> to vector<19x20x4xbf16>
    %85 = vector.extract_strided_slice %83 {offsets = [1, 0, 0], sizes = [19, 20, 4], strides = [1, 1, 1]} : vector<20x20x4xbf16> to vector<19x20x4xbf16>
    %86 = arith.maximumf %84, %85 : vector<19x20x4xbf16>
    %87 = vector.extract_strided_slice %86 {offsets = [0, 0, 0], sizes = [17, 20, 4], strides = [1, 1, 1]} : vector<19x20x4xbf16> to vector<17x20x4xbf16>
    %88 = vector.extract_strided_slice %86 {offsets = [2, 0, 0], sizes = [17, 20, 4], strides = [1, 1, 1]} : vector<19x20x4xbf16> to vector<17x20x4xbf16>
    %89 = arith.maximumf %87, %88 : vector<17x20x4xbf16>
    %90 = vector.extract_strided_slice %89 {offsets = [0, 0, 0], sizes = [16, 20, 4], strides = [1, 1, 1]} : vector<17x20x4xbf16> to vector<16x20x4xbf16>
    %91 = vector.extract_strided_slice %89 {offsets = [1, 0, 0], sizes = [16, 20, 4], strides = [1, 1, 1]} : vector<17x20x4xbf16> to vector<16x20x4xbf16>
    %92 = arith.maximumf %90, %91 : vector<16x20x4xbf16>
    %93 = vector.extract_strided_slice %92 {offsets = [0, 0, 0], sizes = [16, 19, 4], strides = [1, 1, 1]} : vector<16x20x4xbf16> to vector<16x19x4xbf16>
    %94 = vector.extract_strided_slice %92 {offsets = [0, 1, 0], sizes = [16, 19, 4], strides = [1, 1, 1]} : vector<16x20x4xbf16> to vector<16x19x4xbf16>
    %95 = arith.maximumf %93, %94 : vector<16x19x4xbf16>
    %96 = vector.extract_strided_slice %95 {offsets = [0, 0, 0], sizes = [16, 17, 4], strides = [1, 1, 1]} : vector<16x19x4xbf16> to vector<16x17x4xbf16>
    %97 = vector.extract_strided_slice %95 {offsets = [0, 2, 0], sizes = [16, 17, 4], strides = [1, 1, 1]} : vector<16x19x4xbf16> to vector<16x17x4xbf16>
    %98 = arith.maximumf %96, %97 : vector<16x17x4xbf16>
    %99 = vector.extract_strided_slice %98 {offsets = [0, 0, 0], sizes = [16, 16, 4], strides = [1, 1, 1]} : vector<16x17x4xbf16> to vector<16x16x4xbf16>
    %100 = vector.extract_strided_slice %98 {offsets = [0, 1, 0], sizes = [16, 16, 4], strides = [1, 1, 1]} : vector<16x17x4xbf16> to vector<16x16x4xbf16>
    %101 = arith.maximumf %99, %100 : vector<16x16x4xbf16>
    %c0_58 = arith.constant 0 : index
    %c0_59 = arith.constant 0 : index
    %102 = vector.load %arg8[%c0_58, %c0_59] : memref<256x8xf32, #tpu.memory_space<vmem>>, vector<256x8xf32>
    %103 = vector.shape_cast %101 : vector<16x16x4xbf16> to vector<256x4xbf16>
    %c3 = arith.constant 3 : index
    %c0_60 = arith.constant 0 : index
    %c0_61 = arith.constant 0 : index
    %104 = vector.load %arg4[%c3, %c0_60, %c0_61] : memref<4x4x8xbf16, #tpu.memory_space<vmem>>, vector<1x4x8xbf16>
    %105 = vector.shape_cast %104 : vector<1x4x8xbf16> to vector<4x8xbf16>
    %cst_62 = arith.constant dense<0.000000e+00> : vector<256x8xf32>
    %106 = tpu.matmul %103, %105, %cst_62 {dimension_numbers = #tpu.dot_dimension_numbers<[1], [0], [0], [1], [0, 0, 1, 1], [], []>} : vector<256x4xbf16>, vector<4x8xbf16>, vector<256x8xf32> -> vector<256x8xf32>
    %107 = arith.addf %102, %106 : vector<256x8xf32>
    %c0_63 = arith.constant 0 : index
    %c0_64 = arith.constant 0 : index
    %108 = vector.load %arg8[%c0_63, %c0_64] : memref<256x8xf32, #tpu.memory_space<vmem>>, vector<256x8xf32>
    tpu.vector_store %arg8[%c0_63, %c0_64], %107 {strides = array<i32>} : memref<256x8xf32, #tpu.memory_space<vmem>>, vector<256x8xf32>,
    %c0_65 = arith.constant 0 : index
    %c0_66 = arith.constant 0 : index
    %109 = vector.load %arg8[%c0_65, %c0_66] : memref<256x8xf32, #tpu.memory_space<vmem>>, vector<256x8xf32>
    %c0_67 = arith.constant 0 : index
    %c0_68 = arith.constant 0 : index
    %110 = vector.load %arg5[%c0_67, %c0_68] : memref<1x8xf32, #tpu.memory_space<vmem>>, vector<1x8xf32>
    %111 = vector.broadcast %110 : vector<1x8xf32> to vector<256x8xf32>
    %112 = arith.addf %109, %111 : vector<256x8xf32>
    %113 = arith.negf %112 : vector<256x8xf32>
    %114 = math.exp %113 : vector<256x8xf32>
    %cst_69 = arith.constant 1.000000e+00 : f32
    %115 = vector.broadcast %cst_69 : f32 to vector<256x8xf32>
    %116 = arith.addf %115, %114 : vector<256x8xf32>
    %117 = arith.divf %115, %116 : vector<256x8xf32>
    %118 = arith.mulf %112, %117 : vector<256x8xf32>
    %119 = vector.shape_cast %118 : vector<256x8xf32> to vector<1x16x16x8xf32>
    %c0_70 = arith.constant 0 : index
    %c0_71 = arith.constant 0 : index
    %c0_72 = arith.constant 0 : index
    %c0_73 = arith.constant 0 : index
    %120 = vector.load %arg6[%c0_70, %c0_71, %c0_72, %c0_73] : memref<1x16x16x8xf32, #tpu.memory_space<vmem>>, vector<1x16x16x8xf32>
    tpu.vector_store %arg6[%c0_70, %c0_71, %c0_72, %c0_73], %119 {strides = array<i32>} : memref<1x16x16x8xf32, #tpu.memory_space<vmem>>, vector<1x16x16x8xf32>,
    return
  }
  func.func @transform_0(%arg0: i32) -> (i32, i32, i32, i32) {
    %c0_i32 = arith.constant 0 : i32
    %c0_i32_0 = arith.constant 0 : i32
    %c0_i32_1 = arith.constant 0 : i32
    %c0_i32_2 = arith.constant 0 : i32
    return %arg0, %c0_i32, %c0_i32_0, %c0_i32_1 : i32, i32, i32, i32
  }
  func.func @transform_1(%arg0: i32) -> (i32, i32) {
    %c0_i32 = arith.constant 0 : i32
    %c0_i32_0 = arith.constant 0 : i32
    %c0_i32_1 = arith.constant 0 : i32
    return %c0_i32, %c0_i32_0 : i32, i32
  }
  func.func @transform_2(%arg0: i32) -> (i32, i32) {
    %c0_i32 = arith.constant 0 : i32
    %c0_i32_0 = arith.constant 0 : i32
    %c0_i32_1 = arith.constant 0 : i32
    return %c0_i32, %c0_i32_0 : i32, i32
  }
  func.func @transform_3(%arg0: i32) -> (i32, i32, i32) {
    %c0_i32 = arith.constant 0 : i32
    %c0_i32_0 = arith.constant 0 : i32
    %c0_i32_1 = arith.constant 0 : i32
    %c0_i32_2 = arith.constant 0 : i32
    return %c0_i32, %c0_i32_0, %c0_i32_1 : i32, i32, i32
  }
  func.func @transform_4(%arg0: i32) -> (i32, i32) {
    %c0_i32 = arith.constant 0 : i32
    %c0_i32_0 = arith.constant 0 : i32
    %c0_i32_1 = arith.constant 0 : i32
    return %c0_i32, %c0_i32_0 : i32, i32
  }
  func.func @transform_5(%arg0: i32) -> (i32, i32, i32, i32) {
    %c0_i32 = arith.constant 0 : i32
    %c0_i32_0 = arith.constant 0 : i32
    %c0_i32_1 = arith.constant 0 : i32
    %c0_i32_2 = arith.constant 0 : i32
    return %arg0, %c0_i32, %c0_i32_0, %c0_i32_1 : i32, i32, i32, i32
  }
}

</mosaic_0001>

<llo_original>
// kernel: _spp_impl.1
$region0: #{_spp_impl.1}
  #allocation0 [shape = 'u32[]', space=smem, size = 0x4, offset = 0x4, fixed_abs, tag = 'smem constant byte address 0x4 - core index']
  #allocation1 [shape = 'u32[144,128]{1,0:T(1,128)}', space=vmem, size = 0x12000, scoped, tag = 'internal scratch']
  #allocation2 [shape = 'bf16[20,32,4]{2,1,0:T(16,128)(2,1)}', space=vmem, size = 0x28000, scoped, tag = 'scratch operand']
  #allocation3 [shape = 'f32[256,8]{1,0:T(8,128)}', space=vmem, size = 0x20000, scoped, tag = 'scratch operand']
  %s0 = inlined_call_operand.vmem [shape: bf16[2,16,16,8], index: 0, kind: input, shape index: {}]
  %s1 = inlined_call_operand.vmem [shape: bf16[8,4], index: 1, kind: input, shape index: {}]
  %s2 = inlined_call_operand.vmem [shape: f32[1,4], index: 2, kind: input, shape index: {}]
  %s3 = inlined_call_operand.vmem [shape: bf16[4,4,8], index: 3, kind: input, shape index: {}]
  %s4 = inlined_call_operand.vmem [shape: f32[1,8], index: 4, kind: input, shape index: {}]
  %s5 = inlined_call_operand.vmem [shape: f32[2,16,16,8], index: 5, kind: output, shape index: {}]
  %s6 = sld [smem:[#allocation0]]
  $region53: #{_spp_impl.1} parent=0
    _
  %s8 = ssub.s32 1, %s6
  %s9 = scalar_select 0, %s8, %s6
  loop: start=0, step=1, limit=4
  $region2: #{_spp_impl.1} parent=0 // loop_pre_header
    _
  $region3: #{_spp_impl.1} parent=0 // loop_header
    %s11 = sphi 0, %s15
    %p12 = scmp.ge.s32.totalorder %s11, 4
    %s21 = sphi 0, %s23
    %s24 = sphi 0, %s21
    %s25 = sphi 0, %s24
    %s41 = sphi 0, %s25
    %s45 = sphi 0, %s45
    %s47 = sphi 0, %s45
    %s48 = sphi 0, %s47
    %s62 = sphi 0, %s48
    %s66 = sphi 0, %s66
    %s68 = sphi 0, %s66
    %s69 = sphi 0, %s68
    %s83 = sphi 0, %s69
    %s87 = sphi 0, %s87
    %s89 = sphi 0, %s87
    %s90 = sphi 0, %s89
    %s104 = sphi 0, %s90
    %s108 = sphi 0, %s108
    %s110 = sphi 0, %s108
    %s111 = sphi 0, %s110
    %s125 = sphi 0, %s111
    %s131 = sphi 0, %s133
    %s134 = sphi 0, %s131
    %s135 = sphi 0, %s134
    %s151 = sphi 0, %s135
  $region4: #{_spp_impl.1} parent=0 // loop_header_branch
    %14 = sbr.rel (%p12) target = $region8
  $region5: #{_spp_impl.1} parent=0 // loop_body
    %s16 = ssub.s32 %s11, 1
    %s17 = ssub.s32 %s11, 2
    %s18 = sadd.s32 %s11, 1
    %s19 = ssub.s32 %s11, %s18
    %p20 = scmp.eq.s32.totalorder %s19, 0
    %s22 = sadd.s32 %s21, 1
    %s23 = scalar_select %p20, %s21, %s22
    %p26 = pneg %p20
    %p27 = scmp.eq.s32.totalorder %s11, 1
    %p28 = por %p26, %p27
    %p29 = scmp.ne.s32.totalorder %s21, %s24
    %p30 = scmp.eq.s32.totalorder %s11, 0
    %p31 = por %p29, %p30
    %p32 = scmp.ne.s32.totalorder %s21, %s24
    %p33 = scmp.eq.s32.totalorder %s16, 1
    %p34 = por %p32, %p33
    %p35 = scmp.ne.s32.totalorder %s24, %s25
    %p36 = scmp.eq.s32.totalorder %s16, 0
    %p37 = por %p35, %p36
    %p38 = scmp.ne.s32.totalorder %s24, %s25
    %p39 = scmp.eq.s32.totalorder %s17, 1
    %p40 = por %p38, %p39
    %p42 = scmp.ne.s32.totalorder %s25, %s41
    %p43 = scmp.eq.s32.totalorder %s17, 0
    %p44 = por %p42, %p43
    %s46 = sadd.s32 %s45, 1
    %p49 = scmp.eq.s32.totalorder %s11, 1
    %p50 = scmp.ne.s32.totalorder %s45, %s47
    %p51 = scmp.eq.s32.totalorder %s11, 0
    %p52 = por %p50, %p51
    %p53 = scmp.ne.s32.totalorder %s45, %s47
    %p54 = scmp.eq.s32.totalorder %s16, 1
    %p55 = por %p53, %p54
    %p56 = scmp.ne.s32.totalorder %s47, %s48
    %p57 = scmp.eq.s32.totalorder %s16, 0
    %p58 = por %p56, %p57
    %p59 = scmp.ne.s32.totalorder %s47, %s48
    %p60 = scmp.eq.s32.totalorder %s17, 1
    %p61 = por %p59, %p60
    %p63 = scmp.ne.s32.totalorder %s48, %s62
    %p64 = scmp.eq.s32.totalorder %s17, 0
    %p65 = por %p63, %p64
    %s67 = sadd.s32 %s66, 1
    %p70 = scmp.eq.s32.totalorder %s11, 1
    %p71 = scmp.ne.s32.totalorder %s66, %s68
    %p72 = scmp.eq.s32.totalorder %s11, 0
    %p73 = por %p71, %p72
    %p74 = scmp.ne.s32.totalorder %s66, %s68
    %p75 = scmp.eq.s32.totalorder %s16, 1
    %p76 = por %p74, %p75
    %p77 = scmp.ne.s32.totalorder %s68, %s69
    %p78 = scmp.eq.s32.totalorder %s16, 0
    %p79 = por %p77, %p78
    %p80 = scmp.ne.s32.totalorder %s68, %s69
    %p81 = scmp.eq.s32.totalorder %s17, 1
    %p82 = por %p80, %p81
    %p84 = scmp.ne.s32.totalorder %s69, %s83
    %p85 = scmp.eq.s32.totalorder %s17, 0
    %p86 = por %p84, %p85
    %s88 = sadd.s32 %s87, 1
    %p91 = scmp.eq.s32.totalorder %s11, 1
    %p92 = scmp.ne.s32.totalorder %s87, %s89
    %p93 = scmp.eq.s32.totalorder %s11, 0
    %p94 = por %p92, %p93
    %p95 = scmp.ne.s32.totalorder %s87, %s89
    %p96 = scmp.eq.s32.totalorder %s16, 1
    %p97 = por %p95, %p96
    %p98 = scmp.ne.s32.totalorder %s89, %s90
    %p99 = scmp.eq.s32.totalorder %s16, 0
    %p100 = por %p98, %p99
    %p101 = scmp.ne.s32.totalorder %s89, %s90
    %p102 = scmp.eq.s32.totalorder %s17, 1
    %p103 = por %p101, %p102
    %p105 = scmp.ne.s32.totalorder %s90, %s104
    %p106 = scmp.eq.s32.totalorder %s17, 0
    %p107 = por %p105, %p106
    %s109 = sadd.s32 %s108, 1
    %p112 = scmp.eq.s32.totalorder %s11, 1
    %p113 = scmp.ne.s32.totalorder %s108, %s110
    %p114 = scmp.eq.s32.totalorder %s11, 0
    %p115 = por %p113, %p114
    %p116 = scmp.ne.s32.totalorder %s108, %s110
    %p117 = scmp.eq.s32.totalorder %s16, 1
    %p118 = por %p116, %p117
    %p119 = scmp.ne.s32.totalorder %s110, %s111
    %p120 = scmp.eq.s32.totalorder %s16, 0
    %p121 = por %p119, %p120
    %p122 = scmp.ne.s32.totalorder %s110, %s111
    %p123 = scmp.eq.s32.totalorder %s17, 1
    %p124 = por %p122, %p123
    %p126 = scmp.ne.s32.totalorder %s111, %s125
    %p127 = scmp.eq.s32.totalorder %s17, 0
    %p128 = por %p126, %p127
    %s129 = ssub.s32 %s11, %s18
    %p130 = scmp.eq.s32.totalorder %s129, 0
    %s132 = sadd.s32 %s131, 1
    %s133 = scalar_select %p130, %s131, %s132
    %p136 = pneg %p130
    %p137 = scmp.eq.s32.totalorder %s11, 1
    %p138 = por %p136, %p137
    %p139 = scmp.ne.s32.totalorder %s131, %s134
    %p140 = scmp.eq.s32.totalorder %s11, 0
    %p141 = por %p139, %p140
    %p142 = scmp.ne.s32.totalorder %s131, %s134
    %p143 = scmp.eq.s32.totalorder %s16, 1
    %p144 = por %p142, %p143
    %p145 = scmp.ne.s32.totalorder %s134, %s135
    %p146 = scmp.eq.s32.totalorder %s16, 0
    %p147 = por %p145, %p146
    %p148 = scmp.ne.s32.totalorder %s134, %s135
    %p149 = scmp.eq.s32.totalorder %s17, 1
    %p150 = por %p148, %p149
    %p152 = scmp.ne.s32.totalorder %s135, %s151
    %p153 = scmp.eq.s32.totalorder %s17, 0
    %p154 = por %p152, %p153
    %p155 = scmp.le.s32.totalorder 1, %s11
    %p156 = scmp.lt.s32.totalorder %s11, 3
    %p157 = pnand %p155, %p156
    %p158 = pneg %p157
    // Predicated region
    $region9: #{_spp_impl.1} parent=5 // pred_check
      _
    $region10: #{_spp_impl.1} parent=5 // pred_check_branch
      %160 = sbr.rel (%p157) target = $region12
    $region11: #{_spp_impl.1} parent=5 // pred_region
      %s161 = ssub.s32 %s11, 1
      // Predicated region
      $region13: #{_spp_impl.1} parent=11 // pred_check
        %p162 = pneg %p58
      $region14: #{_spp_impl.1} parent=11 // pred_check_branch
        %164 = sbr.rel (%p162) target = $region16
      $region15: #{_spp_impl.1} parent=11 // pred_region
        _
      $region16: #{_spp_impl.1} parent=11 // pred_fallthru
        _
      // Predicated region
      $region17: #{_spp_impl.1} parent=11 // pred_check
        %p165 = pneg %p79
      $region18: #{_spp_impl.1} parent=11 // pred_check_branch
        %167 = sbr.rel (%p165) target = $region20
      $region19: #{_spp_impl.1} parent=11 // pred_region
        _
      $region20: #{_spp_impl.1} parent=11 // pred_fallthru
        _
      // Predicated region
      $region21: #{_spp_impl.1} parent=11 // pred_check
        %p168 = pneg %p100
      $region22: #{_spp_impl.1} parent=11 // pred_check_branch
        %170 = sbr.rel (%p168) target = $region24
      $region23: #{_spp_impl.1} parent=11 // pred_region
        _
      $region24: #{_spp_impl.1} parent=11 // pred_fallthru
        _
      // Predicated region
      $region25: #{_spp_impl.1} parent=11 // pred_check
        %p171 = pneg %p121
      $region26: #{_spp_impl.1} parent=11 // pred_check_branch
        %173 = sbr.rel (%p171) target = $region28
      $region27: #{_spp_impl.1} parent=11 // pred_region
        _
      $region28: #{_spp_impl.1} parent=11 // pred_fallthru
        _
    $region12: #{_spp_impl.1} parent=5 // pred_fallthru
      _
    %p174 = scmp.lt.s32.totalorder %s11, 2
    // Predicated region
    $region29: #{_spp_impl.1} parent=5 // pred_check
      %p175 = pneg %p174
    $region30: #{_spp_impl.1} parent=5 // pred_check_branch
      %177 = sbr.rel (%p175) target = $region32
    $region31: #{_spp_impl.1} parent=5 // pred_region
      // Predicated region
      $region33: #{_spp_impl.1} parent=31 // pred_check
        %p178 = pneg %p31
      $region34: #{_spp_impl.1} parent=31 // pred_check_branch
        %180 = sbr.rel (%p178) target = $region36
      $region35: #{_spp_impl.1} parent=31 // pred_region
        %p181 = scmp.lt.s32.totalorder %s11, 1
        %s182 = scalar_select %p181, %s11, 1
        %s183 = smul.addr %s182, 32
        %s184 = smul.addr %s183, 4
        %s185 = scalar_lea.vmem %s0, %s184
      $region36: #{_spp_impl.1} parent=31 // pred_fallthru
        _
    $region32: #{_spp_impl.1} parent=5 // pred_fallthru
      _
    %p186 = scmp.le.s32.totalorder 1, %s11
    %p187 = scmp.lt.s32.totalorder %s11, 3
    %p188 = pnand %p186, %p187
    %p189 = pneg %p188
    // Predicated region
    $region37: #{_spp_impl.1} parent=5 // pred_check
      _
    $region38: #{_spp_impl.1} parent=5 // pred_check_branch
      %191 = sbr.rel (%p188) target = $region40
    $region39: #{_spp_impl.1} parent=5 // pred_region
      %s192 = ssub.s32 %s11, 1
      %p193 = scmp.lt.s32.totalorder %s16, 1
      %s194 = scalar_select %p193, %s16, 1
      %s195 = smul.addr %s194, 32
      %s196 = smul.addr %s195, 4
      %s197 = scalar_lea.vmem %s0, %s196
      %p198 = pneg %p37
      %p199 = pneg %p34
      %p200 = pneg %p58
      %p201 = pneg %p55
      %p202 = pneg %p79
      %p203 = pneg %p76
      %p204 = pneg %p100
      %p205 = pneg %p97
      %p206 = pneg %p121
      %p207 = pneg %p118
      %p208 = pneg %p147
      %p209 = pneg %p144
      %p210 = scmp.lt.s32.totalorder %s16, 1
      %s211 = scalar_select %p210, %s16, 1
      %s212 = smul.addr %s211, 32
      %s213 = smul.addr %s212, 8
      %s214 = scalar_lea.vmem %s5, %s213
      %p215 = scmp.lt.s32.totalorder %s16, 1
      %s216 = scalar_select %p215, %s16, 1
      %s217 = smul.addr %s216, 32
      %s218 = smul.addr %s217, 4
      %s219 = scalar_lea.vmem %s0, %s218
      %p220 = scmp.lt.s32.totalorder %s16, 1
      %s221 = scalar_select %p220, %s16, 1
      %s222 = smul.addr %s221, 32
      %s223 = smul.addr %s222, 8
      %s224 = scalar_lea.vmem %s5, %s223
      %vm227 = vcmask 31744
      %228 = vst.msk [vmem:[#allocation2] sm:$0xff] %vm227, 4048220490
      %229 = vst.msk [vmem:[#allocation2 + $0x8] sm:$0xff] %vm227, 4048220490
      %230 = vst.msk [vmem:[#allocation2 + $0x10] sm:$0xff] %vm227, 4048220490
      %231 = vst.msk [vmem:[#allocation2 + $0x18] sm:$0xff] %vm227, 4048220490
      %s232 = scalar_lea.vmem [#allocation2], 288
      %233 = vst.msk [vmem:[%s232] sm:$0xff] %vm227, 4048220490
      %234 = vst.msk [vmem:[%s232 + $0x8] sm:$0xff] %vm227, 4048220490
      %235 = vst.msk [vmem:[%s232 + $0x10] sm:$0xff] %vm227, 4048220490
      %236 = vst.msk [vmem:[%s232 + $0x18] sm:$0xff] %vm227, 4048220490
      %s237 = scalar_lea.vmem [#allocation2], 32
      %vm238 = vcmask 27648
      %239 = vst.msk [vmem:[%s237] sm:$0xf] %vm238, 4048220490
      %240 = vst.msk [vmem:[%s237 + $0x10] sm:$0xf] %vm238, 4048220490
      %241 = vst.msk [vmem:[%s237 + $0x20] sm:$0xf] %vm238, 4048220490
      %242 = vst.msk [vmem:[%s237 + $0x30] sm:$0xf] %vm238, 4048220490
      %243 = vst.msk [vmem:[%s237 + $0x40] sm:$0xf] %vm238, 4048220490
      %244 = vst.msk [vmem:[%s237 + $0x50] sm:$0xf] %vm238, 4048220490
      %245 = vst.msk [vmem:[%s237 + $0x60] sm:$0xf] %vm238, 4048220490
      %246 = vst.msk [vmem:[%s237 + $0x70] sm:$0xf] %vm238, 4048220490
      %247 = vst.msk [vmem:[%s237 + $0x80] sm:$0xf] %vm238, 4048220490
      %248 = vst.msk [vmem:[%s237 + $0x90] sm:$0xf] %vm238, 4048220490
      %249 = vst.msk [vmem:[%s237 + $0xa0] sm:$0xf] %vm238, 4048220490
      %250 = vst.msk [vmem:[%s237 + $0xb0] sm:$0xf] %vm238, 4048220490
      %251 = vst.msk [vmem:[%s237 + $0xc0] sm:$0xf] %vm238, 4048220490
      %252 = vst.msk [vmem:[%s237 + $0xd0] sm:$0xf] %vm238, 4048220490
      %253 = vst.msk [vmem:[%s237 + $0xe0] sm:$0xf] %vm238, 4048220490
      %254 = vst.msk [vmem:[%s237 + $0xf0] sm:$0xf] %vm238, 4048220490
      %vm255 = vcmask 31748
      %256 = vst.msk [vmem:[%s237 + $0x8] sm:$0xf0] %vm255, 4048220490
      %257 = vst.msk [vmem:[%s237 + $0x18] sm:$0xf0] %vm255, 4048220490
      %258 = vst.msk [vmem:[%s237 + $0x28] sm:$0xf0] %vm255, 4048220490
      %259 = vst.msk [vmem:[%s237 + $0x38] sm:$0xf0] %vm255, 4048220490
      %260 = vst.msk [vmem:[%s237 + $0x48] sm:$0xf0] %vm255, 4048220490
      %261 = vst.msk [vmem:[%s237 + $0x58] sm:$0xf0] %vm255, 4048220490
      %262 = vst.msk [vmem:[%s237 + $0x68] sm:$0xf0] %vm255, 4048220490
      %263 = vst.msk [vmem:[%s237 + $0x78] sm:$0xf0] %vm255, 4048220490
      %264 = vst.msk [vmem:[%s237 + $0x88] sm:$0xf0] %vm255, 4048220490
      %265 = vst.msk [vmem:[%s237 + $0x98] sm:$0xf0] %vm255, 4048220490
      %266 = vst.msk [vmem:[%s237 + $0xa8] sm:$0xf0] %vm255, 4048220490
      %267 = vst.msk [vmem:[%s237 + $0xb8] sm:$0xf0] %vm255, 4048220490
      %268 = vst.msk [vmem:[%s237 + $0xc8] sm:$0xf0] %vm255, 4048220490
      %269 = vst.msk [vmem:[%s237 + $0xd8] sm:$0xf0] %vm255, 4048220490
      %270 = vst.msk [vmem:[%s237 + $0xe8] sm:$0xf0] %vm255, 4048220490
      %271 = vst.msk [vmem:[%s237 + $0xf8] sm:$0xf0] %vm255, 4048220490
      %v272 = vld [vmem:[%s219] sm:$0xf]
      %v273 = vld [vmem:[%s219 + $0x4] sm:$0xf]
      %v274 = vld [vmem:[%s219 + $0x8] sm:$0xf]
      %v275 = vld [vmem:[%s219 + $0xc] sm:$0xf]
      %v276 = vld [vmem:[%s219 + $0x10] sm:$0xf]
      %v277 = vld [vmem:[%s219 + $0x14] sm:$0xf]
      %v278 = vld [vmem:[%s219 + $0x18] sm:$0xf]
      %v279 = vld [vmem:[%s219 + $0x1c] sm:$0xf]
      %v280 = vld [vmem:[%s219 + $0x20] sm:$0xf]
      %v281 = vld [vmem:[%s219 + $0x24] sm:$0xf]
      %v282 = vld [vmem:[%s219 + $0x28] sm:$0xf]
      %v283 = vld [vmem:[%s219 + $0x2c] sm:$0xf]
      %v284 = vld [vmem:[%s219 + $0x30] sm:$0xf]
      %v285 = vld [vmem:[%s219 + $0x34] sm:$0xf]
      %v286 = vld [vmem:[%s219 + $0x38] sm:$0xf]
      %v287 = vld [vmem:[%s219 + $0x3c] sm:$0xf]
      %v288 = vld [vmem:[%s219 + $0x40] sm:$0xf]
      %v289 = vld [vmem:[%s219 + $0x44] sm:$0xf]
      %v290 = vld [vmem:[%s219 + $0x48] sm:$0xf]
      %v291 = vld [vmem:[%s219 + $0x4c] sm:$0xf]
      %v292 = vld [vmem:[%s219 + $0x50] sm:$0xf]
      %v293 = vld [vmem:[%s219 + $0x54] sm:$0xf]
      %v294 = vld [vmem:[%s219 + $0x58] sm:$0xf]
      %v295 = vld [vmem:[%s219 + $0x5c] sm:$0xf]
      %v296 = vld [vmem:[%s219 + $0x60] sm:$0xf]
      %v297 = vld [vmem:[%s219 + $0x64] sm:$0xf]
      %v298 = vld [vmem:[%s219 + $0x68] sm:$0xf]
      %v299 = vld [vmem:[%s219 + $0x6c] sm:$0xf]
      %v300 = vld [vmem:[%s219 + $0x70] sm:$0xf]
      %v301 = vld [vmem:[%s219 + $0x74] sm:$0xf]
      %v302 = vld [vmem:[%s219 + $0x78] sm:$0xf]
      %v303 = vld [vmem:[%s219 + $0x7c] sm:$0xf]
      %v304 = vld [vmem:[%s1] sm:$0xf]
      %v305 = vld [vmem:[%s2] sm:$0x1]
      %v307 = vlaneseq
      %v308 = vshrl.u32 %v307, 7
      %v309 = vsub.s32 0, %v308
      %v310 = vrot.slane %v305, %v309
      %v344 = vunpack.c.l.b16 %v272
      %v345 = vunpack.c.l.b16 %v273
      %v346 = vunpack.c.l.b16 %v274
      %v347 = vunpack.c.l.b16 %v275
      %v348 = vunpack.c.l.b16 %v276
      %v349 = vunpack.c.l.b16 %v277
      %v350 = vunpack.c.l.b16 %v278
      %v351 = vunpack.c.l.b16 %v279
      %v352 = vunpack.c.l.b16 %v280
      %v353 = vunpack.c.l.b16 %v281
      %v354 = vunpack.c.l.b16 %v282
      %v355 = vunpack.c.l.b16 %v283
      %v356 = vunpack.c.l.b16 %v284
      %v357 = vunpack.c.l.b16 %v285
      %v358 = vunpack.c.l.b16 %v286
      %v359 = vunpack.c.l.b16 %v287
      %v360 = vunpack.c.l.b16 %v288
      %v361 = vunpack.c.l.b16 %v289
      %v362 = vunpack.c.l.b16 %v290
      %v363 = vunpack.c.l.b16 %v291
      %v364 = vunpack.c.l.b16 %v292
      %v365 = vunpack.c.l.b16 %v293
      %v366 = vunpack.c.l.b16 %v294
      %v367 = vunpack.c.l.b16 %v295
      %v368 = vunpack.c.l.b16 %v296
      %v369 = vunpack.c.l.b16 %v297
      %v370 = vunpack.c.l.b16 %v298
      %v371 = vunpack.c.l.b16 %v299
      %v372 = vunpack.c.l.b16 %v300
      %v373 = vunpack.c.l.b16 %v301
      %v374 = vunpack.c.l.b16 %v302
      %v375 = vunpack.c.l.b16 %v303
      %v376 = vpack.c.b16 %v345, %v344
      %v377 = vpack.c.b16 %v347, %v346
      %v378 = vpack.c.b16 %v349, %v348
      %v379 = vpack.c.b16 %v351, %v350
      %v380 = vpack.c.b16 %v353, %v352
      %v381 = vpack.c.b16 %v355, %v354
      %v382 = vpack.c.b16 %v357, %v356
      %v383 = vpack.c.b16 %v359, %v358
      %v384 = vpack.c.b16 %v361, %v360
      %v385 = vpack.c.b16 %v363, %v362
      %v386 = vpack.c.b16 %v365, %v364
      %v387 = vpack.c.b16 %v367, %v366
      %v388 = vpack.c.b16 %v369, %v368
      %v389 = vpack.c.b16 %v371, %v370
      %v390 = vpack.c.b16 %v373, %v372
      %v391 = vpack.c.b16 %v375, %v374
      %vm392 = vcmask 64512
      %v394 = vsel %vm392, %v376, 0
      %v397 = vsel %vm392, %v377, 0
      %v400 = vsel %vm392, %v378, 0
      %v403 = vsel %vm392, %v379, 0
      %v406 = vsel %vm392, %v380, 0
      %v409 = vsel %vm392, %v381, 0
      %v412 = vsel %vm392, %v382, 0
      %v415 = vsel %vm392, %v383, 0
      %v418 = vsel %vm392, %v384, 0
      %v421 = vsel %vm392, %v385, 0
      %v424 = vsel %vm392, %v386, 0
      %v427 = vsel %vm392, %v387, 0
      %v430 = vsel %vm392, %v388, 0
      %v433 = vsel %vm392, %v389, 0
      %v436 = vsel %vm392, %v390, 0
      %v439 = vsel %vm392, %v391, 0
      %vm441 = vcmask 1043456
      %v443 = vsel %vm441, %v304, 0
      %445 = vmatprep.subr.bf16.mxu0 0
      %446 = vmatpush1.bf16.msra.mxu0 %v443
      %447 = vmatprep.subr.bf16.mxu0 0
      %448 = vmatpush1.bf16.msra.mxu0 0
      %449 = vmatprep.subr.bf16.mxu0 0
      %450 = vmatpush1.bf16.msra.mxu0 0
      %451 = vmatprep.subr.bf16.mxu0 0
      %452 = vmatpush1.bf16.msra.mxu0 0
      %453 = vmatprep.subr.bf16.mxu0 0
      %454 = vmatpush1.bf16.msra.mxu0 0
      %455 = vmatprep.subr.bf16.mxu0 0
      %456 = vmatpush1.bf16.msra.mxu0 0
      %457 = vmatprep.subr.bf16.mxu0 0
      %458 = vmatpush1.bf16.msra.mxu0 0
      %459 = vmatprep.subr.bf16.mxu0 0
      %460 = vmatpush1.bf16.msra.mxu0 0
      %461 = vmatprep.subr.bf16.mxu0 0
      %462 = vmatpush1.bf16.msra.mxu0 0
      %463 = vmatprep.subr.bf16.mxu0 0
      %464 = vmatpush1.bf16.msra.mxu0 0
      %465 = vmatprep.subr.bf16.mxu0 0
      %466 = vmatpush1.bf16.msra.mxu0 0
      %467 = vmatprep.subr.bf16.mxu0 0
      %468 = vmatpush1.bf16.msra.mxu0 0
      %469 = vmatprep.subr.bf16.mxu0 0
      %470 = vmatpush1.bf16.msra.mxu0 0
      %471 = vmatprep.subr.bf16.mxu0 0
      %472 = vmatpush1.bf16.msra.mxu0 0
      %473 = vmatprep.subr.bf16.mxu0 0
      %474 = vmatpush1.bf16.msra.mxu0 0
      %475 = vmatprep.subr.bf16.mxu0 0
      %476 = vmatpush1.bf16.msra.mxu0 0
      %477 = vmatprep.mubr.bf16.mxu0 0
      %478 = vmatmul.mubr.bf16.gmra.mrb[0].mxu0 %v394
      %v479 = vpop.f32.mrb[0].mxu0
      %v480 = vadd.f32 %v310, %v479
      %v481 = vpop.f32.mrb[0].mxu0
      %v482 = vpop.f32.mrb[0].mxu0
      %v483 = vadd.f32 %v310, %v482
      %v484 = vpop.f32.mrb[0].mxu0
      %485 = vmatprep.mubr.bf16.mxu0 0
      %486 = vmatmul.mubr.bf16.gmra.mrb[0].mxu0 %v397
      %v487 = vpop.f32.mrb[0].mxu0
      %v488 = vadd.f32 %v310, %v487
      %v489 = vpop.f32.mrb[0].mxu0
      %v490 = vpop.f32.mrb[0].mxu0
      %v491 = vadd.f32 %v310, %v490
      %v492 = vpop.f32.mrb[0].mxu0
      %493 = vmatprep.mubr.bf16.mxu0 0
      %494 = vmatmul.mubr.bf16.gmra.mrb[0].mxu0 %v400
      %v495 = vpop.f32.mrb[0].mxu0
      %v496 = vadd.f32 %v310, %v495
      %v497 = vpop.f32.mrb[0].mxu0
      %v498 = vpop.f32.mrb[0].mxu0
      %v499 = vadd.f32 %v310, %v498
      %v500 = vpop.f32.mrb[0].mxu0
      %501 = vmatprep.mubr.bf16.mxu0 0
      %502 = vmatmul.mubr.bf16.gmra.mrb[0].mxu0 %v403
      %v503 = vpop.f32.mrb[0].mxu0
      %v504 = vadd.f32 %v310, %v503
      %v505 = vpop.f32.mrb[0].mxu0
      %v506 = vpop.f32.mrb[0].mxu0
      %v507 = vadd.f32 %v310, %v506
      %v508 = vpop.f32.mrb[0].mxu0
      %509 = vmatprep.mubr.bf16.mxu0 0
      %510 = vmatmul.mubr.bf16.gmra.mrb[0].mxu0 %v406
      %v511 = vpop.f32.mrb[0].mxu0
      %v512 = vadd.f32 %v310, %v511
      %v513 = vpop.f32.mrb[0].mxu0
      %v514 = vpop.f32.mrb[0].mxu0
      %v515 = vadd.f32 %v310, %v514
      %v516 = vpop.f32.mrb[0].mxu0
      %517 = vmatprep.mubr.bf16.mxu0 0
      %518 = vmatmul.mubr.bf16.gmra.mrb[0].mxu0 %v409
      %v519 = vpop.f32.mrb[0].mxu0
      %v520 = vadd.f32 %v310, %v519
      %v521 = vpop.f32.mrb[0].mxu0
      %v522 = vpop.f32.mrb[0].mxu0
      %v523 = vadd.f32 %v310, %v522
      %v524 = vpop.f32.mrb[0].mxu0
      %525 = vmatprep.mubr.bf16.mxu0 0
      %526 = vmatmul.mubr.bf16.gmra.mrb[0].mxu0 %v412
      %v527 = vpop.f32.mrb[0].mxu0
      %v528 = vadd.f32 %v310, %v527
      %v529 = vpop.f32.mrb[0].mxu0
      %v530 = vpop.f32.mrb[0].mxu0
      %v531 = vadd.f32 %v310, %v530
      %v532 = vpop.f32.mrb[0].mxu0
      %533 = vmatprep.mubr.bf16.mxu0 0
      %534 = vmatmul.mubr.bf16.gmra.mrb[0].mxu0 %v415
      %v535 = vpop.f32.mrb[0].mxu0
      %v536 = vadd.f32 %v310, %v535
      %v537 = vpop.f32.mrb[0].mxu0
      %v538 = vpop.f32.mrb[0].mxu0
      %v539 = vadd.f32 %v310, %v538
      %v540 = vpop.f32.mrb[0].mxu0
      %541 = vmatprep.mubr.bf16.mxu0 0
      %542 = vmatmul.mubr.bf16.gmra.mrb[0].mxu0 %v418
      %v543 = vpop.f32.mrb[0].mxu0
      %v544 = vadd.f32 %v310, %v543
      %v545 = vpop.f32.mrb[0].mxu0
      %v546 = vpop.f32.mrb[0].mxu0
      %v547 = vadd.f32 %v310, %v546
      %v548 = vpop.f32.mrb[0].mxu0
      %549 = vmatprep.mubr.bf16.mxu0 0
      %550 = vmatmul.mubr.bf16.gmra.mrb[0].mxu0 %v421
      %v551 = vpop.f32.mrb[0].mxu0
      %v552 = vadd.f32 %v310, %v551
      %v553 = vpop.f32.mrb[0].mxu0
      %v554 = vpop.f32.mrb[0].mxu0
      %v555 = vadd.f32 %v310, %v554
      %v556 = vpop.f32.mrb[0].mxu0
      %557 = vmatprep.mubr.bf16.mxu0 0
      %558 = vmatmul.mubr.bf16.gmra.mrb[0].mxu0 %v424
      %v559 = vpop.f32.mrb[0].mxu0
      %v560 = vadd.f32 %v310, %v559
      %v561 = vpop.f32.mrb[0].mxu0
      %v562 = vpop.f32.mrb[0].mxu0
      %v563 = vadd.f32 %v310, %v562
      %v564 = vpop.f32.mrb[0].mxu0
      %565 = vmatprep.mubr.bf16.mxu0 0
      %566 = vmatmul.mubr.bf16.gmra.mrb[0].mxu0 %v427
      %v567 = vpop.f32.mrb[0].mxu0
      %v568 = vadd.f32 %v310, %v567
      %v569 = vpop.f32.mrb[0].mxu0
      %v570 = vpop.f32.mrb[0].mxu0
      %v571 = vadd.f32 %v310, %v570
      %v572 = vpop.f32.mrb[0].mxu0
      %573 = vmatprep.mubr.bf16.mxu0 0
      %574 = vmatmul.mubr.bf16.gmra.mrb[0].mxu0 %v430
      %v575 = vpop.f32.mrb[0].mxu0
      %v576 = vadd.f32 %v310, %v575
      %v577 = vpop.f32.mrb[0].mxu0
      %v578 = vpop.f32.mrb[0].mxu0
      %v579 = vadd.f32 %v310, %v578
      %v580 = vpop.f32.mrb[0].mxu0
      %581 = vmatprep.mubr.bf16.mxu0 0
      %582 = vmatmul.mubr.bf16.gmra.mrb[0].mxu0 %v433
      %v583 = vpop.f32.mrb[0].mxu0
      %v584 = vadd.f32 %v310, %v583
      %v585 = vpop.f32.mrb[0].mxu0
      %v586 = vpop.f32.mrb[0].mxu0
      %v587 = vadd.f32 %v310, %v586
      %v588 = vpop.f32.mrb[0].mxu0
      %589 = vmatprep.mubr.bf16.mxu0 0
      %590 = vmatmul.mubr.bf16.gmra.mrb[0].mxu0 %v436
      %v591 = vpop.f32.mrb[0].mxu0
      %v592 = vadd.f32 %v310, %v591
      %v593 = vpop.f32.mrb[0].mxu0
      %v594 = vpop.f32.mrb[0].mxu0
      %v595 = vadd.f32 %v310, %v594
      %v596 = vpop.f32.mrb[0].mxu0
      %597 = vmatprep.mubr.bf16.mxu0 0
      %598 = vmatmul.mubr.bf16.gmra.mrb[0].mxu0 %v439
      %v599 = vpop.f32.mrb[0].mxu0
      %v600 = vadd.f32 %v310, %v599
      %v601 = vpop.f32.mrb[0].mxu0
      %v602 = vpop.f32.mrb[0].mxu0
      %v603 = vadd.f32 %v310, %v602
      %v604 = vpop.f32.mrb[0].mxu0
      %605 = vdwg.mxu0
      %v606 = vxor.u32 %v480, 2147483648
      %v607 = vxor.u32 %v483, 2147483648
      %v608 = vxor.u32 %v488, 2147483648
      %v609 = vxor.u32 %v491, 2147483648
      %v610 = vxor.u32 %v496, 2147483648
      %v611 = vxor.u32 %v499, 2147483648
      %v612 = vxor.u32 %v504, 2147483648
      %v613 = vxor.u32 %v507, 2147483648
      %v614 = vxor.u32 %v512, 2147483648
      %v615 = vxor.u32 %v515, 2147483648
      %v616 = vxor.u32 %v520, 2147483648
      %v617 = vxor.u32 %v523, 2147483648
      %v618 = vxor.u32 %v528, 2147483648
      %v619 = vxor.u32 %v531, 2147483648
      %v620 = vxor.u32 %v536, 2147483648
      %v621 = vxor.u32 %v539, 2147483648
      %v622 = vxor.u32 %v544, 2147483648
      %v623 = vxor.u32 %v547, 2147483648
      %v624 = vxor.u32 %v552, 2147483648
      %v625 = vxor.u32 %v555, 2147483648
      %v626 = vxor.u32 %v560, 2147483648
      %v627 = vxor.u32 %v563, 2147483648
      %v628 = vxor.u32 %v568, 2147483648
      %v629 = vxor.u32 %v571, 2147483648
      %v630 = vxor.u32 %v576, 2147483648
      %v631 = vxor.u32 %v579, 2147483648
      %v632 = vxor.u32 %v584, 2147483648
      %v633 = vxor.u32 %v587, 2147483648
      %v634 = vxor.u32 %v592, 2147483648
      %v635 = vxor.u32 %v595, 2147483648
      %v636 = vxor.u32 %v600, 2147483648
      %v637 = vxor.u32 %v603, 2147483648
      %v638 = vmul.f32 %v606, 1.442695
      %v639 = vpow.pop %v638
      %v640 = vmul.f32 %v607, 1.442695
      %v641 = vpow.pop %v640
      %v642 = vmul.f32 %v608, 1.442695
      %v643 = vpow.pop %v642
      %v644 = vmul.f32 %v609, 1.442695
      %v645 = vpow.pop %v644
      %v646 = vmul.f32 %v610, 1.442695
      %v647 = vpow.pop %v646
      %v648 = vmul.f32 %v611, 1.442695
      %v649 = vpow.pop %v648
      %v650 = vmul.f32 %v612, 1.442695
      %v651 = vpow.pop %v650
      %v652 = vmul.f32 %v613, 1.442695
      %v653 = vpow.pop %v652
      %v654 = vmul.f32 %v614, 1.442695
      %v655 = vpow.pop %v654
      %v656 = vmul.f32 %v615, 1.442695
      %v657 = vpow.pop %v656
      %v658 = vmul.f32 %v616, 1.442695
      %v659 = vpow.pop %v658
      %v660 = vmul.f32 %v617, 1.442695
      %v661 = vpow.pop %v660
      %v662 = vmul.f32 %v618, 1.442695
      %v663 = vpow.pop %v662
      %v664 = vmul.f32 %v619, 1.442695
      %v665 = vpow.pop %v664
      %v666 = vmul.f32 %v620, 1.442695
      %v667 = vpow.pop %v666
      %v668 = vmul.f32 %v621, 1.442695
      %v669 = vpow.pop %v668
      %v670 = vmul.f32 %v622, 1.442695
      %v671 = vpow.pop %v670
      %v672 = vmul.f32 %v623, 1.442695
      %v673 = vpow.pop %v672
      %v674 = vmul.f32 %v624, 1.442695
      %v675 = vpow.pop %v674
      %v676 = vmul.f32 %v625, 1.442695
      %v677 = vpow.pop %v676
      %v678 = vmul.f32 %v626, 1.442695
      %v679 = vpow.pop %v678
      %v680 = vmul.f32 %v627, 1.442695
      %v681 = vpow.pop %v680
      %v682 = vmul.f32 %v628, 1.442695
      %v683 = vpow.pop %v682
      %v684 = vmul.f32 %v629, 1.442695
      %v685 = vpow.pop %v684
      %v686 = vmul.f32 %v630, 1.442695
      %v687 = vpow.pop %v686
      %v688 = vmul.f32 %v631, 1.442695
      %v689 = vpow.pop %v688
      %v690 = vmul.f32 %v632, 1.442695
      %v691 = vpow.pop %v690
      %v692 = vmul.f32 %v633, 1.442695
      %v693 = vpow.pop %v692
      %v694 = vmul.f32 %v634, 1.442695
      %v695 = vpow.pop %v694
      %v696 = vmul.f32 %v635, 1.442695
      %v697 = vpow.pop %v696
      %v698 = vmul.f32 %v636, 1.442695
      %v699 = vpow.pop %v698
      %v700 = vmul.f32 %v637, 1.442695
      %v701 = vpow.pop %v700
      %v702 = vadd.f32 %v639, 1.0
      %v703 = vadd.f32 %v641, 1.0
      %v704 = vadd.f32 %v643, 1.0
      %v705 = vadd.f32 %v645, 1.0
      %v706 = vadd.f32 %v647, 1.0
      %v707 = vadd.f32 %v649, 1.0
      %v708 = vadd.f32 %v651, 1.0
      %v709 = vadd.f32 %v653, 1.0
      %v710 = vadd.f32 %v655, 1.0
      %v711 = vadd.f32 %v657, 1.0
      %v712 = vadd.f32 %v659, 1.0
      %v713 = vadd.f32 %v661, 1.0
      %v714 = vadd.f32 %v663, 1.0
      %v715 = vadd.f32 %v665, 1.0
      %v716 = vadd.f32 %v667, 1.0
      %v717 = vadd.f32 %v669, 1.0
      %v718 = vadd.f32 %v671, 1.0
      %v719 = vadd.f32 %v673, 1.0
      %v720 = vadd.f32 %v675, 1.0
      %v721 = vadd.f32 %v677, 1.0
      %v722 = vadd.f32 %v679, 1.0
      %v723 = vadd.f32 %v681, 1.0
      %v724 = vadd.f32 %v683, 1.0
      %v725 = vadd.f32 %v685, 1.0
      %v726 = vadd.f32 %v687, 1.0
      %v727 = vadd.f32 %v689, 1.0
      %v728 = vadd.f32 %v691, 1.0
      %v729 = vadd.f32 %v693, 1.0
      %v730 = vadd.f32 %v695, 1.0
      %v731 = vadd.f32 %v697, 1.0
      %v732 = vadd.f32 %v699, 1.0
      %v733 = vadd.f32 %v701, 1.0
      %v734 = vrcp.pop %v702
      %v735 = vmul.f32 1.0, %v734
      %v736 = vrcp.pop %v703
      %v737 = vmul.f32 1.0, %v736
      %v738 = vrcp.pop %v704
      %v739 = vmul.f32 1.0, %v738
      %v740 = vrcp.pop %v705
      %v741 = vmul.f32 1.0, %v740
      %v742 = vrcp.pop %v706
      %v743 = vmul.f32 1.0, %v742
      %v744 = vrcp.pop %v707
      %v745 = vmul.f32 1.0, %v744
      %v746 = vrcp.pop %v708
      %v747 = vmul.f32 1.0, %v746
      %v748 = vrcp.pop %v709
      %v749 = vmul.f32 1.0, %v748
      %v750 = vrcp.pop %v710
      %v751 = vmul.f32 1.0, %v750
      %v752 = vrcp.pop %v711
      %v753 = vmul.f32 1.0, %v752
      %v754 = vrcp.pop %v712
      %v755 = vmul.f32 1.0, %v754
      %v756 = vrcp.pop %v713
      %v757 = vmul.f32 1.0, %v756
      %v758 = vrcp.pop %v714
      %v759 = vmul.f32 1.0, %v758
      %v760 = vrcp.pop %v715
      %v761 = vmul.f32 1.0, %v760
      %v762 = vrcp.pop %v716
      %v763 = vmul.f32 1.0, %v762
      %v764 = vrcp.pop %v717
      %v765 = vmul.f32 1.0, %v764
      %v766 = vrcp.pop %v718
      %v767 = vmul.f32 1.0, %v766
      %v768 = vrcp.pop %v719
      %v769 = vmul.f32 1.0, %v768
      %v770 = vrcp.pop %v720
      %v771 = vmul.f32 1.0, %v770
      %v772 = vrcp.pop %v721
      %v773 = vmul.f32 1.0, %v772
      %v774 = vrcp.pop %v722
      %v775 = vmul.f32 1.0, %v774
      %v776 = vrcp.pop %v723
      %v777 = vmul.f32 1.0, %v776
      %v778 = vrcp.pop %v724
      %v779 = vmul.f32 1.0, %v778
      %v780 = vrcp.pop %v725
      %v781 = vmul.f32 1.0, %v780
      %v782 = vrcp.pop %v726
      %v783 = vmul.f32 1.0, %v782
      %v784 = vrcp.pop %v727
      %v785 = vmul.f32 1.0, %v784
      %v786 = vrcp.pop %v728
      %v787 = vmul.f32 1.0, %v786
      %v788 = vrcp.pop %v729
      %v789 = vmul.f32 1.0, %v788
      %v790 = vrcp.pop %v730
      %v791 = vmul.f32 1.0, %v790
      %v792 = vrcp.pop %v731
      %v793 = vmul.f32 1.0, %v792
      %v794 = vrcp.pop %v732
      %v795 = vmul.f32 1.0, %v794
      %v796 = vrcp.pop %v733
      %v797 = vmul.f32 1.0, %v796
      %v798 = vmul.f32 %v480, %v735
      %v799 = vmul.f32 %v483, %v737
      %v800 = vmul.f32 %v488, %v739
      %v801 = vmul.f32 %v491, %v741
      %v802 = vmul.f32 %v496, %v743
      %v803 = vmul.f32 %v499, %v745
      %v804 = vmul.f32 %v504, %v747
      %v805 = vmul.f32 %v507, %v749
      %v806 = vmul.f32 %v512, %v751
      %v807 = vmul.f32 %v515, %v753
      %v808 = vmul.f32 %v520, %v755
      %v809 = vmul.f32 %v523, %v757
      %v810 = vmul.f32 %v528, %v759
      %v811 = vmul.f32 %v531, %v761
      %v812 = vmul.f32 %v536, %v763
      %v813 = vmul.f32 %v539, %v765
      %v814 = vmul.f32 %v544, %v767
      %v815 = vmul.f32 %v547, %v769
      %v816 = vmul.f32 %v552, %v771
      %v817 = vmul.f32 %v555, %v773
      %v818 = vmul.f32 %v560, %v775
      %v819 = vmul.f32 %v563, %v777
      %v820 = vmul.f32 %v568, %v779
      %v821 = vmul.f32 %v571, %v781
      %v822 = vmul.f32 %v576, %v783
      %v823 = vmul.f32 %v579, %v785
      %v824 = vmul.f32 %v584, %v787
      %v825 = vmul.f32 %v587, %v789
      %v826 = vmul.f32 %v592, %v791
      %v827 = vmul.f32 %v595, %v793
      %v828 = vmul.f32 %v600, %v795
      %v829 = vmul.f32 %v603, %v797
      %v830 = vpack.c.bf16 %v799, %v798
      %v831 = vpack.c.bf16 %v801, %v800
      %v832 = vpack.c.bf16 %v803, %v802
      %v833 = vpack.c.bf16 %v805, %v804
      %v834 = vpack.c.bf16 %v807, %v806
      %v835 = vpack.c.bf16 %v809, %v808
      %v836 = vpack.c.bf16 %v811, %v810
      %v837 = vpack.c.bf16 %v813, %v812
      %v838 = vpack.c.bf16 %v815, %v814
      %v839 = vpack.c.bf16 %v817, %v816
      %v840 = vpack.c.bf16 %v819, %v818
      %v841 = vpack.c.bf16 %v821, %v820
      %v842 = vpack.c.bf16 %v823, %v822
      %v843 = vpack.c.bf16 %v825, %v824
      %v844 = vpack.c.bf16 %v827, %v826
      %v845 = vpack.c.bf16 %v829, %v828
      %v846 = vld [vmem:[%s3] sm:$0x3]
      %v848 = vsel %vm227, %v830, 0
      %v851 = vsel %vm227, %v831, 0
      %v854 = vsel %vm227, %v832, 0
      %v857 = vsel %vm227, %v833, 0
      %v860 = vsel %vm227, %v834, 0
      %v863 = vsel %vm227, %v835, 0
      %v866 = vsel %vm227, %v836, 0
      %v869 = vsel %vm227, %v837, 0
      %v872 = vsel %vm227, %v838, 0
      %v875 = vsel %vm227, %v839, 0
      %v878 = vsel %vm227, %v840, 0
      %v881 = vsel %vm227, %v841, 0
      %v884 = vsel %vm227, %v842, 0
      %v887 = vsel %vm227, %v843, 0
      %v890 = vsel %vm227, %v844, 0
      %v893 = vsel %vm227, %v845, 0
      %vm895 = vcmask 1041408
      %v897 = vsel %vm895, %v846, 0
      %899 = vmatprep.subr.bf16.mxu0 0
      %900 = vmatpush1.bf16.msra.mxu0 %v897
      %901 = vmatprep.subr.bf16.mxu0 0
      %902 = vmatpush1.bf16.msra.mxu0 0
      %903 = vmatprep.subr.bf16.mxu0 0
      %904 = vmatpush1.bf16.msra.mxu0 0
      %905 = vmatprep.subr.bf16.mxu0 0
      %906 = vmatpush1.bf16.msra.mxu0 0
      %907 = vmatprep.subr.bf16.mxu0 0
      %908 = vmatpush1.bf16.msra.mxu0 0
      %909 = vmatprep.subr.bf16.mxu0 0
      %910 = vmatpush1.bf16.msra.mxu0 0
      %911 = vmatprep.subr.bf16.mxu0 0
      %912 = vmatpush1.bf16.msra.mxu0 0
      %913 = vmatprep.subr.bf16.mxu0 0
      %914 = vmatpush1.bf16.msra.mxu0 0
      %915 = vmatprep.subr.bf16.mxu0 0
      %916 = vmatpush1.bf16.msra.mxu0 0
      %917 = vmatprep.subr.bf16.mxu0 0
      %918 = vmatpush1.bf16.msra.mxu0 0
      %919 = vmatprep.subr.bf16.mxu0 0
      %920 = vmatpush1.bf16.msra.mxu0 0
      %921 = vmatprep.subr.bf16.mxu0 0
      %922 = vmatpush1.bf16.msra.mxu0 0
      %923 = vmatprep.subr.bf16.mxu0 0
      %924 = vmatpush1.bf16.msra.mxu0 0
      %925 = vmatprep.subr.bf16.mxu0 0
      %926 = vmatpush1.bf16.msra.mxu0 0
      %927 = vmatprep.subr.bf16.mxu0 0
      %928 = vmatpush1.bf16.msra.mxu0 0
      %929 = vmatprep.subr.bf16.mxu0 0
      %930 = vmatpush1.bf16.msra.mxu0 0
      %931 = vmatprep.mubr.bf16.mxu0 0
      %932 = vmatmul.mubr.bf16.gmra.mrb[0].mxu0 %v848
      %v933 = vpop.f32.mrb[0].mxu0
      %v934 = vadd.f32 0.0, %v933
      %v935 = vpop.f32.mrb[0].mxu0
      %v936 = vpop.f32.mrb[0].mxu0
      %v937 = vadd.f32 0.0, %v936
      %v938 = vpop.f32.mrb[0].mxu0
      %939 = vmatprep.mubr.bf16.mxu0 0
      %940 = vmatmul.mubr.bf16.gmra.mrb[0].mxu0 %v851
      %v941 = vpop.f32.mrb[0].mxu0
      %v942 = vadd.f32 0.0, %v941
      %v943 = vpop.f32.mrb[0].mxu0
      %v944 = vpop.f32.mrb[0].mxu0
      %v945 = vadd.f32 0.0, %v944
      %v946 = vpop.f32.mrb[0].mxu0
      %947 = vmatprep.mubr.bf16.mxu0 0
      %948 = vmatmul.mubr.bf16.gmra.mrb[0].mxu0 %v854
      %v949 = vpop.f32.mrb[0].mxu0
      %v950 = vadd.f32 0.0, %v949
      %v951 = vpop.f32.mrb[0].mxu0
      %v952 = vpop.f32.mrb[0].mxu0
      %v953 = vadd.f32 0.0, %v952
      %v954 = vpop.f32.mrb[0].mxu0
      %955 = vmatprep.mubr.bf16.mxu0 0
      %956 = vmatmul.mubr.bf16.gmra.mrb[0].mxu0 %v857
      %v957 = vpop.f32.mrb[0].mxu0
      %v958 = vadd.f32 0.0, %v957
      %v959 = vpop.f32.mrb[0].mxu0
      %v960 = vpop.f32.mrb[0].mxu0
      %v961 = vadd.f32 0.0, %v960
      %v962 = vpop.f32.mrb[0].mxu0
      %963 = vmatprep.mubr.bf16.mxu0 0
      %964 = vmatmul.mubr.bf16.gmra.mrb[0].mxu0 %v860
      %v965 = vpop.f32.mrb[0].mxu0
      %v966 = vadd.f32 0.0, %v965
      %v967 = vpop.f32.mrb[0].mxu0
      %v968 = vpop.f32.mrb[0].mxu0
      %v969 = vadd.f32 0.0, %v968
      %v970 = vpop.f32.mrb[0].mxu0
      %971 = vmatprep.mubr.bf16.mxu0 0
      %972 = vmatmul.mubr.bf16.gmra.mrb[0].mxu0 %v863
      %v973 = vpop.f32.mrb[0].mxu0
      %v974 = vadd.f32 0.0, %v973
      %v975 = vpop.f32.mrb[0].mxu0
      %v976 = vpop.f32.mrb[0].mxu0
      %v977 = vadd.f32 0.0, %v976
      %v978 = vpop.f32.mrb[0].mxu0
      %979 = vmatprep.mubr.bf16.mxu0 0
      %980 = vmatmul.mubr.bf16.gmra.mrb[0].mxu0 %v866
      %v981 = vpop.f32.mrb[0].mxu0
      %v982 = vadd.f32 0.0, %v981
      %v983 = vpop.f32.mrb[0].mxu0
      %v984 = vpop.f32.mrb[0].mxu0
      %v985 = vadd.f32 0.0, %v984
      %v986 = vpop.f32.mrb[0].mxu0
      %987 = vmatprep.mubr.bf16.mxu0 0
      %988 = vmatmul.mubr.bf16.gmra.mrb[0].mxu0 %v869
      %v989 = vpop.f32.mrb[0].mxu0
      %v990 = vadd.f32 0.0, %v989
      %v991 = vpop.f32.mrb[0].mxu0
      %v992 = vpop.f32.mrb[0].mxu0
      %v993 = vadd.f32 0.0, %v992
      %v994 = vpop.f32.mrb[0].mxu0
      %995 = vmatprep.mubr.bf16.mxu0 0
      %996 = vmatmul.mubr.bf16.gmra.mrb[0].mxu0 %v872
      %v997 = vpop.f32.mrb[0].mxu0
      %v998 = vadd.f32 0.0, %v997
      %v999 = vpop.f32.mrb[0].mxu0
      %v1000 = vpop.f32.mrb[0].mxu0
      %v1001 = vadd.f32 0.0, %v1000
      %v1002 = vpop.f32.mrb[0].mxu0
      %1003 = vmatprep.mubr.bf16.mxu0 0
      %1004 = vmatmul.mubr.bf16.gmra.mrb[0].mxu0 %v875
      %v1005 = vpop.f32.mrb[0].mxu0
      %v1006 = vadd.f32 0.0, %v1005
      %v1007 = vpop.f32.mrb[0].mxu0
      %v1008 = vpop.f32.mrb[0].mxu0
      %v1009 = vadd.f32 0.0, %v1008
      %v1010 = vpop.f32.mrb[0].mxu0
      %1011 = vmatprep.mubr.bf16.mxu0 0
      %1012 = vmatmul.mubr.bf16.gmra.mrb[0].mxu0 %v878
      %v1013 = vpop.f32.mrb[0].mxu0
      %v1014 = vadd.f32 0.0, %v1013
      %v1015 = vpop.f32.mrb[0].mxu0
      %v1016 = vpop.f32.mrb[0].mxu0
      %v1017 = vadd.f32 0.0, %v1016
      %v1018 = vpop.f32.mrb[0].mxu0
      %1019 = vmatprep.mubr.bf16.mxu0 0
      %1020 = vmatmul.mubr.bf16.gmra.mrb[0].mxu0 %v881
      %v1021 = vpop.f32.mrb[0].mxu0
      %v1022 = vadd.f32 0.0, %v1021
      %v1023 = vpop.f32.mrb[0].mxu0
      %v1024 = vpop.f32.mrb[0].mxu0
      %v1025 = vadd.f32 0.0, %v1024
      %v1026 = vpop.f32.mrb[0].mxu0
      %1027 = vmatprep.mubr.bf16.mxu0 0
      %1028 = vmatmul.mubr.bf16.gmra.mrb[0].mxu0 %v884
      %v1029 = vpop.f32.mrb[0].mxu0
      %v1030 = vadd.f32 0.0, %v1029
      %v1031 = vpop.f32.mrb[0].mxu0
      %v1032 = vpop.f32.mrb[0].mxu0
      %v1033 = vadd.f32 0.0, %v1032
      %v1034 = vpop.f32.mrb[0].mxu0
      %1035 = vmatprep.mubr.bf16.mxu0 0
      %1036 = vmatmul.mubr.bf16.gmra.mrb[0].mxu0 %v887
      %v1037 = vpop.f32.mrb[0].mxu0
      %v1038 = vadd.f32 0.0, %v1037
      %v1039 = vpop.f32.mrb[0].mxu0
      %v1040 = vpop.f32.mrb[0].mxu0
      %v1041 = vadd.f32 0.0, %v1040
      %v1042 = vpop.f32.mrb[0].mxu0
      %1043 = vmatprep.mubr.bf16.mxu0 0
      %1044 = vmatmul.mubr.bf16.gmra.mrb[0].mxu0 %v890
      %v1045 = vpop.f32.mrb[0].mxu0
      %v1046 = vadd.f32 0.0, %v1045
      %v1047 = vpop.f32.mrb[0].mxu0
      %v1048 = vpop.f32.mrb[0].mxu0
      %v1049 = vadd.f32 0.0, %v1048
      %v1050 = vpop.f32.mrb[0].mxu0
      %1051 = vmatprep.mubr.bf16.mxu0 0
      %1052 = vmatmul.mubr.bf16.gmra.mrb[0].mxu0 %v893
      %v1053 = vpop.f32.mrb[0].mxu0
      %v1054 = vadd.f32 0.0, %v1053
      %v1055 = vpop.f32.mrb[0].mxu0
      %v1056 = vpop.f32.mrb[0].mxu0
      %v1057 = vadd.f32 0.0, %v1056
      %v1058 = vpop.f32.mrb[0].mxu0
      %1059 = vdwg.mxu0
      %1060 = vst.msk [vmem:[#allocation3] sm:$0xff] %vm392, %v934
      %1061 = vst.msk [vmem:[#allocation3 + $0x8] sm:$0xff] %vm392, %v937
      %1062 = vst.msk [vmem:[#allocation3 + $0x10] sm:$0xff] %vm392, %v942
      %1063 = vst.msk [vmem:[#allocation3 + $0x18] sm:$0xff] %vm392, %v945
      %1064 = vst.msk [vmem:[#allocation3 + $0x20] sm:$0xff] %vm392, %v950
      %1065 = vst.msk [vmem:[#allocation3 + $0x28] sm:$0xff] %vm392, %v953
      %1066 = vst.msk [vmem:[#allocation3 + $0x30] sm:$0xff] %vm392, %v958
      %1067 = vst.msk [vmem:[#allocation3 + $0x38] sm:$0xff] %vm392, %v961
      %1068 = vst.msk [vmem:[#allocation3 + $0x40] sm:$0xff] %vm392, %v966
      %1069 = vst.msk [vmem:[#allocation3 + $0x48] sm:$0xff] %vm392, %v969
      %1070 = vst.msk [vmem:[#allocation3 + $0x50] sm:$0xff] %vm392, %v974
      %1071 = vst.msk [vmem:[#allocation3 + $0x58] sm:$0xff] %vm392, %v977
      %1072 = vst.msk [vmem:[#allocation3 + $0x60] sm:$0xff] %vm392, %v982
      %1073 = vst.msk [vmem:[#allocation3 + $0x68] sm:$0xff] %vm392, %v985
      %1074 = vst.msk [vmem:[#allocation3 + $0x70] sm:$0xff] %vm392, %v990
      %1075 = vst.msk [vmem:[#allocation3 + $0x78] sm:$0xff] %vm392, %v993
      %1076 = vst.msk [vmem:[#allocation3 + $0x80] sm:$0xff] %vm392, %v998
      %1077 = vst.msk [vmem:[#allocation3 + $0x88] sm:$0xff] %vm392, %v1001
      %1078 = vst.msk [vmem:[#allocation3 + $0x90] sm:$0xff] %vm392, %v1006
      %1079 = vst.msk [vmem:[#allocation3 + $0x98] sm:$0xff] %vm392, %v1009
      %1080 = vst.msk [vmem:[#allocation3 + $0xa0] sm:$0xff] %vm392, %v1014
      %1081 = vst.msk [vmem:[#allocation3 + $0xa8] sm:$0xff] %vm392, %v1017
      %1082 = vst.msk [vmem:[#allocation3 + $0xb0] sm:$0xff] %vm392, %v1022
      %1083 = vst.msk [vmem:[#allocation3 + $0xb8] sm:$0xff] %vm392, %v1025
      %1084 = vst.msk [vmem:[#allocation3 + $0xc0] sm:$0xff] %vm392, %v1030
      %1085 = vst.msk [vmem:[#allocation3 + $0xc8] sm:$0xff] %vm392, %v1033
      %1086 = vst.msk [vmem:[#allocation3 + $0xd0] sm:$0xff] %vm392, %v1038
      %1087 = vst.msk [vmem:[#allocation3 + $0xd8] sm:$0xff] %vm392, %v1041
      %1088 = vst.msk [vmem:[#allocation3 + $0xe0] sm:$0xff] %vm392, %v1046
      %1089 = vst.msk [vmem:[#allocation3 + $0xe8] sm:$0xff] %vm392, %v1049
      %1090 = vst.msk [vmem:[#allocation3 + $0xf0] sm:$0xff] %vm392, %v1054
      %1091 = vst.msk [vmem:[#allocation3 + $0xf8] sm:$0xff] %vm392, %v1057
      %v1108 = vrot.slane %v830, 4
      %v1109 = vrot.slane %v831, 4
      %v1110 = vrot.slane %v832, 4
      %v1111 = vrot.slane %v833, 4
      %v1112 = vrot.slane %v834, 4
      %v1113 = vrot.slane %v835, 4
      %v1114 = vrot.slane %v836, 4
      %v1115 = vrot.slane %v837, 4
      %v1116 = vrot.slane %v838, 4
      %v1117 = vrot.slane %v839, 4
      %v1118 = vrot.slane %v840, 4
      %v1119 = vrot.slane %v841, 4
      %v1120 = vrot.slane %v842, 4
      %v1121 = vrot.slane %v843, 4
      %v1122 = vrot.slane %v844, 4
      %v1123 = vrot.slane %v845, 4
      %1140 = vst.msk [vmem:[%s237] sm:$0xf0] %vm255, %v1108
      %1141 = vst.msk [vmem:[%s237 + $0x8] sm:$0xf] %vm238, %v1108
      %1142 = vst.msk [vmem:[%s237 + $0x10] sm:$0xf0] %vm255, %v1109
      %1143 = vst.msk [vmem:[%s237 + $0x18] sm:$0xf] %vm238, %v1109
      %1144 = vst.msk [vmem:[%s237 + $0x20] sm:$0xf0] %vm255, %v1110
      %1145 = vst.msk [vmem:[%s237 + $0x28] sm:$0xf] %vm238, %v1110
      %1146 = vst.msk [vmem:[%s237 + $0x30] sm:$0xf0] %vm255, %v1111
      %1147 = vst.msk [vmem:[%s237 + $0x38] sm:$0xf] %vm238, %v1111
      %1148 = vst.msk [vmem:[%s237 + $0x40] sm:$0xf0] %vm255, %v1112
      %1149 = vst.msk [vmem:[%s237 + $0x48] sm:$0xf] %vm238, %v1112
      %1150 = vst.msk [vmem:[%s237 + $0x50] sm:$0xf0] %vm255, %v1113
      %1151 = vst.msk [vmem:[%s237 + $0x58] sm:$0xf] %vm238, %v1113
      %1152 = vst.msk [vmem:[%s237 + $0x60] sm:$0xf0] %vm255, %v1114
      %1153 = vst.msk [vmem:[%s237 + $0x68] sm:$0xf] %vm238, %v1114
      %1154 = vst.msk [vmem:[%s237 + $0x70] sm:$0xf0] %vm255, %v1115
      %1155 = vst.msk [vmem:[%s237 + $0x78] sm:$0xf] %vm238, %v1115
      %1156 = vst.msk [vmem:[%s237 + $0x80] sm:$0xf0] %vm255, %v1116
      %1157 = vst.msk [vmem:[%s237 + $0x88] sm:$0xf] %vm238, %v1116
      %1158 = vst.msk [vmem:[%s237 + $0x90] sm:$0xf0] %vm255, %v1117
      %1159 = vst.msk [vmem:[%s237 + $0x98] sm:$0xf] %vm238, %v1117
      %1160 = vst.msk [vmem:[%s237 + $0xa0] sm:$0xf0] %vm255, %v1118
      %1161 = vst.msk [vmem:[%s237 + $0xa8] sm:$0xf] %vm238, %v1118
      %1162 = vst.msk [vmem:[%s237 + $0xb0] sm:$0xf0] %vm255, %v1119
      %1163 = vst.msk [vmem:[%s237 + $0xb8] sm:$0xf] %vm238, %v1119
      %1164 = vst.msk [vmem:[%s237 + $0xc0] sm:$0xf0] %vm255, %v1120
      %1165 = vst.msk [vmem:[%s237 + $0xc8] sm:$0xf] %vm238, %v1120
      %1166 = vst.msk [vmem:[%s237 + $0xd0] sm:$0xf0] %vm255, %v1121
      %1167 = vst.msk [vmem:[%s237 + $0xd8] sm:$0xf] %vm238, %v1121
      %1168 = vst.msk [vmem:[%s237 + $0xe0] sm:$0xf0] %vm255, %v1122
      %1169 = vst.msk [vmem:[%s237 + $0xe8] sm:$0xf] %vm238, %v1122
      %1170 = vst.msk [vmem:[%s237 + $0xf0] sm:$0xf0] %vm255, %v1123
      %1171 = vst.msk [vmem:[%s237 + $0xf8] sm:$0xf] %vm238, %v1123
      %v1172 = vld [vmem:[#allocation2] sm:$0xf8]
      %v1173 = vld [vmem:[#allocation2 + $0x8] sm:$0x1f]
      %v1174 = vld [vmem:[#allocation2 + $0x10] sm:$0xf8]
      %v1175 = vld [vmem:[#allocation2 + $0x18] sm:$0x1f]
      %v1176 = vld [vmem:[#allocation2 + $0x20] sm:$0xf8]
      %v1177 = vld [vmem:[#allocation2 + $0x28] sm:$0x1f]
      %v1178 = vld [vmem:[#allocation2 + $0x30] sm:$0xf8]
      %v1179 = vld [vmem:[#allocation2 + $0x38] sm:$0x1f]
      %v1180 = vld [vmem:[#allocation2 + $0x40] sm:$0xf8]
      %v1181 = vld [vmem:[#allocation2 + $0x48] sm:$0x1f]
      %v1182 = vld [vmem:[#allocation2 + $0x50] sm:$0xf8]
      %v1183 = vld [vmem:[#allocation2 + $0x58] sm:$0x1f]
      %v1184 = vld [vmem:[#allocation2 + $0x60] sm:$0xf8]
      %v1185 = vld [vmem:[#allocation2 + $0x68] sm:$0x1f]
      %v1186 = vld [vmem:[#allocation2 + $0x70] sm:$0xf8]
      %v1187 = vld [vmem:[#allocation2 + $0x78] sm:$0x1f]
      %v1188 = vld [vmem:[#allocation2 + $0x80] sm:$0xf8]
      %v1189 = vld [vmem:[#allocation2 + $0x88] sm:$0x1f]
      %v1190 = vld [vmem:[#allocation2 + $0x90] sm:$0xf8]
      %v1191 = vld [vmem:[#allocation2 + $0x98] sm:$0x1f]
      %v1192 = vld [vmem:[#allocation2 + $0xa0] sm:$0xf8]
      %v1193 = vld [vmem:[#allocation2 + $0xa8] sm:$0x1f]
      %v1194 = vld [vmem:[#allocation2 + $0xb0] sm:$0xf8]
      %v1195 = vld [vmem:[#allocation2 + $0xb8] sm:$0x1f]
      %v1196 = vld [vmem:[#allocation2 + $0xc0] sm:$0xf8]
      %v1197 = vld [vmem:[#allocation2 + $0xc8] sm:$0x1f]
      %v1198 = vld [vmem:[#allocation2 + $0xd0] sm:$0xf8]
      %v1199 = vld [vmem:[#allocation2 + $0xd8] sm:$0x1f]
      %v1200 = vld [vmem:[#allocation2 + $0xe0] sm:$0xf8]
      %v1201 = vld [vmem:[#allocation2 + $0xe8] sm:$0x1f]
      %v1202 = vld [vmem:[#allocation2 + $0xf0] sm:$0xf8]
      %v1203 = vld [vmem:[#allocation2 + $0xf8] sm:$0x1f]
      %v1204 = vld [vmem:[#allocation2 + $0x100] sm:$0xf8]
      %v1205 = vld [vmem:[#allocation2 + $0x108] sm:$0x1f]
      %v1206 = vld [vmem:[#allocation2 + $0x110] sm:$0xf8]
      %v1207 = vld [vmem:[#allocation2 + $0x118] sm:$0x1f]
      %v1208 = vld [vmem:[#allocation2 + $0x120] sm:$0xf8]
      %v1209 = vld [vmem:[#allocation2 + $0x128] sm:$0x1f]
      %v1210 = vld [vmem:[#allocation2 + $0x130] sm:$0xf8]
      %v1211 = vld [vmem:[#allocation2 + $0x138] sm:$0x1f]
      %v1212 = vmax.bf16 %v1172, %v1174
      %v1213 = vmax.bf16 %v1173, %v1175
      %v1214 = vmax.bf16 %v1174, %v1176
      %v1215 = vmax.bf16 %v1175, %v1177
      %v1216 = vmax.bf16 %v1176, %v1178
      %v1217 = vmax.bf16 %v1177, %v1179
      %v1218 = vmax.bf16 %v1178, %v1180
      %v1219 = vmax.bf16 %v1179, %v1181
      %v1220 = vmax.bf16 %v1180, %v1182
      %v1221 = vmax.bf16 %v1181, %v1183
      %v1222 = vmax.bf16 %v1182, %v1184
      %v1223 = vmax.bf16 %v1183, %v1185
      %v1224 = vmax.bf16 %v1184, %v1186
      %v1225 = vmax.bf16 %v1185, %v1187
      %v1226 = vmax.bf16 %v1186, %v1188
      %v1227 = vmax.bf16 %v1187, %v1189
      %v1228 = vmax.bf16 %v1188, %v1190
      %v1229 = vmax.bf16 %v1189, %v1191
      %v1230 = vmax.bf16 %v1190, %v1192
      %v1231 = vmax.bf16 %v1191, %v1193
      %v1232 = vmax.bf16 %v1192, %v1194
      %v1233 = vmax.bf16 %v1193, %v1195
      %v1234 = vmax.bf16 %v1194, %v1196
      %v1235 = vmax.bf16 %v1195, %v1197
      %v1236 = vmax.bf16 %v1196, %v1198
      %v1237 = vmax.bf16 %v1197, %v1199
      %v1238 = vmax.bf16 %v1198, %v1200
      %v1239 = vmax.bf16 %v1199, %v1201
      %v1240 = vmax.bf16 %v1200, %v1202
      %v1241 = vmax.bf16 %v1201, %v1203
      %v1242 = vmax.bf16 %v1202, %v1204
      %v1243 = vmax.bf16 %v1203, %v1205
      %v1244 = vmax.bf16 %v1204, %v1206
      %v1245 = vmax.bf16 %v1205, %v1207
      %v1246 = vmax.bf16 %v1206, %v1208
      %v1247 = vmax.bf16 %v1207, %v1209
      %v1248 = vmax.bf16 %v1208, %v1210
      %v1249 = vmax.bf16 %v1209, %v1211
      %v1250 = vmax.bf16 %v1212, %v1216
      %v1251 = vmax.bf16 %v1213, %v1217
      %v1252 = vmax.bf16 %v1214, %v1218
      %v1253 = vmax.bf16 %v1215, %v1219
      %v1254 = vmax.bf16 %v1216, %v1220
      %v1255 = vmax.bf16 %v1217, %v1221
      %v1256 = vmax.bf16 %v1218, %v1222
      %v1257 = vmax.bf16 %v1219, %v1223
      %v1258 = vmax.bf16 %v1220, %v1224
      %v1259 = vmax.bf16 %v1221, %v1225
      %v1260 = vmax.bf16 %v1222, %v1226
      %v1261 = vmax.bf16 %v1223, %v1227
      %v1262 = vmax.bf16 %v1224, %v1228
      %v1263 = vmax.bf16 %v1225, %v1229
      %v1264 = vmax.bf16 %v1226, %v1230
      %v1265 = vmax.bf16 %v1227, %v1231
      %v1266 = vmax.bf16 %v1228, %v1232
      %v1267 = vmax.bf16 %v1229, %v1233
      %v1268 = vmax.bf16 %v1230, %v1234
      %v1269 = vmax.bf16 %v1231, %v1235
      %v1270 = vmax.bf16 %v1232, %v1236
      %v1271 = vmax.bf16 %v1233, %v1237
      %v1272 = vmax.bf16 %v1234, %v1238
      %v1273 = vmax.bf16 %v1235, %v1239
      %v1274 = vmax.bf16 %v1236, %v1240
      %v1275 = vmax.bf16 %v1237, %v1241
      %v1276 = vmax.bf16 %v1238, %v1242
      %v1277 = vmax.bf16 %v1239, %v1243
      %v1278 = vmax.bf16 %v1240, %v1244
      %v1279 = vmax.bf16 %v1241, %v1245
      %v1280 = vmax.bf16 %v1242, %v1246
      %v1281 = vmax.bf16 %v1243, %v1247
      %v1282 = vmax.bf16 %v1244, %v1248
      %v1283 = vmax.bf16 %v1245, %v1249
      %v1284 = vmax.bf16 %v1250, %v1252
      %v1285 = vmax.bf16 %v1251, %v1253
      %v1286 = vmax.bf16 %v1252, %v1254
      %v1287 = vmax.bf16 %v1253, %v1255
      %v1288 = vmax.bf16 %v1254, %v1256
      %v1289 = vmax.bf16 %v1255, %v1257
      %v1290 = vmax.bf16 %v1256, %v1258
      %v1291 = vmax.bf16 %v1257, %v1259
      %v1292 = vmax.bf16 %v1258, %v1260
      %v1293 = vmax.bf16 %v1259, %v1261
      %v1294 = vmax.bf16 %v1260, %v1262
      %v1295 = vmax.bf16 %v1261, %v1263
      %v1296 = vmax.bf16 %v1262, %v1264
      %v1297 = vmax.bf16 %v1263, %v1265
      %v1298 = vmax.bf16 %v1264, %v1266
      %v1299 = vmax.bf16 %v1265, %v1267
      %v1300 = vmax.bf16 %v1266, %v1268
      %v1301 = vmax.bf16 %v1267, %v1269
      %v1302 = vmax.bf16 %v1268, %v1270
      %v1303 = vmax.bf16 %v1269, %v1271
      %v1304 = vmax.bf16 %v1270, %v1272
      %v1305 = vmax.bf16 %v1271, %v1273
      %v1306 = vmax.bf16 %v1272, %v1274
      %v1307 = vmax.bf16 %v1273, %v1275
      %v1308 = vmax.bf16 %v1274, %v1276
      %v1309 = vmax.bf16 %v1275, %v1277
      %v1310 = vmax.bf16 %v1276, %v1278
      %v1311 = vmax.bf16 %v1277, %v1279
      %v1312 = vmax.bf16 %v1278, %v1280
      %v1313 = vmax.bf16 %v1279, %v1281
      %v1314 = vmax.bf16 %v1280, %v1282
      %v1315 = vmax.bf16 %v1281, %v1283
      %vm1316 = vsmask.f32 7424
      %v1318 = vshrl.u32 %v1284, 16
      %v1320 = vshll.u32 %v1284, 16
      %v1322 = vrot.slane %v1320, 1
      %v1323 = vor.u32 %v1318, %v1322
      %v1325 = vshll.u32 %v1285, 16
      %v1327 = vrot.slane %v1325, 1
      %v1328 = vsel %vm1316, %v1323, %v1327
      %v1329 = vshrl.u32 %v1285, 16
      %v1331 = vor.u32 %v1329, %v1327
      %v1333 = vshrl.u32 %v1286, 16
      %v1335 = vshll.u32 %v1286, 16
      %v1337 = vrot.slane %v1335, 1
      %v1338 = vor.u32 %v1333, %v1337
      %v1340 = vshll.u32 %v1287, 16
      %v1342 = vrot.slane %v1340, 1
      %v1343 = vsel %vm1316, %v1338, %v1342
      %v1344 = vshrl.u32 %v1287, 16
      %v1346 = vor.u32 %v1344, %v1342
      %v1348 = vshrl.u32 %v1288, 16
      %v1350 = vshll.u32 %v1288, 16
      %v1352 = vrot.slane %v1350, 1
      %v1353 = vor.u32 %v1348, %v1352
      %v1355 = vshll.u32 %v1289, 16
      %v1357 = vrot.slane %v1355, 1
      %v1358 = vsel %vm1316, %v1353, %v1357
      %v1359 = vshrl.u32 %v1289, 16
      %v1361 = vor.u32 %v1359, %v1357
      %v1363 = vshrl.u32 %v1290, 16
      %v1365 = vshll.u32 %v1290, 16
      %v1367 = vrot.slane %v1365, 1
      %v1368 = vor.u32 %v1363, %v1367
      %v1370 = vshll.u32 %v1291, 16
      %v1372 = vrot.slane %v1370, 1
      %v1373 = vsel %vm1316, %v1368, %v1372
      %v1374 = vshrl.u32 %v1291, 16
      %v1376 = vor.u32 %v1374, %v1372
      %v1378 = vshrl.u32 %v1292, 16
      %v1380 = vshll.u32 %v1292, 16
      %v1382 = vrot.slane %v1380, 1
      %v1383 = vor.u32 %v1378, %v1382
      %v1385 = vshll.u32 %v1293, 16
      %v1387 = vrot.slane %v1385, 1
      %v1388 = vsel %vm1316, %v1383, %v1387
      %v1389 = vshrl.u32 %v1293, 16
      %v1391 = vor.u32 %v1389, %v1387
      %v1393 = vshrl.u32 %v1294, 16
      %v1395 = vshll.u32 %v1294, 16
      %v1397 = vrot.slane %v1395, 1
      %v1398 = vor.u32 %v1393, %v1397
      %v1400 = vshll.u32 %v1295, 16
      %v1402 = vrot.slane %v1400, 1
      %v1403 = vsel %vm1316, %v1398, %v1402
      %v1404 = vshrl.u32 %v1295, 16
      %v1406 = vor.u32 %v1404, %v1402
      %v1408 = vshrl.u32 %v1296, 16
      %v1410 = vshll.u32 %v1296, 16
      %v1412 = vrot.slane %v1410, 1
      %v1413 = vor.u32 %v1408, %v1412
      %v1415 = vshll.u32 %v1297, 16
      %v1417 = vrot.slane %v1415, 1
      %v1418 = vsel %vm1316, %v1413, %v1417
      %v1419 = vshrl.u32 %v1297, 16
      %v1421 = vor.u32 %v1419, %v1417
      %v1423 = vshrl.u32 %v1298, 16
      %v1425 = vshll.u32 %v1298, 16
      %v1427 = vrot.slane %v1425, 1
      %v1428 = vor.u32 %v1423, %v1427
      %v1430 = vshll.u32 %v1299, 16
      %v1432 = vrot.slane %v1430, 1
      %v1433 = vsel %vm1316, %v1428, %v1432
      %v1434 = vshrl.u32 %v1299, 16
      %v1436 = vor.u32 %v1434, %v1432
      %v1438 = vshrl.u32 %v1300, 16
      %v1440 = vshll.u32 %v1300, 16
      %v1442 = vrot.slane %v1440, 1
      %v1443 = vor.u32 %v1438, %v1442
      %v1445 = vshll.u32 %v1301, 16
      %v1447 = vrot.slane %v1445, 1
      %v1448 = vsel %vm1316, %v1443, %v1447
      %v1449 = vshrl.u32 %v1301, 16
      %v1451 = vor.u32 %v1449, %v1447
      %v1453 = vshrl.u32 %v1302, 16
      %v1455 = vshll.u32 %v1302, 16
      %v1457 = vrot.slane %v1455, 1
      %v1458 = vor.u32 %v1453, %v1457
      %v1460 = vshll.u32 %v1303, 16
      %v1462 = vrot.slane %v1460, 1
      %v1463 = vsel %vm1316, %v1458, %v1462
      %v1464 = vshrl.u32 %v1303, 16
      %v1466 = vor.u32 %v1464, %v1462
      %v1468 = vshrl.u32 %v1304, 16
      %v1470 = vshll.u32 %v1304, 16
      %v1472 = vrot.slane %v1470, 1
      %v1473 = vor.u32 %v1468, %v1472
      %v1475 = vshll.u32 %v1305, 16
      %v1477 = vrot.slane %v1475, 1
      %v1478 = vsel %vm1316, %v1473, %v1477
      %v1479 = vshrl.u32 %v1305, 16
      %v1481 = vor.u32 %v1479, %v1477
      %v1483 = vshrl.u32 %v1306, 16
      %v1485 = vshll.u32 %v1306, 16
      %v1487 = vrot.slane %v1485, 1
      %v1488 = vor.u32 %v1483, %v1487
      %v1490 = vshll.u32 %v1307, 16
      %v1492 = vrot.slane %v1490, 1
      %v1493 = vsel %vm1316, %v1488, %v1492
      %v1494 = vshrl.u32 %v1307, 16
      %v1496 = vor.u32 %v1494, %v1492
      %v1498 = vshrl.u32 %v1308, 16
      %v1500 = vshll.u32 %v1308, 16
      %v1502 = vrot.slane %v1500, 1
      %v1503 = vor.u32 %v1498, %v1502
      %v1505 = vshll.u32 %v1309, 16
      %v1507 = vrot.slane %v1505, 1
      %v1508 = vsel %vm1316, %v1503, %v1507
      %v1509 = vshrl.u32 %v1309, 16
      %v1511 = vor.u32 %v1509, %v1507
      %v1513 = vshrl.u32 %v1310, 16
      %v1515 = vshll.u32 %v1310, 16
      %v1517 = vrot.slane %v1515, 1
      %v1518 = vor.u32 %v1513, %v1517
      %v1520 = vshll.u32 %v1311, 16
      %v1522 = vrot.slane %v1520, 1
      %v1523 = vsel %vm1316, %v1518, %v1522
      %v1524 = vshrl.u32 %v1311, 16
      %v1526 = vor.u32 %v1524, %v1522
      %v1528 = vshrl.u32 %v1312, 16
      %v1530 = vshll.u32 %v1312, 16
      %v1532 = vrot.slane %v1530, 1
      %v1533 = vor.u32 %v1528, %v1532
      %v1535 = vshll.u32 %v1313, 16
      %v1537 = vrot.slane %v1535, 1
      %v1538 = vsel %vm1316, %v1533, %v1537
      %v1539 = vshrl.u32 %v1313, 16
      %v1541 = vor.u32 %v1539, %v1537
      %v1543 = vshrl.u32 %v1314, 16
      %v1545 = vshll.u32 %v1314, 16
      %v1547 = vrot.slane %v1545, 1
      %v1548 = vor.u32 %v1543, %v1547
      %v1550 = vshll.u32 %v1315, 16
      %v1552 = vrot.slane %v1550, 1
      %v1553 = vsel %vm1316, %v1548, %v1552
      %v1554 = vshrl.u32 %v1315, 16
      %v1556 = vor.u32 %v1554, %v1552
      %v1589 = vmax.bf16 %v1284, %v1328
      %v1590 = vmax.bf16 %v1285, %v1331
      %v1591 = vmax.bf16 %v1286, %v1343
      %v1592 = vmax.bf16 %v1287, %v1346
      %v1593 = vmax.bf16 %v1288, %v1358
      %v1594 = vmax.bf16 %v1289, %v1361
      %v1595 = vmax.bf16 %v1290, %v1373
      %v1596 = vmax.bf16 %v1291, %v1376
      %v1597 = vmax.bf16 %v1292, %v1388
      %v1598 = vmax.bf16 %v1293, %v1391
      %v1599 = vmax.bf16 %v1294, %v1403
      %v1600 = vmax.bf16 %v1295, %v1406
      %v1601 = vmax.bf16 %v1296, %v1418
      %v1602 = vmax.bf16 %v1297, %v1421
      %v1603 = vmax.bf16 %v1298, %v1433
      %v1604 = vmax.bf16 %v1299, %v1436
      %v1605 = vmax.bf16 %v1300, %v1448
      %v1606 = vmax.bf16 %v1301, %v1451
      %v1607 = vmax.bf16 %v1302, %v1463
      %v1608 = vmax.bf16 %v1303, %v1466
      %v1609 = vmax.bf16 %v1304, %v1478
      %v1610 = vmax.bf16 %v1305, %v1481
      %v1611 = vmax.bf16 %v1306, %v1493
      %v1612 = vmax.bf16 %v1307, %v1496
      %v1613 = vmax.bf16 %v1308, %v1508
      %v1614 = vmax.bf16 %v1309, %v1511
      %v1615 = vmax.bf16 %v1310, %v1523
      %v1616 = vmax.bf16 %v1311, %v1526
      %v1617 = vmax.bf16 %v1312, %v1538
      %v1618 = vmax.bf16 %v1313, %v1541
      %v1619 = vmax.bf16 %v1314, %v1553
      %v1620 = vmax.bf16 %v1315, %v1556
      %vm1653 = vcmask 1046528
      %v1654 = vrot.slane %v1589, 1
      %v1655 = vrot.slane %v1590, 1
      %v1656 = vsel %vm1653, %v1654, %v1655
      %v1657 = vrot.slane %v1591, 1
      %v1658 = vrot.slane %v1592, 1
      %v1659 = vsel %vm1653, %v1657, %v1658
      %v1660 = vrot.slane %v1593, 1
      %v1661 = vrot.slane %v1594, 1
      %v1662 = vsel %vm1653, %v1660, %v1661
      %v1663 = vrot.slane %v1595, 1
      %v1664 = vrot.slane %v1596, 1
      %v1665 = vsel %vm1653, %v1663, %v1664
      %v1666 = vrot.slane %v1597, 1
      %v1667 = vrot.slane %v1598, 1
      %v1668 = vsel %vm1653, %v1666, %v1667
      %v1669 = vrot.slane %v1599, 1
      %v1670 = vrot.slane %v1600, 1
      %v1671 = vsel %vm1653, %v1669, %v1670
      %v1672 = vrot.slane %v1601, 1
      %v1673 = vrot.slane %v1602, 1
      %v1674 = vsel %vm1653, %v1672, %v1673
      %v1675 = vrot.slane %v1603, 1
      %v1676 = vrot.slane %v1604, 1
      %v1677 = vsel %vm1653, %v1675, %v1676
      %v1678 = vrot.slane %v1605, 1
      %v1679 = vrot.slane %v1606, 1
      %v1680 = vsel %vm1653, %v1678, %v1679
      %v1681 = vrot.slane %v1607, 1
      %v1682 = vrot.slane %v1608, 1
      %v1683 = vsel %vm1653, %v1681, %v1682
      %v1684 = vrot.slane %v1609, 1
      %v1685 = vrot.slane %v1610, 1
      %v1686 = vsel %vm1653, %v1684, %v1685
      %v1687 = vrot.slane %v1611, 1
      %v1688 = vrot.slane %v1612, 1
      %v1689 = vsel %vm1653, %v1687, %v1688
      %v1690 = vrot.slane %v1613, 1
      %v1691 = vrot.slane %v1614, 1
      %v1692 = vsel %vm1653, %v1690, %v1691
      %v1693 = vrot.slane %v1615, 1
      %v1694 = vrot.slane %v1616, 1
      %v1695 = vsel %vm1653, %v1693, %v1694
      %v1696 = vrot.slane %v1617, 1
      %v1697 = vrot.slane %v1618, 1
      %v1698 = vsel %vm1653, %v1696, %v1697
      %v1699 = vrot.slane %v1619, 1
      %v1700 = vrot.slane %v1620, 1
      %v1701 = vsel %vm1653, %v1699, %v1700
      %v1734 = vmax.bf16 %v1589, %v1656
      %v1735 = vmax.bf16 %v1590, %v1655
      %v1736 = vmax.bf16 %v1591, %v1659
      %v1737 = vmax.bf16 %v1592, %v1658
      %v1738 = vmax.bf16 %v1593, %v1662
      %v1739 = vmax.bf16 %v1594, %v1661
      %v1740 = vmax.bf16 %v1595, %v1665
      %v1741 = vmax.bf16 %v1596, %v1664
      %v1742 = vmax.bf16 %v1597, %v1668
      %v1743 = vmax.bf16 %v1598, %v1667
      %v1744 = vmax.bf16 %v1599, %v1671
      %v1745 = vmax.bf16 %v1600, %v1670
      %v1746 = vmax.bf16 %v1601, %v1674
      %v1747 = vmax.bf16 %v1602, %v1673
      %v1748 = vmax.bf16 %v1603, %v1677
      %v1749 = vmax.bf16 %v1604, %v1676
      %v1750 = vmax.bf16 %v1605, %v1680
      %v1751 = vmax.bf16 %v1606, %v1679
      %v1752 = vmax.bf16 %v1607, %v1683
      %v1753 = vmax.bf16 %v1608, %v1682
      %v1754 = vmax.bf16 %v1609, %v1686
      %v1755 = vmax.bf16 %v1610, %v1685
      %v1756 = vmax.bf16 %v1611, %v1689
      %v1757 = vmax.bf16 %v1612, %v1688
      %v1758 = vmax.bf16 %v1613, %v1692
      %v1759 = vmax.bf16 %v1614, %v1691
      %v1760 = vmax.bf16 %v1615, %v1695
      %v1761 = vmax.bf16 %v1616, %v1694
      %v1762 = vmax.bf16 %v1617, %v1698
      %v1763 = vmax.bf16 %v1618, %v1697
      %v1764 = vmax.bf16 %v1619, %v1701
      %v1765 = vmax.bf16 %v1620, %v1700
      %v1767 = vshrl.u32 %v1734, 16
      %v1769 = vshll.u32 %v1734, 16
      %v1771 = vrot.slane %v1769, 1
      %v1772 = vor.u32 %v1767, %v1771
      %v1774 = vshll.u32 %v1735, 16
      %v1776 = vrot.slane %v1774, 1
      %v1777 = vsel %vm1316, %v1772, %v1776
      %v1778 = vshrl.u32 %v1735, 16
      %v1780 = vor.u32 %v1778, %v1776
      %v1782 = vshrl.u32 %v1736, 16
      %v1784 = vshll.u32 %v1736, 16
      %v1786 = vrot.slane %v1784, 1
      %v1787 = vor.u32 %v1782, %v1786
      %v1789 = vshll.u32 %v1737, 16
      %v1791 = vrot.slane %v1789, 1
      %v1792 = vsel %vm1316, %v1787, %v1791
      %v1793 = vshrl.u32 %v1737, 16
      %v1795 = vor.u32 %v1793, %v1791
      %v1797 = vshrl.u32 %v1738, 16
      %v1799 = vshll.u32 %v1738, 16
      %v1801 = vrot.slane %v1799, 1
      %v1802 = vor.u32 %v1797, %v1801
      %v1804 = vshll.u32 %v1739, 16
      %v1806 = vrot.slane %v1804, 1
      %v1807 = vsel %vm1316, %v1802, %v1806
      %v1808 = vshrl.u32 %v1739, 16
      %v1810 = vor.u32 %v1808, %v1806
      %v1812 = vshrl.u32 %v1740, 16
      %v1814 = vshll.u32 %v1740, 16
      %v1816 = vrot.slane %v1814, 1
      %v1817 = vor.u32 %v1812, %v1816
      %v1819 = vshll.u32 %v1741, 16
      %v1821 = vrot.slane %v1819, 1
      %v1822 = vsel %vm1316, %v1817, %v1821
      %v1823 = vshrl.u32 %v1741, 16
      %v1825 = vor.u32 %v1823, %v1821
      %v1827 = vshrl.u32 %v1742, 16
      %v1829 = vshll.u32 %v1742, 16
      %v1831 = vrot.slane %v1829, 1
      %v1832 = vor.u32 %v1827, %v1831
      %v1834 = vshll.u32 %v1743, 16
      %v1836 = vrot.slane %v1834, 1
      %v1837 = vsel %vm1316, %v1832, %v1836
      %v1838 = vshrl.u32 %v1743, 16
      %v1840 = vor.u32 %v1838, %v1836
      %v1842 = vshrl.u32 %v1744, 16
      %v1844 = vshll.u32 %v1744, 16
      %v1846 = vrot.slane %v1844, 1
      %v1847 = vor.u32 %v1842, %v1846
      %v1849 = vshll.u32 %v1745, 16
      %v1851 = vrot.slane %v1849, 1
      %v1852 = vsel %vm1316, %v1847, %v1851
      %v1853 = vshrl.u32 %v1745, 16
      %v1855 = vor.u32 %v1853, %v1851
      %v1857 = vshrl.u32 %v1746, 16
      %v1859 = vshll.u32 %v1746, 16
      %v1861 = vrot.slane %v1859, 1
      %v1862 = vor.u32 %v1857, %v1861
      %v1864 = vshll.u32 %v1747, 16
      %v1866 = vrot.slane %v1864, 1
      %v1867 = vsel %vm1316, %v1862, %v1866
      %v1868 = vshrl.u32 %v1747, 16
      %v1870 = vor.u32 %v1868, %v1866
      %v1872 = vshrl.u32 %v1748, 16
      %v1874 = vshll.u32 %v1748, 16
      %v1876 = vrot.slane %v1874, 1
      %v1877 = vor.u32 %v1872, %v1876
      %v1879 = vshll.u32 %v1749, 16
      %v1881 = vrot.slane %v1879, 1
      %v1882 = vsel %vm1316, %v1877, %v1881
      %v1883 = vshrl.u32 %v1749, 16
      %v1885 = vor.u32 %v1883, %v1881
      %v1887 = vshrl.u32 %v1750, 16
      %v1889 = vshll.u32 %v1750, 16
      %v1891 = vrot.slane %v1889, 1
      %v1892 = vor.u32 %v1887, %v1891
      %v1894 = vshll.u32 %v1751, 16
      %v1896 = vrot.slane %v1894, 1
      %v1897 = vsel %vm1316, %v1892, %v1896
      %v1898 = vshrl.u32 %v1751, 16
      %v1900 = vor.u32 %v1898, %v1896
      %v1902 = vshrl.u32 %v1752, 16
      %v1904 = vshll.u32 %v1752, 16
      %v1906 = vrot.slane %v1904, 1
      %v1907 = vor.u32 %v1902, %v1906
      %v1909 = vshll.u32 %v1753, 16
      %v1911 = vrot.slane %v1909, 1
      %v1912 = vsel %vm1316, %v1907, %v1911
      %v1913 = vshrl.u32 %v1753, 16
      %v1915 = vor.u32 %v1913, %v1911
      %v1917 = vshrl.u32 %v1754, 16
      %v1919 = vshll.u32 %v1754, 16
      %v1921 = vrot.slane %v1919, 1
      %v1922 = vor.u32 %v1917, %v1921
      %v1924 = vshll.u32 %v1755, 16
      %v1926 = vrot.slane %v1924, 1
      %v1927 = vsel %vm1316, %v1922, %v1926
      %v1928 = vshrl.u32 %v1755, 16
      %v1930 = vor.u32 %v1928, %v1926
      %v1932 = vshrl.u32 %v1756, 16
      %v1934 = vshll.u32 %v1756, 16
      %v1936 = vrot.slane %v1934, 1
      %v1937 = vor.u32 %v1932, %v1936
      %v1939 = vshll.u32 %v1757, 16
      %v1941 = vrot.slane %v1939, 1
      %v1942 = vsel %vm1316, %v1937, %v1941
      %v1943 = vshrl.u32 %v1757, 16
      %v1945 = vor.u32 %v1943, %v1941
      %v1947 = vshrl.u32 %v1758, 16
      %v1949 = vshll.u32 %v1758, 16
      %v1951 = vrot.slane %v1949, 1
      %v1952 = vor.u32 %v1947, %v1951
      %v1954 = vshll.u32 %v1759, 16
      %v1956 = vrot.slane %v1954, 1
      %v1957 = vsel %vm1316, %v1952, %v1956
      %v1958 = vshrl.u32 %v1759, 16
      %v1960 = vor.u32 %v1958, %v1956
      %v1962 = vshrl.u32 %v1760, 16
      %v1964 = vshll.u32 %v1760, 16
      %v1966 = vrot.slane %v1964, 1
      %v1967 = vor.u32 %v1962, %v1966
      %v1969 = vshll.u32 %v1761, 16
      %v1971 = vrot.slane %v1969, 1
      %v1972 = vsel %vm1316, %v1967, %v1971
      %v1973 = vshrl.u32 %v1761, 16
      %v1975 = vor.u32 %v1973, %v1971
      %v1977 = vshrl.u32 %v1762, 16
      %v1979 = vshll.u32 %v1762, 16
      %v1981 = vrot.slane %v1979, 1
      %v1982 = vor.u32 %v1977, %v1981
      %v1984 = vshll.u32 %v1763, 16
      %v1986 = vrot.slane %v1984, 1
      %v1987 = vsel %vm1316, %v1982, %v1986
      %v1988 = vshrl.u32 %v1763, 16
      %v1990 = vor.u32 %v1988, %v1986
      %v1992 = vshrl.u32 %v1764, 16
      %v1994 = vshll.u32 %v1764, 16
      %v1996 = vrot.slane %v1994, 1
      %v1997 = vor.u32 %v1992, %v1996
      %v1999 = vshll.u32 %v1765, 16
      %v2001 = vrot.slane %v1999, 1
      %v2002 = vsel %vm1316, %v1997, %v2001
      %v2003 = vshrl.u32 %v1765, 16
      %v2005 = vor.u32 %v2003, %v2001
      %v2038 = vmax.bf16 %v1734, %v1777
      %v2039 = vmax.bf16 %v1735, %v1780
      %v2040 = vmax.bf16 %v1736, %v1792
      %v2041 = vmax.bf16 %v1737, %v1795
      %v2042 = vmax.bf16 %v1738, %v1807
      %v2043 = vmax.bf16 %v1739, %v1810
      %v2044 = vmax.bf16 %v1740, %v1822
      %v2045 = vmax.bf16 %v1741, %v1825
      %v2046 = vmax.bf16 %v1742, %v1837
      %v2047 = vmax.bf16 %v1743, %v1840
      %v2048 = vmax.bf16 %v1744, %v1852
      %v2049 = vmax.bf16 %v1745, %v1855
      %v2050 = vmax.bf16 %v1746, %v1867
      %v2051 = vmax.bf16 %v1747, %v1870
      %v2052 = vmax.bf16 %v1748, %v1882
      %v2053 = vmax.bf16 %v1749, %v1885
      %v2054 = vmax.bf16 %v1750, %v1897
      %v2055 = vmax.bf16 %v1751, %v1900
      %v2056 = vmax.bf16 %v1752, %v1912
      %v2057 = vmax.bf16 %v1753, %v1915
      %v2058 = vmax.bf16 %v1754, %v1927
      %v2059 = vmax.bf16 %v1755, %v1930
      %v2060 = vmax.bf16 %v1756, %v1942
      %v2061 = vmax.bf16 %v1757, %v1945
      %v2062 = vmax.bf16 %v1758, %v1957
      %v2063 = vmax.bf16 %v1759, %v1960
      %v2064 = vmax.bf16 %v1760, %v1972
      %v2065 = vmax.bf16 %v1761, %v1975
      %v2066 = vmax.bf16 %v1762, %v1987
      %v2067 = vmax.bf16 %v1763, %v1990
      %v2068 = vmax.bf16 %v1764, %v2002
      %v2069 = vmax.bf16 %v1765, %v2005
      %v2070 = vld [vmem:[#allocation3] sm:$0xff]
      %v2071 = vld [vmem:[#allocation3 + $0x8] sm:$0xff]
      %v2072 = vld [vmem:[#allocation3 + $0x10] sm:$0xff]
      %v2073 = vld [vmem:[#allocation3 + $0x18] sm:$0xff]
      %v2074 = vld [vmem:[#allocation3 + $0x20] sm:$0xff]
      %v2075 = vld [vmem:[#allocation3 + $0x28] sm:$0xff]
      %v2076 = vld [vmem:[#allocation3 + $0x30] sm:$0xff]
      %v2077 = vld [vmem:[#allocation3 + $0x38] sm:$0xff]
      %v2078 = vld [vmem:[#allocation3 + $0x40] sm:$0xff]
      %v2079 = vld [vmem:[#allocation3 + $0x48] sm:$0xff]
      %v2080 = vld [vmem:[#allocation3 + $0x50] sm:$0xff]
      %v2081 = vld [vmem:[#allocation3 + $0x58] sm:$0xff]
      %v2082 = vld [vmem:[#allocation3 + $0x60] sm:$0xff]
      %v2083 = vld [vmem:[#allocation3 + $0x68] sm:$0xff]
      %v2084 = vld [vmem:[#allocation3 + $0x70] sm:$0xff]
      %v2085 = vld [vmem:[#allocation3 + $0x78] sm:$0xff]
      %v2086 = vld [vmem:[#allocation3 + $0x80] sm:$0xff]
      %v2087 = vld [vmem:[#allocation3 + $0x88] sm:$0xff]
      %v2088 = vld [vmem:[#allocation3 + $0x90] sm:$0xff]
      %v2089 = vld [vmem:[#allocation3 + $0x98] sm:$0xff]
      %v2090 = vld [vmem:[#allocation3 + $0xa0] sm:$0xff]
      %v2091 = vld [vmem:[#allocation3 + $0xa8] sm:$0xff]
      %v2092 = vld [vmem:[#allocation3 + $0xb0] sm:$0xff]
      %v2093 = vld [vmem:[#allocation3 + $0xb8] sm:$0xff]
      %v2094 = vld [vmem:[#allocation3 + $0xc0] sm:$0xff]
      %v2095 = vld [vmem:[#allocation3 + $0xc8] sm:$0xff]
      %v2096 = vld [vmem:[#allocation3 + $0xd0] sm:$0xff]
      %v2097 = vld [vmem:[#allocation3 + $0xd8] sm:$0xff]
      %v2098 = vld [vmem:[#allocation3 + $0xe0] sm:$0xff]
      %v2099 = vld [vmem:[#allocation3 + $0xe8] sm:$0xff]
      %v2100 = vld [vmem:[#allocation3 + $0xf0] sm:$0xff]
      %v2101 = vld [vmem:[#allocation3 + $0xf8] sm:$0xff]
      %vm2134 = vcmask 1044480
      %v2135 = vrot.slane %v2038, 3
      %v2136 = vrot.slane %v2039, 3
      %v2137 = vsel %vm2134, %v2135, %v2136
      %v2138 = vrot.slane %v2040, 3
      %v2139 = vrot.slane %v2041, 3
      %v2140 = vsel %vm2134, %v2138, %v2139
      %v2141 = vrot.slane %v2042, 3
      %v2142 = vrot.slane %v2043, 3
      %v2143 = vsel %vm2134, %v2141, %v2142
      %v2144 = vrot.slane %v2044, 3
      %v2145 = vrot.slane %v2045, 3
      %v2146 = vsel %vm2134, %v2144, %v2145
      %v2147 = vrot.slane %v2046, 3
      %v2148 = vrot.slane %v2047, 3
      %v2149 = vsel %vm2134, %v2147, %v2148
      %v2150 = vrot.slane %v2048, 3
      %v2151 = vrot.slane %v2049, 3
      %v2152 = vsel %vm2134, %v2150, %v2151
      %v2153 = vrot.slane %v2050, 3
      %v2154 = vrot.slane %v2051, 3
      %v2155 = vsel %vm2134, %v2153, %v2154
      %v2156 = vrot.slane %v2052, 3
      %v2157 = vrot.slane %v2053, 3
      %v2158 = vsel %vm2134, %v2156, %v2157
      %v2159 = vrot.slane %v2054, 3
      %v2160 = vrot.slane %v2055, 3
      %v2161 = vsel %vm2134, %v2159, %v2160
      %v2162 = vrot.slane %v2056, 3
      %v2163 = vrot.slane %v2057, 3
      %v2164 = vsel %vm2134, %v2162, %v2163
      %v2165 = vrot.slane %v2058, 3
      %v2166 = vrot.slane %v2059, 3
      %v2167 = vsel %vm2134, %v2165, %v2166
      %v2168 = vrot.slane %v2060, 3
      %v2169 = vrot.slane %v2061, 3
      %v2170 = vsel %vm2134, %v2168, %v2169
      %v2171 = vrot.slane %v2062, 3
      %v2172 = vrot.slane %v2063, 3
      %v2173 = vsel %vm2134, %v2171, %v2172
      %v2174 = vrot.slane %v2064, 3
      %v2175 = vrot.slane %v2065, 3
      %v2176 = vsel %vm2134, %v2174, %v2175
      %v2177 = vrot.slane %v2066, 3
      %v2178 = vrot.slane %v2067, 3
      %v2179 = vsel %vm2134, %v2177, %v2178
      %v2180 = vrot.slane %v2068, 3
      %v2181 = vrot.slane %v2069, 3
      %v2182 = vsel %vm2134, %v2180, %v2181
      %s2183 = scalar_lea.vmem %s3, 2
      %v2184 = vld [vmem:[%s2183] sm:$0x3]
      %v2186 = vsel %vm227, %v2137, 0
      %v2189 = vsel %vm227, %v2140, 0
      %v2192 = vsel %vm227, %v2143, 0
      %v2195 = vsel %vm227, %v2146, 0
      %v2198 = vsel %vm227, %v2149, 0
      %v2201 = vsel %vm227, %v2152, 0
      %v2204 = vsel %vm227, %v2155, 0
      %v2207 = vsel %vm227, %v2158, 0
      %v2210 = vsel %vm227, %v2161, 0
      %v2213 = vsel %vm227, %v2164, 0
      %v2216 = vsel %vm227, %v2167, 0
      %v2219 = vsel %vm227, %v2170, 0
      %v2222 = vsel %vm227, %v2173, 0
      %v2225 = vsel %vm227, %v2176, 0
      %v2228 = vsel %vm227, %v2179, 0
      %v2231 = vsel %vm227, %v2182, 0
      %v2234 = vsel %vm895, %v2184, 0
      %2236 = vmatprep.subr.bf16.mxu0 0
      %2237 = vmatpush1.bf16.msra.mxu0 %v2234
      %2238 = vmatprep.subr.bf16.mxu0 0
      %2239 = vmatpush1.bf16.msra.mxu0 0
      %2240 = vmatprep.subr.bf16.mxu0 0
      %2241 = vmatpush1.bf16.msra.mxu0 0
      %2242 = vmatprep.subr.bf16.mxu0 0
      %2243 = vmatpush1.bf16.msra.mxu0 0
      %2244 = vmatprep.subr.bf16.mxu0 0
      %2245 = vmatpush1.bf16.msra.mxu0 0
      %2246 = vmatprep.subr.bf16.mxu0 0
      %2247 = vmatpush1.bf16.msra.mxu0 0
      %2248 = vmatprep.subr.bf16.mxu0 0
      %2249 = vmatpush1.bf16.msra.mxu0 0
      %2250 = vmatprep.subr.bf16.mxu0 0
      %2251 = vmatpush1.bf16.msra.mxu0 0
      %2252 = vmatprep.subr.bf16.mxu0 0
      %2253 = vmatpush1.bf16.msra.mxu0 0
      %2254 = vmatprep.subr.bf16.mxu0 0
      %2255 = vmatpush1.bf16.msra.mxu0 0
      %2256 = vmatprep.subr.bf16.mxu0 0
      %2257 = vmatpush1.bf16.msra.mxu0 0
      %2258 = vmatprep.subr.bf16.mxu0 0
      %2259 = vmatpush1.bf16.msra.mxu0 0
      %2260 = vmatprep.subr.bf16.mxu0 0
      %2261 = vmatpush1.bf16.msra.mxu0 0
      %2262 = vmatprep.subr.bf16.mxu0 0
      %2263 = vmatpush1.bf16.msra.mxu0 0
      %2264 = vmatprep.subr.bf16.mxu0 0
      %2265 = vmatpush1.bf16.msra.mxu0 0
      %2266 = vmatprep.subr.bf16.mxu0 0
      %2267 = vmatpush1.bf16.msra.mxu0 0
      %2268 = vmatprep.mubr.bf16.mxu0 0
      %2269 = vmatmul.mubr.bf16.gmra.mrb[0].mxu0 %v2186
      %v2270 = vpop.f32.mrb[0].mxu0
      %v2271 = vadd.f32 0.0, %v2270
      %v2272 = vpop.f32.mrb[0].mxu0
      %v2273 = vpop.f32.mrb[0].mxu0
      %v2274 = vadd.f32 0.0, %v2273
      %v2275 = vpop.f32.mrb[0].mxu0
      %2276 = vmatprep.mubr.bf16.mxu0 0
      %2277 = vmatmul.mubr.bf16.gmra.mrb[0].mxu0 %v2189
      %v2278 = vpop.f32.mrb[0].mxu0
      %v2279 = vadd.f32 0.0, %v2278
      %v2280 = vpop.f32.mrb[0].mxu0
      %v2281 = vpop.f32.mrb[0].mxu0
      %v2282 = vadd.f32 0.0, %v2281
      %v2283 = vpop.f32.mrb[0].mxu0
      %2284 = vmatprep.mubr.bf16.mxu0 0
      %2285 = vmatmul.mubr.bf16.gmra.mrb[0].mxu0 %v2192
      %v2286 = vpop.f32.mrb[0].mxu0
      %v2287 = vadd.f32 0.0, %v2286
      %v2288 = vpop.f32.mrb[0].mxu0
      %v2289 = vpop.f32.mrb[0].mxu0
      %v2290 = vadd.f32 0.0, %v2289
      %v2291 = vpop.f32.mrb[0].mxu0
      %2292 = vmatprep.mubr.bf16.mxu0 0
      %2293 = vmatmul.mubr.bf16.gmra.mrb[0].mxu0 %v2195
      %v2294 = vpop.f32.mrb[0].mxu0
      %v2295 = vadd.f32 0.0, %v2294
      %v2296 = vpop.f32.mrb[0].mxu0
      %v2297 = vpop.f32.mrb[0].mxu0
      %v2298 = vadd.f32 0.0, %v2297
      %v2299 = vpop.f32.mrb[0].mxu0
      %2300 = vmatprep.mubr.bf16.mxu0 0
      %2301 = vmatmul.mubr.bf16.gmra.mrb[0].mxu0 %v2198
      %v2302 = vpop.f32.mrb[0].mxu0
      %v2303 = vadd.f32 0.0, %v2302
      %v2304 = vpop.f32.mrb[0].mxu0
      %v2305 = vpop.f32.mrb[0].mxu0
      %v2306 = vadd.f32 0.0, %v2305
      %v2307 = vpop.f32.mrb[0].mxu0
      %2308 = vmatprep.mubr.bf16.mxu0 0
      %2309 = vmatmul.mubr.bf16.gmra.mrb[0].mxu0 %v2201
      %v2310 = vpop.f32.mrb[0].mxu0
      %v2311 = vadd.f32 0.0, %v2310
      %v2312 = vpop.f32.mrb[0].mxu0
      %v2313 = vpop.f32.mrb[0].mxu0
      %v2314 = vadd.f32 0.0, %v2313
      %v2315 = vpop.f32.mrb[0].mxu0
      %2316 = vmatprep.mubr.bf16.mxu0 0
      %2317 = vmatmul.mubr.bf16.gmra.mrb[0].mxu0 %v2204
      %v2318 = vpop.f32.mrb[0].mxu0
      %v2319 = vadd.f32 0.0, %v2318
      %v2320 = vpop.f32.mrb[0].mxu0
      %v2321 = vpop.f32.mrb[0].mxu0
      %v2322 = vadd.f32 0.0, %v2321
      %v2323 = vpop.f32.mrb[0].mxu0
      %2324 = vmatprep.mubr.bf16.mxu0 0
      %2325 = vmatmul.mubr.bf16.gmra.mrb[0].mxu0 %v2207
      %v2326 = vpop.f32.mrb[0].mxu0
      %v2327 = vadd.f32 0.0, %v2326
      %v2328 = vpop.f32.mrb[0].mxu0
      %v2329 = vpop.f32.mrb[0].mxu0
      %v2330 = vadd.f32 0.0, %v2329
      %v2331 = vpop.f32.mrb[0].mxu0
      %2332 = vmatprep.mubr.bf16.mxu0 0
      %2333 = vmatmul.mubr.bf16.gmra.mrb[0].mxu0 %v2210
      %v2334 = vpop.f32.mrb[0].mxu0
      %v2335 = vadd.f32 0.0, %v2334
      %v2336 = vpop.f32.mrb[0].mxu0
      %v2337 = vpop.f32.mrb[0].mxu0
      %v2338 = vadd.f32 0.0, %v2337
      %v2339 = vpop.f32.mrb[0].mxu0
      %2340 = vmatprep.mubr.bf16.mxu0 0
      %2341 = vmatmul.mubr.bf16.gmra.mrb[0].mxu0 %v2213
      %v2342 = vpop.f32.mrb[0].mxu0
      %v2343 = vadd.f32 0.0, %v2342
      %v2344 = vpop.f32.mrb[0].mxu0
      %v2345 = vpop.f32.mrb[0].mxu0
      %v2346 = vadd.f32 0.0, %v2345
      %v2347 = vpop.f32.mrb[0].mxu0
      %2348 = vmatprep.mubr.bf16.mxu0 0
      %2349 = vmatmul.mubr.bf16.gmra.mrb[0].mxu0 %v2216
      %v2350 = vpop.f32.mrb[0].mxu0
      %v2351 = vadd.f32 0.0, %v2350
      %v2352 = vpop.f32.mrb[0].mxu0
      %v2353 = vpop.f32.mrb[0].mxu0
      %v2354 = vadd.f32 0.0, %v2353
      %v2355 = vpop.f32.mrb[0].mxu0
      %2356 = vmatprep.mubr.bf16.mxu0 0
      %2357 = vmatmul.mubr.bf16.gmra.mrb[0].mxu0 %v2219
      %v2358 = vpop.f32.mrb[0].mxu0
      %v2359 = vadd.f32 0.0, %v2358
      %v2360 = vpop.f32.mrb[0].mxu0
      %v2361 = vpop.f32.mrb[0].mxu0
      %v2362 = vadd.f32 0.0, %v2361
      %v2363 = vpop.f32.mrb[0].mxu0
      %2364 = vmatprep.mubr.bf16.mxu0 0
      %2365 = vmatmul.mubr.bf16.gmra.mrb[0].mxu0 %v2222
      %v2366 = vpop.f32.mrb[0].mxu0
      %v2367 = vadd.f32 0.0, %v2366
      %v2368 = vpop.f32.mrb[0].mxu0
      %v2369 = vpop.f32.mrb[0].mxu0
      %v2370 = vadd.f32 0.0, %v2369
      %v2371 = vpop.f32.mrb[0].mxu0
      %2372 = vmatprep.mubr.bf16.mxu0 0
      %2373 = vmatmul.mubr.bf16.gmra.mrb[0].mxu0 %v2225
      %v2374 = vpop.f32.mrb[0].mxu0
      %v2375 = vadd.f32 0.0, %v2374
      %v2376 = vpop.f32.mrb[0].mxu0
      %v2377 = vpop.f32.mrb[0].mxu0
      %v2378 = vadd.f32 0.0, %v2377
      %v2379 = vpop.f32.mrb[0].mxu0
      %2380 = vmatprep.mubr.bf16.mxu0 0
      %2381 = vmatmul.mubr.bf16.gmra.mrb[0].mxu0 %v2228
      %v2382 = vpop.f32.mrb[0].mxu0
      %v2383 = vadd.f32 0.0, %v2382
      %v2384 = vpop.f32.mrb[0].mxu0
      %v2385 = vpop.f32.mrb[0].mxu0
      %v2386 = vadd.f32 0.0, %v2385
      %v2387 = vpop.f32.mrb[0].mxu0
      %2388 = vmatprep.mubr.bf16.mxu0 0
      %2389 = vmatmul.mubr.bf16.gmra.mrb[0].mxu0 %v2231
      %v2390 = vpop.f32.mrb[0].mxu0
      %v2391 = vadd.f32 0.0, %v2390
      %v2392 = vpop.f32.mrb[0].mxu0
      %v2393 = vpop.f32.mrb[0].mxu0
      %v2394 = vadd.f32 0.0, %v2393
      %v2395 = vpop.f32.mrb[0].mxu0
      %2396 = vdwg.mxu0
      %v2397 = vadd.f32 %v2070, %v2271
      %v2398 = vadd.f32 %v2071, %v2274
      %v2399 = vadd.f32 %v2072, %v2279
      %v2400 = vadd.f32 %v2073, %v2282
      %v2401 = vadd.f32 %v2074, %v2287
      %v2402 = vadd.f32 %v2075, %v2290
      %v2403 = vadd.f32 %v2076, %v2295
      %v2404 = vadd.f32 %v2077, %v2298
      %v2405 = vadd.f32 %v2078, %v2303
      %v2406 = vadd.f32 %v2079, %v2306
      %v2407 = vadd.f32 %v2080, %v2311
      %v2408 = vadd.f32 %v2081, %v2314
      %v2409 = vadd.f32 %v2082, %v2319
      %v2410 = vadd.f32 %v2083, %v2322
      %v2411 = vadd.f32 %v2084, %v2327
      %v2412 = vadd.f32 %v2085, %v2330
      %v2413 = vadd.f32 %v2086, %v2335
      %v2414 = vadd.f32 %v2087, %v2338
      %v2415 = vadd.f32 %v2088, %v2343
      %v2416 = vadd.f32 %v2089, %v2346
      %v2417 = vadd.f32 %v2090, %v2351
      %v2418 = vadd.f32 %v2091, %v2354
      %v2419 = vadd.f32 %v2092, %v2359
      %v2420 = vadd.f32 %v2093, %v2362
      %v2421 = vadd.f32 %v2094, %v2367
      %v2422 = vadd.f32 %v2095, %v2370
      %v2423 = vadd.f32 %v2096, %v2375
      %v2424 = vadd.f32 %v2097, %v2378
      %v2425 = vadd.f32 %v2098, %v2383
      %v2426 = vadd.f32 %v2099, %v2386
      %v2427 = vadd.f32 %v2100, %v2391
      %v2428 = vadd.f32 %v2101, %v2394
      %2429 = vst.msk [vmem:[#allocation3] sm:$0xff] %vm392, %v2397
      %2430 = vst.msk [vmem:[#allocation3 + $0x8] sm:$0xff] %vm392, %v2398
      %2431 = vst.msk [vmem:[#allocation3 + $0x10] sm:$0xff] %vm392, %v2399
      %2432 = vst.msk [vmem:[#allocation3 + $0x18] sm:$0xff] %vm392, %v2400
      %2433 = vst.msk [vmem:[#allocation3 + $0x20] sm:$0xff] %vm392, %v2401
      %2434 = vst.msk [vmem:[#allocation3 + $0x28] sm:$0xff] %vm392, %v2402
      %2435 = vst.msk [vmem:[#allocation3 + $0x30] sm:$0xff] %vm392, %v2403
      %2436 = vst.msk [vmem:[#allocation3 + $0x38] sm:$0xff] %vm392, %v2404
      %2437 = vst.msk [vmem:[#allocation3 + $0x40] sm:$0xff] %vm392, %v2405
      %2438 = vst.msk [vmem:[#allocation3 + $0x48] sm:$0xff] %vm392, %v2406
      %2439 = vst.msk [vmem:[#allocation3 + $0x50] sm:$0xff] %vm392, %v2407
      %2440 = vst.msk [vmem:[#allocation3 + $0x58] sm:$0xff] %vm392, %v2408
      %2441 = vst.msk [vmem:[#allocation3 + $0x60] sm:$0xff] %vm392, %v2409
      %2442 = vst.msk [vmem:[#allocation3 + $0x68] sm:$0xff] %vm392, %v2410
      %2443 = vst.msk [vmem:[#allocation3 + $0x70] sm:$0xff] %vm392, %v2411
      %2444 = vst.msk [vmem:[#allocation3 + $0x78] sm:$0xff] %vm392, %v2412
      %2445 = vst.msk [vmem:[#allocation3 + $0x80] sm:$0xff] %vm392, %v2413
      %2446 = vst.msk [vmem:[#allocation3 + $0x88] sm:$0xff] %vm392, %v2414
      %2447 = vst.msk [vmem:[#allocation3 + $0x90] sm:$0xff] %vm392, %v2415
      %2448 = vst.msk [vmem:[#allocation3 + $0x98] sm:$0xff] %vm392, %v2416
      %2449 = vst.msk [vmem:[#allocation3 + $0xa0] sm:$0xff] %vm392, %v2417
      %2450 = vst.msk [vmem:[#allocation3 + $0xa8] sm:$0xff] %vm392, %v2418
      %2451 = vst.msk [vmem:[#allocation3 + $0xb0] sm:$0xff] %vm392, %v2419
      %2452 = vst.msk [vmem:[#allocation3 + $0xb8] sm:$0xff] %vm392, %v2420
      %2453 = vst.msk [vmem:[#allocation3 + $0xc0] sm:$0xff] %vm392, %v2421
      %2454 = vst.msk [vmem:[#allocation3 + $0xc8] sm:$0xff] %vm392, %v2422
      %2455 = vst.msk [vmem:[#allocation3 + $0xd0] sm:$0xff] %vm392, %v2423
      %2456 = vst.msk [vmem:[#allocation3 + $0xd8] sm:$0xff] %vm392, %v2424
      %2457 = vst.msk [vmem:[#allocation3 + $0xe0] sm:$0xff] %vm392, %v2425
      %2458 = vst.msk [vmem:[#allocation3 + $0xe8] sm:$0xff] %vm392, %v2426
      %2459 = vst.msk [vmem:[#allocation3 + $0xf0] sm:$0xff] %vm392, %v2427
      %2460 = vst.msk [vmem:[#allocation3 + $0xf8] sm:$0xff] %vm392, %v2428
      %vm2461 = vcmask 1040384
      %v2462 = vrot.slane %v2038, 7
      %v2463 = vrot.slane %v2039, 7
      %v2464 = vsel %vm2461, %v2462, %v2463
      %v2465 = vrot.slane %v2040, 7
      %v2466 = vrot.slane %v2041, 7
      %v2467 = vsel %vm2461, %v2465, %v2466
      %v2468 = vrot.slane %v2042, 7
      %v2469 = vrot.slane %v2043, 7
      %v2470 = vsel %vm2461, %v2468, %v2469
      %v2471 = vrot.slane %v2044, 7
      %v2472 = vrot.slane %v2045, 7
      %v2473 = vsel %vm2461, %v2471, %v2472
      %v2474 = vrot.slane %v2046, 7
      %v2475 = vrot.slane %v2047, 7
      %v2476 = vsel %vm2461, %v2474, %v2475
      %v2477 = vrot.slane %v2048, 7
      %v2478 = vrot.slane %v2049, 7
      %v2479 = vsel %vm2461, %v2477, %v2478
      %v2480 = vrot.slane %v2050, 7
      %v2481 = vrot.slane %v2051, 7
      %v2482 = vsel %vm2461, %v2480, %v2481
      %v2483 = vrot.slane %v2052, 7
      %v2484 = vrot.slane %v2053, 7
      %v2485 = vsel %vm2461, %v2483, %v2484
      %v2486 = vrot.slane %v2054, 7
      %v2487 = vrot.slane %v2055, 7
      %v2488 = vsel %vm2461, %v2486, %v2487
      %v2489 = vrot.slane %v2056, 7
      %v2490 = vrot.slane %v2057, 7
      %v2491 = vsel %vm2461, %v2489, %v2490
      %v2492 = vrot.slane %v2058, 7
      %v2493 = vrot.slane %v2059, 7
      %v2494 = vsel %vm2461, %v2492, %v2493
      %v2495 = vrot.slane %v2060, 7
      %v2496 = vrot.slane %v2061, 7
      %v2497 = vsel %vm2461, %v2495, %v2496
      %v2498 = vrot.slane %v2062, 7
      %v2499 = vrot.slane %v2063, 7
      %v2500 = vsel %vm2461, %v2498, %v2499
      %v2501 = vrot.slane %v2064, 7
      %v2502 = vrot.slane %v2065, 7
      %v2503 = vsel %vm2461, %v2501, %v2502
      %v2504 = vrot.slane %v2066, 7
      %v2505 = vrot.slane %v2067, 7
      %v2506 = vsel %vm2461, %v2504, %v2505
      %v2507 = vrot.slane %v2068, 7
      %v2508 = vrot.slane %v2069, 7
      %v2509 = vsel %vm2461, %v2507, %v2508
      %2542 = vst.msk [vmem:[%s237] sm:$0xf0] %vm255, %v2462
      %2543 = vst.msk [vmem:[%s237 + $0x8] sm:$0xf] %vm238, %v2464
      %2544 = vst.msk [vmem:[%s237 + $0x10] sm:$0xf0] %vm255, %v2465
      %2545 = vst.msk [vmem:[%s237 + $0x18] sm:$0xf] %vm238, %v2467
      %2546 = vst.msk [vmem:[%s237 + $0x20] sm:$0xf0] %vm255, %v2468
      %2547 = vst.msk [vmem:[%s237 + $0x28] sm:$0xf] %vm238, %v2470
      %2548 = vst.msk [vmem:[%s237 + $0x30] sm:$0xf0] %vm255, %v2471
      %2549 = vst.msk [vmem:[%s237 + $0x38] sm:$0xf] %vm238, %v2473
      %2550 = vst.msk [vmem:[%s237 + $0x40] sm:$0xf0] %vm255, %v2474
      %2551 = vst.msk [vmem:[%s237 + $0x48] sm:$0xf] %vm238, %v2476
      %2552 = vst.msk [vmem:[%s237 + $0x50] sm:$0xf0] %vm255, %v2477
      %2553 = vst.msk [vmem:[%s237 + $0x58] sm:$0xf] %vm238, %v2479
      %2554 = vst.msk [vmem:[%s237 + $0x60] sm:$0xf0] %vm255, %v2480
      %2555 = vst.msk [vmem:[%s237 + $0x68] sm:$0xf] %vm238, %v2482
      %2556 = vst.msk [vmem:[%s237 + $0x70] sm:$0xf0] %vm255, %v2483
      %2557 = vst.msk [vmem:[%s237 + $0x78] sm:$0xf] %vm238, %v2485
      %2558 = vst.msk [vmem:[%s237 + $0x80] sm:$0xf0] %vm255, %v2486
      %2559 = vst.msk [vmem:[%s237 + $0x88] sm:$0xf] %vm238, %v2488
      %2560 = vst.msk [vmem:[%s237 + $0x90] sm:$0xf0] %vm255, %v2489
      %2561 = vst.msk [vmem:[%s237 + $0x98] sm:$0xf] %vm238, %v2491
      %2562 = vst.msk [vmem:[%s237 + $0xa0] sm:$0xf0] %vm255, %v2492
      %2563 = vst.msk [vmem:[%s237 + $0xa8] sm:$0xf] %vm238, %v2494
      %2564 = vst.msk [vmem:[%s237 + $0xb0] sm:$0xf0] %vm255, %v2495
      %2565 = vst.msk [vmem:[%s237 + $0xb8] sm:$0xf] %vm238, %v2497
      %2566 = vst.msk [vmem:[%s237 + $0xc0] sm:$0xf0] %vm255, %v2498
      %2567 = vst.msk [vmem:[%s237 + $0xc8] sm:$0xf] %vm238, %v2500
      %2568 = vst.msk [vmem:[%s237 + $0xd0] sm:$0xf0] %vm255, %v2501
      %2569 = vst.msk [vmem:[%s237 + $0xd8] sm:$0xf] %vm238, %v2503
      %2570 = vst.msk [vmem:[%s237 + $0xe0] sm:$0xf0] %vm255, %v2504
      %2571 = vst.msk [vmem:[%s237 + $0xe8] sm:$0xf] %vm238, %v2506
      %2572 = vst.msk [vmem:[%s237 + $0xf0] sm:$0xf0] %vm255, %v2507
      %2573 = vst.msk [vmem:[%s237 + $0xf8] sm:$0xf] %vm238, %v2509
      %v2574 = vld [vmem:[#allocation2] sm:$0xf8]
      %v2575 = vld [vmem:[#allocation2 + $0x8] sm:$0x1f]
      %v2576 = vld [vmem:[#allocation2 + $0x10] sm:$0xf8]
      %v2577 = vld [vmem:[#allocation2 + $0x18] sm:$0x1f]
      %v2578 = vld [vmem:[#allocation2 + $0x20] sm:$0xf8]
      %v2579 = vld [vmem:[#allocation2 + $0x28] sm:$0x1f]
      %v2580 = vld [vmem:[#allocation2 + $0x30] sm:$0xf8]
      %v2581 = vld [vmem:[#allocation2 + $0x38] sm:$0x1f]
      %v2582 = vld [vmem:[#allocation2 + $0x40] sm:$0xf8]
      %v2583 = vld [vmem:[#allocation2 + $0x48] sm:$0x1f]
      %v2584 = vld [vmem:[#allocation2 + $0x50] sm:$0xf8]
      %v2585 = vld [vmem:[#allocation2 + $0x58] sm:$0x1f]
      %v2586 = vld [vmem:[#allocation2 + $0x60] sm:$0xf8]
      %v2587 = vld [vmem:[#allocation2 + $0x68] sm:$0x1f]
      %v2588 = vld [vmem:[#allocation2 + $0x70] sm:$0xf8]
      %v2589 = vld [vmem:[#allocation2 + $0x78] sm:$0x1f]
      %v2590 = vld [vmem:[#allocation2 + $0x80] sm:$0xf8]
      %v2591 = vld [vmem:[#allocation2 + $0x88] sm:$0x1f]
      %v2592 = vld [vmem:[#allocation2 + $0x90] sm:$0xf8]
      %v2593 = vld [vmem:[#allocation2 + $0x98] sm:$0x1f]
      %v2594 = vld [vmem:[#allocation2 + $0xa0] sm:$0xf8]
      %v2595 = vld [vmem:[#allocation2 + $0xa8] sm:$0x1f]
      %v2596 = vld [vmem:[#allocation2 + $0xb0] sm:$0xf8]
      %v2597 = vld [vmem:[#allocation2 + $0xb8] sm:$0x1f]
      %v2598 = vld [vmem:[#allocation2 + $0xc0] sm:$0xf8]
      %v2599 = vld [vmem:[#allocation2 + $0xc8] sm:$0x1f]
      %v2600 = vld [vmem:[#allocation2 + $0xd0] sm:$0xf8]
      %v2601 = vld [vmem:[#allocation2 + $0xd8] sm:$0x1f]
      %v2602 = vld [vmem:[#allocation2 + $0xe0] sm:$0xf8]
      %v2603 = vld [vmem:[#allocation2 + $0xe8] sm:$0x1f]
      %v2604 = vld [vmem:[#allocation2 + $0xf0] sm:$0xf8]
      %v2605 = vld [vmem:[#allocation2 + $0xf8] sm:$0x1f]
      %v2606 = vld [vmem:[#allocation2 + $0x100] sm:$0xf8]
      %v2607 = vld [vmem:[#allocation2 + $0x108] sm:$0x1f]
      %v2608 = vld [vmem:[#allocation2 + $0x110] sm:$0xf8]
      %v2609 = vld [vmem:[#allocation2 + $0x118] sm:$0x1f]
      %v2610 = vld [vmem:[#allocation2 + $0x120] sm:$0xf8]
      %v2611 = vld [vmem:[#allocation2 + $0x128] sm:$0x1f]
      %v2612 = vld [vmem:[#allocation2 + $0x130] sm:$0xf8]
      %v2613 = vld [vmem:[#allocation2 + $0x138] sm:$0x1f]
      %v2614 = vmax.bf16 %v2574, %v2576
      %v2615 = vmax.bf16 %v2575, %v2577
      %v2616 = vmax.bf16 %v2576, %v2578
      %v2617 = vmax.bf16 %v2577, %v2579
      %v2618 = vmax.bf16 %v2578, %v2580
      %v2619 = vmax.bf16 %v2579, %v2581
      %v2620 = vmax.bf16 %v2580, %v2582
      %v2621 = vmax.bf16 %v2581, %v2583
      %v2622 = vmax.bf16 %v2582, %v2584
      %v2623 = vmax.bf16 %v2583, %v2585
      %v2624 = vmax.bf16 %v2584, %v2586
      %v2625 = vmax.bf16 %v2585, %v2587
      %v2626 = vmax.bf16 %v2586, %v2588
      %v2627 = vmax.bf16 %v2587, %v2589
      %v2628 = vmax.bf16 %v2588, %v2590
      %v2629 = vmax.bf16 %v2589, %v2591
      %v2630 = vmax.bf16 %v2590, %v2592
      %v2631 = vmax.bf16 %v2591, %v2593
      %v2632 = vmax.bf16 %v2592, %v2594
      %v2633 = vmax.bf16 %v2593, %v2595
      %v2634 = vmax.bf16 %v2594, %v2596
      %v2635 = vmax.bf16 %v2595, %v2597
      %v2636 = vmax.bf16 %v2596, %v2598
      %v2637 = vmax.bf16 %v2597, %v2599
      %v2638 = vmax.bf16 %v2598, %v2600
      %v2639 = vmax.bf16 %v2599, %v2601
      %v2640 = vmax.bf16 %v2600, %v2602
      %v2641 = vmax.bf16 %v2601, %v2603
      %v2642 = vmax.bf16 %v2602, %v2604
      %v2643 = vmax.bf16 %v2603, %v2605
      %v2644 = vmax.bf16 %v2604, %v2606
      %v2645 = vmax.bf16 %v2605, %v2607
      %v2646 = vmax.bf16 %v2606, %v2608
      %v2647 = vmax.bf16 %v2607, %v2609
      %v2648 = vmax.bf16 %v2608, %v2610
      %v2649 = vmax.bf16 %v2609, %v2611
      %v2650 = vmax.bf16 %v2610, %v2612
      %v2651 = vmax.bf16 %v2611, %v2613
      %v2652 = vmax.bf16 %v2614, %v2618
      %v2653 = vmax.bf16 %v2615, %v2619
      %v2654 = vmax.bf16 %v2616, %v2620
      %v2655 = vmax.bf16 %v2617, %v2621
      %v2656 = vmax.bf16 %v2618, %v2622
      %v2657 = vmax.bf16 %v2619, %v2623
      %v2658 = vmax.bf16 %v2620, %v2624
      %v2659 = vmax.bf16 %v2621, %v2625
      %v2660 = vmax.bf16 %v2622, %v2626
      %v2661 = vmax.bf16 %v2623, %v2627
      %v2662 = vmax.bf16 %v2624, %v2628
      %v2663 = vmax.bf16 %v2625, %v2629
      %v2664 = vmax.bf16 %v2626, %v2630
      %v2665 = vmax.bf16 %v2627, %v2631
      %v2666 = vmax.bf16 %v2628, %v2632
      %v2667 = vmax.bf16 %v2629, %v2633
      %v2668 = vmax.bf16 %v2630, %v2634
      %v2669 = vmax.bf16 %v2631, %v2635
      %v2670 = vmax.bf16 %v2632, %v2636
      %v2671 = vmax.bf16 %v2633, %v2637
      %v2672 = vmax.bf16 %v2634, %v2638
      %v2673 = vmax.bf16 %v2635, %v2639
      %v2674 = vmax.bf16 %v2636, %v2640
      %v2675 = vmax.bf16 %v2637, %v2641
      %v2676 = vmax.bf16 %v2638, %v2642
      %v2677 = vmax.bf16 %v2639, %v2643
      %v2678 = vmax.bf16 %v2640, %v2644
      %v2679 = vmax.bf16 %v2641, %v2645
      %v2680 = vmax.bf16 %v2642, %v2646
      %v2681 = vmax.bf16 %v2643, %v2647
      %v2682 = vmax.bf16 %v2644, %v2648
      %v2683 = vmax.bf16 %v2645, %v2649
      %v2684 = vmax.bf16 %v2646, %v2650
      %v2685 = vmax.bf16 %v2647, %v2651
      %v2686 = vmax.bf16 %v2652, %v2654
      %v2687 = vmax.bf16 %v2653, %v2655
      %v2688 = vmax.bf16 %v2654, %v2656
      %v2689 = vmax.bf16 %v2655, %v2657
      %v2690 = vmax.bf16 %v2656, %v2658
      %v2691 = vmax.bf16 %v2657, %v2659
      %v2692 = vmax.bf16 %v2658, %v2660
      %v2693 = vmax.bf16 %v2659, %v2661
      %v2694 = vmax.bf16 %v2660, %v2662
      %v2695 = vmax.bf16 %v2661, %v2663
      %v2696 = vmax.bf16 %v2662, %v2664
      %v2697 = vmax.bf16 %v2663, %v2665
      %v2698 = vmax.bf16 %v2664, %v2666
      %v2699 = vmax.bf16 %v2665, %v2667
      %v2700 = vmax.bf16 %v2666, %v2668
      %v2701 = vmax.bf16 %v2667, %v2669
      %v2702 = vmax.bf16 %v2668, %v2670
      %v2703 = vmax.bf16 %v2669, %v2671
      %v2704 = vmax.bf16 %v2670, %v2672
      %v2705 = vmax.bf16 %v2671, %v2673
      %v2706 = vmax.bf16 %v2672, %v2674
      %v2707 = vmax.bf16 %v2673, %v2675
      %v2708 = vmax.bf16 %v2674, %v2676
      %v2709 = vmax.bf16 %v2675, %v2677
      %v2710 = vmax.bf16 %v2676, %v2678
      %v2711 = vmax.bf16 %v2677, %v2679
      %v2712 = vmax.bf16 %v2678, %v2680
      %v2713 = vmax.bf16 %v2679, %v2681
      %v2714 = vmax.bf16 %v2680, %v2682
      %v2715 = vmax.bf16 %v2681, %v2683
      %v2716 = vmax.bf16 %v2682, %v2684
      %v2717 = vmax.bf16 %v2683, %v2685
      %v2719 = vshrl.u32 %v2686, 16
      %v2721 = vshll.u32 %v2686, 16
      %v2723 = vrot.slane %v2721, 1
      %v2724 = vor.u32 %v2719, %v2723
      %v2726 = vshll.u32 %v2687, 16
      %v2728 = vrot.slane %v2726, 1
      %v2729 = vsel %vm1316, %v2724, %v2728
      %v2730 = vshrl.u32 %v2687, 16
      %v2732 = vor.u32 %v2730, %v2728
      %v2734 = vshrl.u32 %v2688, 16
      %v2736 = vshll.u32 %v2688, 16
      %v2738 = vrot.slane %v2736, 1
      %v2739 = vor.u32 %v2734, %v2738
      %v2741 = vshll.u32 %v2689, 16
      %v2743 = vrot.slane %v2741, 1
      %v2744 = vsel %vm1316, %v2739, %v2743
      %v2745 = vshrl.u32 %v2689, 16
      %v2747 = vor.u32 %v2745, %v2743
      %v2749 = vshrl.u32 %v2690, 16
      %v2751 = vshll.u32 %v2690, 16
      %v2753 = vrot.slane %v2751, 1
      %v2754 = vor.u32 %v2749, %v2753
      %v2756 = vshll.u32 %v2691, 16
      %v2758 = vrot.slane %v2756, 1
      %v2759 = vsel %vm1316, %v2754, %v2758
      %v2760 = vshrl.u32 %v2691, 16
      %v2762 = vor.u32 %v2760, %v2758
      %v2764 = vshrl.u32 %v2692, 16
      %v2766 = vshll.u32 %v2692, 16
      %v2768 = vrot.slane %v2766, 1
      %v2769 = vor.u32 %v2764, %v2768
      %v2771 = vshll.u32 %v2693, 16
      %v2773 = vrot.slane %v2771, 1
      %v2774 = vsel %vm1316, %v2769, %v2773
      %v2775 = vshrl.u32 %v2693, 16
      %v2777 = vor.u32 %v2775, %v2773
      %v2779 = vshrl.u32 %v2694, 16
      %v2781 = vshll.u32 %v2694, 16
      %v2783 = vrot.slane %v2781, 1
      %v2784 = vor.u32 %v2779, %v2783
      %v2786 = vshll.u32 %v2695, 16
      %v2788 = vrot.slane %v2786, 1
      %v2789 = vsel %vm1316, %v2784, %v2788
      %v2790 = vshrl.u32 %v2695, 16
      %v2792 = vor.u32 %v2790, %v2788
      %v2794 = vshrl.u32 %v2696, 16
      %v2796 = vshll.u32 %v2696, 16
      %v2798 = vrot.slane %v2796, 1
      %v2799 = vor.u32 %v2794, %v2798
      %v2801 = vshll.u32 %v2697, 16
      %v2803 = vrot.slane %v2801, 1
      %v2804 = vsel %vm1316, %v2799, %v2803
      %v2805 = vshrl.u32 %v2697, 16
      %v2807 = vor.u32 %v2805, %v2803
      %v2809 = vshrl.u32 %v2698, 16
      %v2811 = vshll.u32 %v2698, 16
      %v2813 = vrot.slane %v2811, 1
      %v2814 = vor.u32 %v2809, %v2813
      %v2816 = vshll.u32 %v2699, 16
      %v2818 = vrot.slane %v2816, 1
      %v2819 = vsel %vm1316, %v2814, %v2818
      %v2820 = vshrl.u32 %v2699, 16
      %v2822 = vor.u32 %v2820, %v2818
      %v2824 = vshrl.u32 %v2700, 16
      %v2826 = vshll.u32 %v2700, 16
      %v2828 = vrot.slane %v2826, 1
      %v2829 = vor.u32 %v2824, %v2828
      %v2831 = vshll.u32 %v2701, 16
      %v2833 = vrot.slane %v2831, 1
      %v2834 = vsel %vm1316, %v2829, %v2833
      %v2835 = vshrl.u32 %v2701, 16
      %v2837 = vor.u32 %v2835, %v2833
      %v2839 = vshrl.u32 %v2702, 16
      %v2841 = vshll.u32 %v2702, 16
      %v2843 = vrot.slane %v2841, 1
      %v2844 = vor.u32 %v2839, %v2843
      %v2846 = vshll.u32 %v2703, 16
      %v2848 = vrot.slane %v2846, 1
      %v2849 = vsel %vm1316, %v2844, %v2848
      %v2850 = vshrl.u32 %v2703, 16
      %v2852 = vor.u32 %v2850, %v2848
      %v2854 = vshrl.u32 %v2704, 16
      %v2856 = vshll.u32 %v2704, 16
      %v2858 = vrot.slane %v2856, 1
      %v2859 = vor.u32 %v2854, %v2858
      %v2861 = vshll.u32 %v2705, 16
      %v2863 = vrot.slane %v2861, 1
      %v2864 = vsel %vm1316, %v2859, %v2863
      %v2865 = vshrl.u32 %v2705, 16
      %v2867 = vor.u32 %v2865, %v2863
      %v2869 = vshrl.u32 %v2706, 16
      %v2871 = vshll.u32 %v2706, 16
      %v2873 = vrot.slane %v2871, 1
      %v2874 = vor.u32 %v2869, %v2873
      %v2876 = vshll.u32 %v2707, 16
      %v2878 = vrot.slane %v2876, 1
      %v2879 = vsel %vm1316, %v2874, %v2878
      %v2880 = vshrl.u32 %v2707, 16
      %v2882 = vor.u32 %v2880, %v2878
      %v2884 = vshrl.u32 %v2708, 16
      %v2886 = vshll.u32 %v2708, 16
      %v2888 = vrot.slane %v2886, 1
      %v2889 = vor.u32 %v2884, %v2888
      %v2891 = vshll.u32 %v2709, 16
      %v2893 = vrot.slane %v2891, 1
      %v2894 = vsel %vm1316, %v2889, %v2893
      %v2895 = vshrl.u32 %v2709, 16
      %v2897 = vor.u32 %v2895, %v2893
      %v2899 = vshrl.u32 %v2710, 16
      %v2901 = vshll.u32 %v2710, 16
      %v2903 = vrot.slane %v2901, 1
      %v2904 = vor.u32 %v2899, %v2903
      %v2906 = vshll.u32 %v2711, 16
      %v2908 = vrot.slane %v2906, 1
      %v2909 = vsel %vm1316, %v2904, %v2908
      %v2910 = vshrl.u32 %v2711, 16
      %v2912 = vor.u32 %v2910, %v2908
      %v2914 = vshrl.u32 %v2712, 16
      %v2916 = vshll.u32 %v2712, 16
      %v2918 = vrot.slane %v2916, 1
      %v2919 = vor.u32 %v2914, %v2918
      %v2921 = vshll.u32 %v2713, 16
      %v2923 = vrot.slane %v2921, 1
      %v2924 = vsel %vm1316, %v2919, %v2923
      %v2925 = vshrl.u32 %v2713, 16
      %v2927 = vor.u32 %v2925, %v2923
      %v2929 = vshrl.u32 %v2714, 16
      %v2931 = vshll.u32 %v2714, 16
      %v2933 = vrot.slane %v2931, 1
      %v2934 = vor.u32 %v2929, %v2933
      %v2936 = vshll.u32 %v2715, 16
      %v2938 = vrot.slane %v2936, 1
      %v2939 = vsel %vm1316, %v2934, %v2938
      %v2940 = vshrl.u32 %v2715, 16
      %v2942 = vor.u32 %v2940, %v2938
      %v2944 = vshrl.u32 %v2716, 16
      %v2946 = vshll.u32 %v2716, 16
      %v2948 = vrot.slane %v2946, 1
      %v2949 = vor.u32 %v2944, %v2948
      %v2951 = vshll.u32 %v2717, 16
      %v2953 = vrot.slane %v2951, 1
      %v2954 = vsel %vm1316, %v2949, %v2953
      %v2955 = vshrl.u32 %v2717, 16
      %v2957 = vor.u32 %v2955, %v2953
      %v2990 = vmax.bf16 %v2686, %v2729
      %v2991 = vmax.bf16 %v2687, %v2732
      %v2992 = vmax.bf16 %v2688, %v2744
      %v2993 = vmax.bf16 %v2689, %v2747
      %v2994 = vmax.bf16 %v2690, %v2759
      %v2995 = vmax.bf16 %v2691, %v2762
      %v2996 = vmax.bf16 %v2692, %v2774
      %v2997 = vmax.bf16 %v2693, %v2777
      %v2998 = vmax.bf16 %v2694, %v2789
      %v2999 = vmax.bf16 %v2695, %v2792
      %v3000 = vmax.bf16 %v2696, %v2804
      %v3001 = vmax.bf16 %v2697, %v2807
      %v3002 = vmax.bf16 %v2698, %v2819
      %v3003 = vmax.bf16 %v2699, %v2822
      %v3004 = vmax.bf16 %v2700, %v2834
      %v3005 = vmax.bf16 %v2701, %v2837
      %v3006 = vmax.bf16 %v2702, %v2849
      %v3007 = vmax.bf16 %v2703, %v2852
      %v3008 = vmax.bf16 %v2704, %v2864
      %v3009 = vmax.bf16 %v2705, %v2867
      %v3010 = vmax.bf16 %v2706, %v2879
      %v3011 = vmax.bf16 %v2707, %v2882
      %v3012 = vmax.bf16 %v2708, %v2894
      %v3013 = vmax.bf16 %v2709, %v2897
      %v3014 = vmax.bf16 %v2710, %v2909
      %v3015 = vmax.bf16 %v2711, %v2912
      %v3016 = vmax.bf16 %v2712, %v2924
      %v3017 = vmax.bf16 %v2713, %v2927
      %v3018 = vmax.bf16 %v2714, %v2939
      %v3019 = vmax.bf16 %v2715, %v2942
      %v3020 = vmax.bf16 %v2716, %v2954
      %v3021 = vmax.bf16 %v2717, %v2957
      %v3054 = vrot.slane %v2990, 1
      %v3055 = vrot.slane %v2991, 1
      %v3056 = vsel %vm1653, %v3054, %v3055
      %v3057 = vrot.slane %v2992, 1
      %v3058 = vrot.slane %v2993, 1
      %v3059 = vsel %vm1653, %v3057, %v3058
      %v3060 = vrot.slane %v2994, 1
      %v3061 = vrot.slane %v2995, 1
      %v3062 = vsel %vm1653, %v3060, %v3061
      %v3063 = vrot.slane %v2996, 1
      %v3064 = vrot.slane %v2997, 1
      %v3065 = vsel %vm1653, %v3063, %v3064
      %v3066 = vrot.slane %v2998, 1
      %v3067 = vrot.slane %v2999, 1
      %v3068 = vsel %vm1653, %v3066, %v3067
      %v3069 = vrot.slane %v3000, 1
      %v3070 = vrot.slane %v3001, 1
      %v3071 = vsel %vm1653, %v3069, %v3070
      %v3072 = vrot.slane %v3002, 1
      %v3073 = vrot.slane %v3003, 1
      %v3074 = vsel %vm1653, %v3072, %v3073
      %v3075 = vrot.slane %v3004, 1
      %v3076 = vrot.slane %v3005, 1
      %v3077 = vsel %vm1653, %v3075, %v3076
      %v3078 = vrot.slane %v3006, 1
      %v3079 = vrot.slane %v3007, 1
      %v3080 = vsel %vm1653, %v3078, %v3079
      %v3081 = vrot.slane %v3008, 1
      %v3082 = vrot.slane %v3009, 1
      %v3083 = vsel %vm1653, %v3081, %v3082
      %v3084 = vrot.slane %v3010, 1
      %v3085 = vrot.slane %v3011, 1
      %v3086 = vsel %vm1653, %v3084, %v3085
      %v3087 = vrot.slane %v3012, 1
      %v3088 = vrot.slane %v3013, 1
      %v3089 = vsel %vm1653, %v3087, %v3088
      %v3090 = vrot.slane %v3014, 1
      %v3091 = vrot.slane %v3015, 1
      %v3092 = vsel %vm1653, %v3090, %v3091
      %v3093 = vrot.slane %v3016, 1
      %v3094 = vrot.slane %v3017, 1
      %v3095 = vsel %vm1653, %v3093, %v3094
      %v3096 = vrot.slane %v3018, 1
      %v3097 = vrot.slane %v3019, 1
      %v3098 = vsel %vm1653, %v3096, %v3097
      %v3099 = vrot.slane %v3020, 1
      %v3100 = vrot.slane %v3021, 1
      %v3101 = vsel %vm1653, %v3099, %v3100
      %v3134 = vmax.bf16 %v2990, %v3056
      %v3135 = vmax.bf16 %v2991, %v3055
      %v3136 = vmax.bf16 %v2992, %v3059
      %v3137 = vmax.bf16 %v2993, %v3058
      %v3138 = vmax.bf16 %v2994, %v3062
      %v3139 = vmax.bf16 %v2995, %v3061
      %v3140 = vmax.bf16 %v2996, %v3065
      %v3141 = vmax.bf16 %v2997, %v3064
      %v3142 = vmax.bf16 %v2998, %v3068
      %v3143 = vmax.bf16 %v2999, %v3067
      %v3144 = vmax.bf16 %v3000, %v3071
      %v3145 = vmax.bf16 %v3001, %v3070
      %v3146 = vmax.bf16 %v3002, %v3074
      %v3147 = vmax.bf16 %v3003, %v3073
      %v3148 = vmax.bf16 %v3004, %v3077
      %v3149 = vmax.bf16 %v3005, %v3076
      %v3150 = vmax.bf16 %v3006, %v3080
      %v3151 = vmax.bf16 %v3007, %v3079
      %v3152 = vmax.bf16 %v3008, %v3083
      %v3153 = vmax.bf16 %v3009, %v3082
      %v3154 = vmax.bf16 %v3010, %v3086
      %v3155 = vmax.bf16 %v3011, %v3085
      %v3156 = vmax.bf16 %v3012, %v3089
      %v3157 = vmax.bf16 %v3013, %v3088
      %v3158 = vmax.bf16 %v3014, %v3092
      %v3159 = vmax.bf16 %v3015, %v3091
      %v3160 = vmax.bf16 %v3016, %v3095
      %v3161 = vmax.bf16 %v3017, %v3094
      %v3162 = vmax.bf16 %v3018, %v3098
      %v3163 = vmax.bf16 %v3019, %v3097
      %v3164 = vmax.bf16 %v3020, %v3101
      %v3165 = vmax.bf16 %v3021, %v3100
      %v3167 = vshrl.u32 %v3134, 16
      %v3169 = vshll.u32 %v3134, 16
      %v3171 = vrot.slane %v3169, 1
      %v3172 = vor.u32 %v3167, %v3171
      %v3174 = vshll.u32 %v3135, 16
      %v3176 = vrot.slane %v3174, 1
      %v3177 = vsel %vm1316, %v3172, %v3176
      %v3178 = vshrl.u32 %v3135, 16
      %v3180 = vor.u32 %v3178, %v3176
      %v3182 = vshrl.u32 %v3136, 16
      %v3184 = vshll.u32 %v3136, 16
      %v3186 = vrot.slane %v3184, 1
      %v3187 = vor.u32 %v3182, %v3186
      %v3189 = vshll.u32 %v3137, 16
      %v3191 = vrot.slane %v3189, 1
      %v3192 = vsel %vm1316, %v3187, %v3191
      %v3193 = vshrl.u32 %v3137, 16
      %v3195 = vor.u32 %v3193, %v3191
      %v3197 = vshrl.u32 %v3138, 16
      %v3199 = vshll.u32 %v3138, 16
      %v3201 = vrot.slane %v3199, 1
      %v3202 = vor.u32 %v3197, %v3201
      %v3204 = vshll.u32 %v3139, 16
      %v3206 = vrot.slane %v3204, 1
      %v3207 = vsel %vm1316, %v3202, %v3206
      %v3208 = vshrl.u32 %v3139, 16
      %v3210 = vor.u32 %v3208, %v3206
      %v3212 = vshrl.u32 %v3140, 16
      %v3214 = vshll.u32 %v3140, 16
      %v3216 = vrot.slane %v3214, 1
      %v3217 = vor.u32 %v3212, %v3216
      %v3219 = vshll.u32 %v3141, 16
      %v3221 = vrot.slane %v3219, 1
      %v3222 = vsel %vm1316, %v3217, %v3221
      %v3223 = vshrl.u32 %v3141, 16
      %v3225 = vor.u32 %v3223, %v3221
      %v3227 = vshrl.u32 %v3142, 16
      %v3229 = vshll.u32 %v3142, 16
      %v3231 = vrot.slane %v3229, 1
      %v3232 = vor.u32 %v3227, %v3231
      %v3234 = vshll.u32 %v3143, 16
      %v3236 = vrot.slane %v3234, 1
      %v3237 = vsel %vm1316, %v3232, %v3236
      %v3238 = vshrl.u32 %v3143, 16
      %v3240 = vor.u32 %v3238, %v3236
      %v3242 = vshrl.u32 %v3144, 16
      %v3244 = vshll.u32 %v3144, 16
      %v3246 = vrot.slane %v3244, 1
      %v3247 = vor.u32 %v3242, %v3246
      %v3249 = vshll.u32 %v3145, 16
      %v3251 = vrot.slane %v3249, 1
      %v3252 = vsel %vm1316, %v3247, %v3251
      %v3253 = vshrl.u32 %v3145, 16
      %v3255 = vor.u32 %v3253, %v3251
      %v3257 = vshrl.u32 %v3146, 16
      %v3259 = vshll.u32 %v3146, 16
      %v3261 = vrot.slane %v3259, 1
      %v3262 = vor.u32 %v3257, %v3261
      %v3264 = vshll.u32 %v3147, 16
      %v3266 = vrot.slane %v3264, 1
      %v3267 = vsel %vm1316, %v3262, %v3266
      %v3268 = vshrl.u32 %v3147, 16
      %v3270 = vor.u32 %v3268, %v3266
      %v3272 = vshrl.u32 %v3148, 16
      %v3274 = vshll.u32 %v3148, 16
      %v3276 = vrot.slane %v3274, 1
      %v3277 = vor.u32 %v3272, %v3276
      %v3279 = vshll.u32 %v3149, 16
      %v3281 = vrot.slane %v3279, 1
      %v3282 = vsel %vm1316, %v3277, %v3281
      %v3283 = vshrl.u32 %v3149, 16
      %v3285 = vor.u32 %v3283, %v3281
      %v3287 = vshrl.u32 %v3150, 16
      %v3289 = vshll.u32 %v3150, 16
      %v3291 = vrot.slane %v3289, 1
      %v3292 = vor.u32 %v3287, %v3291
      %v3294 = vshll.u32 %v3151, 16
      %v3296 = vrot.slane %v3294, 1
      %v3297 = vsel %vm1316, %v3292, %v3296
      %v3298 = vshrl.u32 %v3151, 16
      %v3300 = vor.u32 %v3298, %v3296
      %v3302 = vshrl.u32 %v3152, 16
      %v3304 = vshll.u32 %v3152, 16
      %v3306 = vrot.slane %v3304, 1
      %v3307 = vor.u32 %v3302, %v3306
      %v3309 = vshll.u32 %v3153, 16
      %v3311 = vrot.slane %v3309, 1
      %v3312 = vsel %vm1316, %v3307, %v3311
      %v3313 = vshrl.u32 %v3153, 16
      %v3315 = vor.u32 %v3313, %v3311
      %v3317 = vshrl.u32 %v3154, 16
      %v3319 = vshll.u32 %v3154, 16
      %v3321 = vrot.slane %v3319, 1
      %v3322 = vor.u32 %v3317, %v3321
      %v3324 = vshll.u32 %v3155, 16
      %v3326 = vrot.slane %v3324, 1
      %v3327 = vsel %vm1316, %v3322, %v3326
      %v3328 = vshrl.u32 %v3155, 16
      %v3330 = vor.u32 %v3328, %v3326
      %v3332 = vshrl.u32 %v3156, 16
      %v3334 = vshll.u32 %v3156, 16
      %v3336 = vrot.slane %v3334, 1
      %v3337 = vor.u32 %v3332, %v3336
      %v3339 = vshll.u32 %v3157, 16
      %v3341 = vrot.slane %v3339, 1
      %v3342 = vsel %vm1316, %v3337, %v3341
      %v3343 = vshrl.u32 %v3157, 16
      %v3345 = vor.u32 %v3343, %v3341
      %v3347 = vshrl.u32 %v3158, 16
      %v3349 = vshll.u32 %v3158, 16
      %v3351 = vrot.slane %v3349, 1
      %v3352 = vor.u32 %v3347, %v3351
      %v3354 = vshll.u32 %v3159, 16
      %v3356 = vrot.slane %v3354, 1
      %v3357 = vsel %vm1316, %v3352, %v3356
      %v3358 = vshrl.u32 %v3159, 16
      %v3360 = vor.u32 %v3358, %v3356
      %v3362 = vshrl.u32 %v3160, 16
      %v3364 = vshll.u32 %v3160, 16
      %v3366 = vrot.slane %v3364, 1
      %v3367 = vor.u32 %v3362, %v3366
      %v3369 = vshll.u32 %v3161, 16
      %v3371 = vrot.slane %v3369, 1
      %v3372 = vsel %vm1316, %v3367, %v3371
      %v3373 = vshrl.u32 %v3161, 16
      %v3375 = vor.u32 %v3373, %v3371
      %v3377 = vshrl.u32 %v3162, 16
      %v3379 = vshll.u32 %v3162, 16
      %v3381 = vrot.slane %v3379, 1
      %v3382 = vor.u32 %v3377, %v3381
      %v3384 = vshll.u32 %v3163, 16
      %v3386 = vrot.slane %v3384, 1
      %v3387 = vsel %vm1316, %v3382, %v3386
      %v3388 = vshrl.u32 %v3163, 16
      %v3390 = vor.u32 %v3388, %v3386
      %v3392 = vshrl.u32 %v3164, 16
      %v3394 = vshll.u32 %v3164, 16
      %v3396 = vrot.slane %v3394, 1
      %v3397 = vor.u32 %v3392, %v3396
      %v3399 = vshll.u32 %v3165, 16
      %v3401 = vrot.slane %v3399, 1
      %v3402 = vsel %vm1316, %v3397, %v3401
      %v3403 = vshrl.u32 %v3165, 16
      %v3405 = vor.u32 %v3403, %v3401
      %v3438 = vmax.bf16 %v3134, %v3177
      %v3439 = vmax.bf16 %v3135, %v3180
      %v3440 = vmax.bf16 %v3136, %v3192
      %v3441 = vmax.bf16 %v3137, %v3195
      %v3442 = vmax.bf16 %v3138, %v3207
      %v3443 = vmax.bf16 %v3139, %v3210
      %v3444 = vmax.bf16 %v3140, %v3222
      %v3445 = vmax.bf16 %v3141, %v3225
      %v3446 = vmax.bf16 %v3142, %v3237
      %v3447 = vmax.bf16 %v3143, %v3240
      %v3448 = vmax.bf16 %v3144, %v3252
      %v3449 = vmax.bf16 %v3145, %v3255
      %v3450 = vmax.bf16 %v3146, %v3267
      %v3451 = vmax.bf16 %v3147, %v3270
      %v3452 = vmax.bf16 %v3148, %v3282
      %v3453 = vmax.bf16 %v3149, %v3285
      %v3454 = vmax.bf16 %v3150, %v3297
      %v3455 = vmax.bf16 %v3151, %v3300
      %v3456 = vmax.bf16 %v3152, %v3312
      %v3457 = vmax.bf16 %v3153, %v3315
      %v3458 = vmax.bf16 %v3154, %v3327
      %v3459 = vmax.bf16 %v3155, %v3330
      %v3460 = vmax.bf16 %v3156, %v3342
      %v3461 = vmax.bf16 %v3157, %v3345
      %v3462 = vmax.bf16 %v3158, %v3357
      %v3463 = vmax.bf16 %v3159, %v3360
      %v3464 = vmax.bf16 %v3160, %v3372
      %v3465 = vmax.bf16 %v3161, %v3375
      %v3466 = vmax.bf16 %v3162, %v3387
      %v3467 = vmax.bf16 %v3163, %v3390
      %v3468 = vmax.bf16 %v3164, %v3402
      %v3469 = vmax.bf16 %v3165, %v3405
      %v3470 = vld [vmem:[#allocation3] sm:$0xff]
      %v3471 = vld [vmem:[#allocation3 + $0x8] sm:$0xff]
      %v3472 = vld [vmem:[#allocation3 + $0x10] sm:$0xff]
      %v3473 = vld [vmem:[#allocation3 + $0x18] sm:$0xff]
      %v3474 = vld [vmem:[#allocation3 + $0x20] sm:$0xff]
      %v3475 = vld [vmem:[#allocation3 + $0x28] sm:$0xff]
      %v3476 = vld [vmem:[#allocation3 + $0x30] sm:$0xff]
      %v3477 = vld [vmem:[#allocation3 + $0x38] sm:$0xff]
      %v3478 = vld [vmem:[#allocation3 + $0x40] sm:$0xff]
      %v3479 = vld [vmem:[#allocation3 + $0x48] sm:$0xff]
      %v3480 = vld [vmem:[#allocation3 + $0x50] sm:$0xff]
      %v3481 = vld [vmem:[#allocation3 + $0x58] sm:$0xff]
      %v3482 = vld [vmem:[#allocation3 + $0x60] sm:$0xff]
      %v3483 = vld [vmem:[#allocation3 + $0x68] sm:$0xff]
      %v3484 = vld [vmem:[#allocation3 + $0x70] sm:$0xff]
      %v3485 = vld [vmem:[#allocation3 + $0x78] sm:$0xff]
      %v3486 = vld [vmem:[#allocation3 + $0x80] sm:$0xff]
      %v3487 = vld [vmem:[#allocation3 + $0x88] sm:$0xff]
      %v3488 = vld [vmem:[#allocation3 + $0x90] sm:$0xff]
      %v3489 = vld [vmem:[#allocation3 + $0x98] sm:$0xff]
      %v3490 = vld [vmem:[#allocation3 + $0xa0] sm:$0xff]
      %v3491 = vld [vmem:[#allocation3 + $0xa8] sm:$0xff]
      %v3492 = vld [vmem:[#allocation3 + $0xb0] sm:$0xff]
      %v3493 = vld [vmem:[#allocation3 + $0xb8] sm:$0xff]
      %v3494 = vld [vmem:[#allocation3 + $0xc0] sm:$0xff]
      %v3495 = vld [vmem:[#allocation3 + $0xc8] sm:$0xff]
      %v3496 = vld [vmem:[#allocation3 + $0xd0] sm:$0xff]
      %v3497 = vld [vmem:[#allocation3 + $0xd8] sm:$0xff]
      %v3498 = vld [vmem:[#allocation3 + $0xe0] sm:$0xff]
      %v3499 = vld [vmem:[#allocation3 + $0xe8] sm:$0xff]
      %v3500 = vld [vmem:[#allocation3 + $0xf0] sm:$0xff]
      %v3501 = vld [vmem:[#allocation3 + $0xf8] sm:$0xff]
      %v3534 = vrot.slane %v3438, 3
      %v3535 = vrot.slane %v3439, 3
      %v3536 = vsel %vm2134, %v3534, %v3535
      %v3537 = vrot.slane %v3440, 3
      %v3538 = vrot.slane %v3441, 3
      %v3539 = vsel %vm2134, %v3537, %v3538
      %v3540 = vrot.slane %v3442, 3
      %v3541 = vrot.slane %v3443, 3
      %v3542 = vsel %vm2134, %v3540, %v3541
      %v3543 = vrot.slane %v3444, 3
      %v3544 = vrot.slane %v3445, 3
      %v3545 = vsel %vm2134, %v3543, %v3544
      %v3546 = vrot.slane %v3446, 3
      %v3547 = vrot.slane %v3447, 3
      %v3548 = vsel %vm2134, %v3546, %v3547
      %v3549 = vrot.slane %v3448, 3
      %v3550 = vrot.slane %v3449, 3
      %v3551 = vsel %vm2134, %v3549, %v3550
      %v3552 = vrot.slane %v3450, 3
      %v3553 = vrot.slane %v3451, 3
      %v3554 = vsel %vm2134, %v3552, %v3553
      %v3555 = vrot.slane %v3452, 3
      %v3556 = vrot.slane %v3453, 3
      %v3557 = vsel %vm2134, %v3555, %v3556
      %v3558 = vrot.slane %v3454, 3
      %v3559 = vrot.slane %v3455, 3
      %v3560 = vsel %vm2134, %v3558, %v3559
      %v3561 = vrot.slane %v3456, 3
      %v3562 = vrot.slane %v3457, 3
      %v3563 = vsel %vm2134, %v3561, %v3562
      %v3564 = vrot.slane %v3458, 3
      %v3565 = vrot.slane %v3459, 3
      %v3566 = vsel %vm2134, %v3564, %v3565
      %v3567 = vrot.slane %v3460, 3
      %v3568 = vrot.slane %v3461, 3
      %v3569 = vsel %vm2134, %v3567, %v3568
      %v3570 = vrot.slane %v3462, 3
      %v3571 = vrot.slane %v3463, 3
      %v3572 = vsel %vm2134, %v3570, %v3571
      %v3573 = vrot.slane %v3464, 3
      %v3574 = vrot.slane %v3465, 3
      %v3575 = vsel %vm2134, %v3573, %v3574
      %v3576 = vrot.slane %v3466, 3
      %v3577 = vrot.slane %v3467, 3
      %v3578 = vsel %vm2134, %v3576, %v3577
      %v3579 = vrot.slane %v3468, 3
      %v3580 = vrot.slane %v3469, 3
      %v3581 = vsel %vm2134, %v3579, %v3580
      %s3582 = scalar_lea.vmem %s3, 4
      %v3583 = vld [vmem:[%s3582] sm:$0x3]
      %v3585 = vsel %vm227, %v3536, 0
      %v3588 = vsel %vm227, %v3539, 0
      %v3591 = vsel %vm227, %v3542, 0
      %v3594 = vsel %vm227, %v3545, 0
      %v3597 = vsel %vm227, %v3548, 0
      %v3600 = vsel %vm227, %v3551, 0
      %v3603 = vsel %vm227, %v3554, 0
      %v3606 = vsel %vm227, %v3557, 0
      %v3609 = vsel %vm227, %v3560, 0
      %v3612 = vsel %vm227, %v3563, 0
      %v3615 = vsel %vm227, %v3566, 0
      %v3618 = vsel %vm227, %v3569, 0
      %v3621 = vsel %vm227, %v3572, 0
      %v3624 = vsel %vm227, %v3575, 0
      %v3627 = vsel %vm227, %v3578, 0
      %v3630 = vsel %vm227, %v3581, 0
      %v3633 = vsel %vm895, %v3583, 0
      %3635 = vmatprep.subr.bf16.mxu0 0
      %3636 = vmatpush1.bf16.msra.mxu0 %v3633
      %3637 = vmatprep.subr.bf16.mxu0 0
      %3638 = vmatpush1.bf16.msra.mxu0 0
      %3639 = vmatprep.subr.bf16.mxu0 0
      %3640 = vmatpush1.bf16.msra.mxu0 0
      %3641 = vmatprep.subr.bf16.mxu0 0
      %3642 = vmatpush1.bf16.msra.mxu0 0
      %3643 = vmatprep.subr.bf16.mxu0 0
      %3644 = vmatpush1.bf16.msra.mxu0 0
      %3645 = vmatprep.subr.bf16.mxu0 0
      %3646 = vmatpush1.bf16.msra.mxu0 0
      %3647 = vmatprep.subr.bf16.mxu0 0
      %3648 = vmatpush1.bf16.msra.mxu0 0
      %3649 = vmatprep.subr.bf16.mxu0 0
      %3650 = vmatpush1.bf16.msra.mxu0 0
      %3651 = vmatprep.subr.bf16.mxu0 0
      %3652 = vmatpush1.bf16.msra.mxu0 0
      %3653 = vmatprep.subr.bf16.mxu0 0
      %3654 = vmatpush1.bf16.msra.mxu0 0
      %3655 = vmatprep.subr.bf16.mxu0 0
      %3656 = vmatpush1.bf16.msra.mxu0 0
      %3657 = vmatprep.subr.bf16.mxu0 0
      %3658 = vmatpush1.bf16.msra.mxu0 0
      %3659 = vmatprep.subr.bf16.mxu0 0
      %3660 = vmatpush1.bf16.msra.mxu0 0
      %3661 = vmatprep.subr.bf16.mxu0 0
      %3662 = vmatpush1.bf16.msra.mxu0 0
      %3663 = vmatprep.subr.bf16.mxu0 0
      %3664 = vmatpush1.bf16.msra.mxu0 0
      %3665 = vmatprep.subr.bf16.mxu0 0
      %3666 = vmatpush1.bf16.msra.mxu0 0
      %3667 = vmatprep.mubr.bf16.mxu0 0
      %3668 = vmatmul.mubr.bf16.gmra.mrb[0].mxu0 %v3585
      %v3669 = vpop.f32.mrb[0].mxu0
      %v3670 = vadd.f32 0.0, %v3669
      %v3671 = vpop.f32.mrb[0].mxu0
      %v3672 = vpop.f32.mrb[0].mxu0
      %v3673 = vadd.f32 0.0, %v3672
      %v3674 = vpop.f32.mrb[0].mxu0
      %3675 = vmatprep.mubr.bf16.mxu0 0
      %3676 = vmatmul.mubr.bf16.gmra.mrb[0].mxu0 %v3588
      %v3677 = vpop.f32.mrb[0].mxu0
      %v3678 = vadd.f32 0.0, %v3677
      %v3679 = vpop.f32.mrb[0].mxu0
      %v3680 = vpop.f32.mrb[0].mxu0
      %v3681 = vadd.f32 0.0, %v3680
      %v3682 = vpop.f32.mrb[0].mxu0
      %3683 = vmatprep.mubr.bf16.mxu0 0
      %3684 = vmatmul.mubr.bf16.gmra.mrb[0].mxu0 %v3591
      %v3685 = vpop.f32.mrb[0].mxu0
      %v3686 = vadd.f32 0.0, %v3685
      %v3687 = vpop.f32.mrb[0].mxu0
      %v3688 = vpop.f32.mrb[0].mxu0
      %v3689 = vadd.f32 0.0, %v3688
      %v3690 = vpop.f32.mrb[0].mxu0
      %3691 = vmatprep.mubr.bf16.mxu0 0
      %3692 = vmatmul.mubr.bf16.gmra.mrb[0].mxu0 %v3594
      %v3693 = vpop.f32.mrb[0].mxu0
      %v3694 = vadd.f32 0.0, %v3693
      %v3695 = vpop.f32.mrb[0].mxu0
      %v3696 = vpop.f32.mrb[0].mxu0
      %v3697 = vadd.f32 0.0, %v3696
      %v3698 = vpop.f32.mrb[0].mxu0
      %3699 = vmatprep.mubr.bf16.mxu0 0
      %3700 = vmatmul.mubr.bf16.gmra.mrb[0].mxu0 %v3597
      %v3701 = vpop.f32.mrb[0].mxu0
      %v3702 = vadd.f32 0.0, %v3701
      %v3703 = vpop.f32.mrb[0].mxu0
      %v3704 = vpop.f32.mrb[0].mxu0
      %v3705 = vadd.f32 0.0, %v3704
      %v3706 = vpop.f32.mrb[0].mxu0
      %3707 = vmatprep.mubr.bf16.mxu0 0
      %3708 = vmatmul.mubr.bf16.gmra.mrb[0].mxu0 %v3600
      %v3709 = vpop.f32.mrb[0].mxu0
      %v3710 = vadd.f32 0.0, %v3709
      %v3711 = vpop.f32.mrb[0].mxu0
      %v3712 = vpop.f32.mrb[0].mxu0
      %v3713 = vadd.f32 0.0, %v3712
      %v3714 = vpop.f32.mrb[0].mxu0
      %3715 = vmatprep.mubr.bf16.mxu0 0
      %3716 = vmatmul.mubr.bf16.gmra.mrb[0].mxu0 %v3603
      %v3717 = vpop.f32.mrb[0].mxu0
      %v3718 = vadd.f32 0.0, %v3717
      %v3719 = vpop.f32.mrb[0].mxu0
      %v3720 = vpop.f32.mrb[0].mxu0
      %v3721 = vadd.f32 0.0, %v3720
      %v3722 = vpop.f32.mrb[0].mxu0
      %3723 = vmatprep.mubr.bf16.mxu0 0
      %3724 = vmatmul.mubr.bf16.gmra.mrb[0].mxu0 %v3606
      %v3725 = vpop.f32.mrb[0].mxu0
      %v3726 = vadd.f32 0.0, %v3725
      %v3727 = vpop.f32.mrb[0].mxu0
      %v3728 = vpop.f32.mrb[0].mxu0
      %v3729 = vadd.f32 0.0, %v3728
      %v3730 = vpop.f32.mrb[0].mxu0
      %3731 = vmatprep.mubr.bf16.mxu0 0
      %3732 = vmatmul.mubr.bf16.gmra.mrb[0].mxu0 %v3609
      %v3733 = vpop.f32.mrb[0].mxu0
      %v3734 = vadd.f32 0.0, %v3733
      %v3735 = vpop.f32.mrb[0].mxu0
      %v3736 = vpop.f32.mrb[0].mxu0
      %v3737 = vadd.f32 0.0, %v3736
      %v3738 = vpop.f32.mrb[0].mxu0
      %3739 = vmatprep.mubr.bf16.mxu0 0
      %3740 = vmatmul.mubr.bf16.gmra.mrb[0].mxu0 %v3612
      %v3741 = vpop.f32.mrb[0].mxu0
      %v3742 = vadd.f32 0.0, %v3741
      %v3743 = vpop.f32.mrb[0].mxu0
      %v3744 = vpop.f32.mrb[0].mxu0
      %v3745 = vadd.f32 0.0, %v3744
      %v3746 = vpop.f32.mrb[0].mxu0
      %3747 = vmatprep.mubr.bf16.mxu0 0
      %3748 = vmatmul.mubr.bf16.gmra.mrb[0].mxu0 %v3615
      %v3749 = vpop.f32.mrb[0].mxu0
      %v3750 = vadd.f32 0.0, %v3749
      %v3751 = vpop.f32.mrb[0].mxu0
      %v3752 = vpop.f32.mrb[0].mxu0
      %v3753 = vadd.f32 0.0, %v3752
      %v3754 = vpop.f32.mrb[0].mxu0
      %3755 = vmatprep.mubr.bf16.mxu0 0
      %3756 = vmatmul.mubr.bf16.gmra.mrb[0].mxu0 %v3618
      %v3757 = vpop.f32.mrb[0].mxu0
      %v3758 = vadd.f32 0.0, %v3757
      %v3759 = vpop.f32.mrb[0].mxu0
      %v3760 = vpop.f32.mrb[0].mxu0
      %v3761 = vadd.f32 0.0, %v3760
      %v3762 = vpop.f32.mrb[0].mxu0
      %3763 = vmatprep.mubr.bf16.mxu0 0
      %3764 = vmatmul.mubr.bf16.gmra.mrb[0].mxu0 %v3621
      %v3765 = vpop.f32.mrb[0].mxu0
      %v3766 = vadd.f32 0.0, %v3765
      %v3767 = vpop.f32.mrb[0].mxu0
      %v3768 = vpop.f32.mrb[0].mxu0
      %v3769 = vadd.f32 0.0, %v3768
      %v3770 = vpop.f32.mrb[0].mxu0
      %3771 = vmatprep.mubr.bf16.mxu0 0
      %3772 = vmatmul.mubr.bf16.gmra.mrb[0].mxu0 %v3624
      %v3773 = vpop.f32.mrb[0].mxu0
      %v3774 = vadd.f32 0.0, %v3773
      %v3775 = vpop.f32.mrb[0].mxu0
      %v3776 = vpop.f32.mrb[0].mxu0
      %v3777 = vadd.f32 0.0, %v3776
      %v3778 = vpop.f32.mrb[0].mxu0
      %3779 = vmatprep.mubr.bf16.mxu0 0
      %3780 = vmatmul.mubr.bf16.gmra.mrb[0].mxu0 %v3627
      %v3781 = vpop.f32.mrb[0].mxu0
      %v3782 = vadd.f32 0.0, %v3781
      %v3783 = vpop.f32.mrb[0].mxu0
      %v3784 = vpop.f32.mrb[0].mxu0
      %v3785 = vadd.f32 0.0, %v3784
      %v3786 = vpop.f32.mrb[0].mxu0
      %3787 = vmatprep.mubr.bf16.mxu0 0
      %3788 = vmatmul.mubr.bf16.gmra.mrb[0].mxu0 %v3630
      %v3789 = vpop.f32.mrb[0].mxu0
      %v3790 = vadd.f32 0.0, %v3789
      %v3791 = vpop.f32.mrb[0].mxu0
      %v3792 = vpop.f32.mrb[0].mxu0
      %v3793 = vadd.f32 0.0, %v3792
      %v3794 = vpop.f32.mrb[0].mxu0
      %3795 = vdwg.mxu0
      %v3796 = vadd.f32 %v3470, %v3670
      %v3797 = vadd.f32 %v3471, %v3673
      %v3798 = vadd.f32 %v3472, %v3678
      %v3799 = vadd.f32 %v3473, %v3681
      %v3800 = vadd.f32 %v3474, %v3686
      %v3801 = vadd.f32 %v3475, %v3689
      %v3802 = vadd.f32 %v3476, %v3694
      %v3803 = vadd.f32 %v3477, %v3697
      %v3804 = vadd.f32 %v3478, %v3702
      %v3805 = vadd.f32 %v3479, %v3705
      %v3806 = vadd.f32 %v3480, %v3710
      %v3807 = vadd.f32 %v3481, %v3713
      %v3808 = vadd.f32 %v3482, %v3718
      %v3809 = vadd.f32 %v3483, %v3721
      %v3810 = vadd.f32 %v3484, %v3726
      %v3811 = vadd.f32 %v3485, %v3729
      %v3812 = vadd.f32 %v3486, %v3734
      %v3813 = vadd.f32 %v3487, %v3737
      %v3814 = vadd.f32 %v3488, %v3742
      %v3815 = vadd.f32 %v3489, %v3745
      %v3816 = vadd.f32 %v3490, %v3750
      %v3817 = vadd.f32 %v3491, %v3753
      %v3818 = vadd.f32 %v3492, %v3758
      %v3819 = vadd.f32 %v3493, %v3761
      %v3820 = vadd.f32 %v3494, %v3766
      %v3821 = vadd.f32 %v3495, %v3769
      %v3822 = vadd.f32 %v3496, %v3774
      %v3823 = vadd.f32 %v3497, %v3777
      %v3824 = vadd.f32 %v3498, %v3782
      %v3825 = vadd.f32 %v3499, %v3785
      %v3826 = vadd.f32 %v3500, %v3790
      %v3827 = vadd.f32 %v3501, %v3793
      %3828 = vst.msk [vmem:[#allocation3] sm:$0xff] %vm392, %v3796
      %3829 = vst.msk [vmem:[#allocation3 + $0x8] sm:$0xff] %vm392, %v3797
      %3830 = vst.msk [vmem:[#allocation3 + $0x10] sm:$0xff] %vm392, %v3798
      %3831 = vst.msk [vmem:[#allocation3 + $0x18] sm:$0xff] %vm392, %v3799
      %3832 = vst.msk [vmem:[#allocation3 + $0x20] sm:$0xff] %vm392, %v3800
      %3833 = vst.msk [vmem:[#allocation3 + $0x28] sm:$0xff] %vm392, %v3801
      %3834 = vst.msk [vmem:[#allocation3 + $0x30] sm:$0xff] %vm392, %v3802
      %3835 = vst.msk [vmem:[#allocation3 + $0x38] sm:$0xff] %vm392, %v3803
      %3836 = vst.msk [vmem:[#allocation3 + $0x40] sm:$0xff] %vm392, %v3804
      %3837 = vst.msk [vmem:[#allocation3 + $0x48] sm:$0xff] %vm392, %v3805
      %3838 = vst.msk [vmem:[#allocation3 + $0x50] sm:$0xff] %vm392, %v3806
      %3839 = vst.msk [vmem:[#allocation3 + $0x58] sm:$0xff] %vm392, %v3807
      %3840 = vst.msk [vmem:[#allocation3 + $0x60] sm:$0xff] %vm392, %v3808
      %3841 = vst.msk [vmem:[#allocation3 + $0x68] sm:$0xff] %vm392, %v3809
      %3842 = vst.msk [vmem:[#allocation3 + $0x70] sm:$0xff] %vm392, %v3810
      %3843 = vst.msk [vmem:[#allocation3 + $0x78] sm:$0xff] %vm392, %v3811
      %3844 = vst.msk [vmem:[#allocation3 + $0x80] sm:$0xff] %vm392, %v3812
      %3845 = vst.msk [vmem:[#allocation3 + $0x88] sm:$0xff] %vm392, %v3813
      %3846 = vst.msk [vmem:[#allocation3 + $0x90] sm:$0xff] %vm392, %v3814
      %3847 = vst.msk [vmem:[#allocation3 + $0x98] sm:$0xff] %vm392, %v3815
      %3848 = vst.msk [vmem:[#allocation3 + $0xa0] sm:$0xff] %vm392, %v3816
      %3849 = vst.msk [vmem:[#allocation3 + $0xa8] sm:$0xff] %vm392, %v3817
      %3850 = vst.msk [vmem:[#allocation3 + $0xb0] sm:$0xff] %vm392, %v3818
      %3851 = vst.msk [vmem:[#allocation3 + $0xb8] sm:$0xff] %vm392, %v3819
      %3852 = vst.msk [vmem:[#allocation3 + $0xc0] sm:$0xff] %vm392, %v3820
      %3853 = vst.msk [vmem:[#allocation3 + $0xc8] sm:$0xff] %vm392, %v3821
      %3854 = vst.msk [vmem:[#allocation3 + $0xd0] sm:$0xff] %vm392, %v3822
      %3855 = vst.msk [vmem:[#allocation3 + $0xd8] sm:$0xff] %vm392, %v3823
      %3856 = vst.msk [vmem:[#allocation3 + $0xe0] sm:$0xff] %vm392, %v3824
      %3857 = vst.msk [vmem:[#allocation3 + $0xe8] sm:$0xff] %vm392, %v3825
      %3858 = vst.msk [vmem:[#allocation3 + $0xf0] sm:$0xff] %vm392, %v3826
      %3859 = vst.msk [vmem:[#allocation3 + $0xf8] sm:$0xff] %vm392, %v3827
      %v3860 = vrot.slane %v3438, 7
      %v3861 = vrot.slane %v3439, 7
      %v3862 = vsel %vm2461, %v3860, %v3861
      %v3863 = vrot.slane %v3440, 7
      %v3864 = vrot.slane %v3441, 7
      %v3865 = vsel %vm2461, %v3863, %v3864
      %v3866 = vrot.slane %v3442, 7
      %v3867 = vrot.slane %v3443, 7
      %v3868 = vsel %vm2461, %v3866, %v3867
      %v3869 = vrot.slane %v3444, 7
      %v3870 = vrot.slane %v3445, 7
      %v3871 = vsel %vm2461, %v3869, %v3870
      %v3872 = vrot.slane %v3446, 7
      %v3873 = vrot.slane %v3447, 7
      %v3874 = vsel %vm2461, %v3872, %v3873
      %v3875 = vrot.slane %v3448, 7
      %v3876 = vrot.slane %v3449, 7
      %v3877 = vsel %vm2461, %v3875, %v3876
      %v3878 = vrot.slane %v3450, 7
      %v3879 = vrot.slane %v3451, 7
      %v3880 = vsel %vm2461, %v3878, %v3879
      %v3881 = vrot.slane %v3452, 7
      %v3882 = vrot.slane %v3453, 7
      %v3883 = vsel %vm2461, %v3881, %v3882
      %v3884 = vrot.slane %v3454, 7
      %v3885 = vrot.slane %v3455, 7
      %v3886 = vsel %vm2461, %v3884, %v3885
      %v3887 = vrot.slane %v3456, 7
      %v3888 = vrot.slane %v3457, 7
      %v3889 = vsel %vm2461, %v3887, %v3888
      %v3890 = vrot.slane %v3458, 7
      %v3891 = vrot.slane %v3459, 7
      %v3892 = vsel %vm2461, %v3890, %v3891
      %v3893 = vrot.slane %v3460, 7
      %v3894 = vrot.slane %v3461, 7
      %v3895 = vsel %vm2461, %v3893, %v3894
      %v3896 = vrot.slane %v3462, 7
      %v3897 = vrot.slane %v3463, 7
      %v3898 = vsel %vm2461, %v3896, %v3897
      %v3899 = vrot.slane %v3464, 7
      %v3900 = vrot.slane %v3465, 7
      %v3901 = vsel %vm2461, %v3899, %v3900
      %v3902 = vrot.slane %v3466, 7
      %v3903 = vrot.slane %v3467, 7
      %v3904 = vsel %vm2461, %v3902, %v3903
      %v3905 = vrot.slane %v3468, 7
      %v3906 = vrot.slane %v3469, 7
      %v3907 = vsel %vm2461, %v3905, %v3906
      %3940 = vst.msk [vmem:[%s237] sm:$0xf0] %vm255, %v3860
      %3941 = vst.msk [vmem:[%s237 + $0x8] sm:$0xf] %vm238, %v3862
      %3942 = vst.msk [vmem:[%s237 + $0x10] sm:$0xf0] %vm255, %v3863
      %3943 = vst.msk [vmem:[%s237 + $0x18] sm:$0xf] %vm238, %v3865
      %3944 = vst.msk [vmem:[%s237 + $0x20] sm:$0xf0] %vm255, %v3866
      %3945 = vst.msk [vmem:[%s237 + $0x28] sm:$0xf] %vm238, %v3868
      %3946 = vst.msk [vmem:[%s237 + $0x30] sm:$0xf0] %vm255, %v3869
      %3947 = vst.msk [vmem:[%s237 + $0x38] sm:$0xf] %vm238, %v3871
      %3948 = vst.msk [vmem:[%s237 + $0x40] sm:$0xf0] %vm255, %v3872
      %3949 = vst.msk [vmem:[%s237 + $0x48] sm:$0xf] %vm238, %v3874
      %3950 = vst.msk [vmem:[%s237 + $0x50] sm:$0xf0] %vm255, %v3875
      %3951 = vst.msk [vmem:[%s237 + $0x58] sm:$0xf] %vm238, %v3877
      %3952 = vst.msk [vmem:[%s237 + $0x60] sm:$0xf0] %vm255, %v3878
      %3953 = vst.msk [vmem:[%s237 + $0x68] sm:$0xf] %vm238, %v3880
      %3954 = vst.msk [vmem:[%s237 + $0x70] sm:$0xf0] %vm255, %v3881
      %3955 = vst.msk [vmem:[%s237 + $0x78] sm:$0xf] %vm238, %v3883
      %3956 = vst.msk [vmem:[%s237 + $0x80] sm:$0xf0] %vm255, %v3884
      %3957 = vst.msk [vmem:[%s237 + $0x88] sm:$0xf] %vm238, %v3886
      %3958 = vst.msk [vmem:[%s237 + $0x90] sm:$0xf0] %vm255, %v3887
      %3959 = vst.msk [vmem:[%s237 + $0x98] sm:$0xf] %vm238, %v3889
      %3960 = vst.msk [vmem:[%s237 + $0xa0] sm:$0xf0] %vm255, %v3890
      %3961 = vst.msk [vmem:[%s237 + $0xa8] sm:$0xf] %vm238, %v3892
      %3962 = vst.msk [vmem:[%s237 + $0xb0] sm:$0xf0] %vm255, %v3893
      %3963 = vst.msk [vmem:[%s237 + $0xb8] sm:$0xf] %vm238, %v3895
      %3964 = vst.msk [vmem:[%s237 + $0xc0] sm:$0xf0] %vm255, %v3896
      %3965 = vst.msk [vmem:[%s237 + $0xc8] sm:$0xf] %vm238, %v3898
      %3966 = vst.msk [vmem:[%s237 + $0xd0] sm:$0xf0] %vm255, %v3899
      %3967 = vst.msk [vmem:[%s237 + $0xd8] sm:$0xf] %vm238, %v3901
      %3968 = vst.msk [vmem:[%s237 + $0xe0] sm:$0xf0] %vm255, %v3902
      %3969 = vst.msk [vmem:[%s237 + $0xe8] sm:$0xf] %vm238, %v3904
      %3970 = vst.msk [vmem:[%s237 + $0xf0] sm:$0xf0] %vm255, %v3905
      %3971 = vst.msk [vmem:[%s237 + $0xf8] sm:$0xf] %vm238, %v3907
      %v3972 = vld [vmem:[#allocation2] sm:$0xf8]
      %v3973 = vld [vmem:[#allocation2 + $0x8] sm:$0x1f]
      %v3974 = vld [vmem:[#allocation2 + $0x10] sm:$0xf8]
      %v3975 = vld [vmem:[#allocation2 + $0x18] sm:$0x1f]
      %v3976 = vld [vmem:[#allocation2 + $0x20] sm:$0xf8]
      %v3977 = vld [vmem:[#allocation2 + $0x28] sm:$0x1f]
      %v3978 = vld [vmem:[#allocation2 + $0x30] sm:$0xf8]
      %v3979 = vld [vmem:[#allocation2 + $0x38] sm:$0x1f]
      %v3980 = vld [vmem:[#allocation2 + $0x40] sm:$0xf8]
      %v3981 = vld [vmem:[#allocation2 + $0x48] sm:$0x1f]
      %v3982 = vld [vmem:[#allocation2 + $0x50] sm:$0xf8]
      %v3983 = vld [vmem:[#allocation2 + $0x58] sm:$0x1f]
      %v3984 = vld [vmem:[#allocation2 + $0x60] sm:$0xf8]
      %v3985 = vld [vmem:[#allocation2 + $0x68] sm:$0x1f]
      %v3986 = vld [vmem:[#allocation2 + $0x70] sm:$0xf8]
      %v3987 = vld [vmem:[#allocation2 + $0x78] sm:$0x1f]
      %v3988 = vld [vmem:[#allocation2 + $0x80] sm:$0xf8]
      %v3989 = vld [vmem:[#allocation2 + $0x88] sm:$0x1f]
      %v3990 = vld [vmem:[#allocation2 + $0x90] sm:$0xf8]
      %v3991 = vld [vmem:[#allocation2 + $0x98] sm:$0x1f]
      %v3992 = vld [vmem:[#allocation2 + $0xa0] sm:$0xf8]
      %v3993 = vld [vmem:[#allocation2 + $0xa8] sm:$0x1f]
      %v3994 = vld [vmem:[#allocation2 + $0xb0] sm:$0xf8]
      %v3995 = vld [vmem:[#allocation2 + $0xb8] sm:$0x1f]
      %v3996 = vld [vmem:[#allocation2 + $0xc0] sm:$0xf8]
      %v3997 = vld [vmem:[#allocation2 + $0xc8] sm:$0x1f]
      %v3998 = vld [vmem:[#allocation2 + $0xd0] sm:$0xf8]
      %v3999 = vld [vmem:[#allocation2 + $0xd8] sm:$0x1f]
      %v4000 = vld [vmem:[#allocation2 + $0xe0] sm:$0xf8]
      %v4001 = vld [vmem:[#allocation2 + $0xe8] sm:$0x1f]
      %v4002 = vld [vmem:[#allocation2 + $0xf0] sm:$0xf8]
      %v4003 = vld [vmem:[#allocation2 + $0xf8] sm:$0x1f]
      %v4004 = vld [vmem:[#allocation2 + $0x100] sm:$0xf8]
      %v4005 = vld [vmem:[#allocation2 + $0x108] sm:$0x1f]
      %v4006 = vld [vmem:[#allocation2 + $0x110] sm:$0xf8]
      %v4007 = vld [vmem:[#allocation2 + $0x118] sm:$0x1f]
      %v4008 = vld [vmem:[#allocation2 + $0x120] sm:$0xf8]
      %v4009 = vld [vmem:[#allocation2 + $0x128] sm:$0x1f]
      %v4010 = vld [vmem:[#allocation2 + $0x130] sm:$0xf8]
      %v4011 = vld [vmem:[#allocation2 + $0x138] sm:$0x1f]
      %v4012 = vmax.bf16 %v3972, %v3974
      %v4013 = vmax.bf16 %v3973, %v3975
      %v4014 = vmax.bf16 %v3974, %v3976
      %v4015 = vmax.bf16 %v3975, %v3977
      %v4016 = vmax.bf16 %v3976, %v3978
      %v4017 = vmax.bf16 %v3977, %v3979
      %v4018 = vmax.bf16 %v3978, %v3980
      %v4019 = vmax.bf16 %v3979, %v3981
      %v4020 = vmax.bf16 %v3980, %v3982
      %v4021 = vmax.bf16 %v3981, %v3983
      %v4022 = vmax.bf16 %v3982, %v3984
      %v4023 = vmax.bf16 %v3983, %v3985
      %v4024 = vmax.bf16 %v3984, %v3986
      %v4025 = vmax.bf16 %v3985, %v3987
      %v4026 = vmax.bf16 %v3986, %v3988
      %v4027 = vmax.bf16 %v3987, %v3989
      %v4028 = vmax.bf16 %v3988, %v3990
      %v4029 = vmax.bf16 %v3989, %v3991
      %v4030 = vmax.bf16 %v3990, %v3992
      %v4031 = vmax.bf16 %v3991, %v3993
      %v4032 = vmax.bf16 %v3992, %v3994
      %v4033 = vmax.bf16 %v3993, %v3995
      %v4034 = vmax.bf16 %v3994, %v3996
      %v4035 = vmax.bf16 %v3995, %v3997
      %v4036 = vmax.bf16 %v3996, %v3998
      %v4037 = vmax.bf16 %v3997, %v3999
      %v4038 = vmax.bf16 %v3998, %v4000
      %v4039 = vmax.bf16 %v3999, %v4001
      %v4040 = vmax.bf16 %v4000, %v4002
      %v4041 = vmax.bf16 %v4001, %v4003
      %v4042 = vmax.bf16 %v4002, %v4004
      %v4043 = vmax.bf16 %v4003, %v4005
      %v4044 = vmax.bf16 %v4004, %v4006
      %v4045 = vmax.bf16 %v4005, %v4007
      %v4046 = vmax.bf16 %v4006, %v4008
      %v4047 = vmax.bf16 %v4007, %v4009
      %v4048 = vmax.bf16 %v4008, %v4010
      %v4049 = vmax.bf16 %v4009, %v4011
      %v4050 = vmax.bf16 %v4012, %v4016
      %v4051 = vmax.bf16 %v4013, %v4017
      %v4052 = vmax.bf16 %v4014, %v4018
      %v4053 = vmax.bf16 %v4015, %v4019
      %v4054 = vmax.bf16 %v4016, %v4020
      %v4055 = vmax.bf16 %v4017, %v4021
      %v4056 = vmax.bf16 %v4018, %v4022
      %v4057 = vmax.bf16 %v4019, %v4023
      %v4058 = vmax.bf16 %v4020, %v4024
      %v4059 = vmax.bf16 %v4021, %v4025
      %v4060 = vmax.bf16 %v4022, %v4026
      %v4061 = vmax.bf16 %v4023, %v4027
      %v4062 = vmax.bf16 %v4024, %v4028
      %v4063 = vmax.bf16 %v4025, %v4029
      %v4064 = vmax.bf16 %v4026, %v4030
      %v4065 = vmax.bf16 %v4027, %v4031
      %v4066 = vmax.bf16 %v4028, %v4032
      %v4067 = vmax.bf16 %v4029, %v4033
      %v4068 = vmax.bf16 %v4030, %v4034
      %v4069 = vmax.bf16 %v4031, %v4035
      %v4070 = vmax.bf16 %v4032, %v4036
      %v4071 = vmax.bf16 %v4033, %v4037
      %v4072 = vmax.bf16 %v4034, %v4038
      %v4073 = vmax.bf16 %v4035, %v4039
      %v4074 = vmax.bf16 %v4036, %v4040
      %v4075 = vmax.bf16 %v4037, %v4041
      %v4076 = vmax.bf16 %v4038, %v4042
      %v4077 = vmax.bf16 %v4039, %v4043
      %v4078 = vmax.bf16 %v4040, %v4044
      %v4079 = vmax.bf16 %v4041, %v4045
      %v4080 = vmax.bf16 %v4042, %v4046
      %v4081 = vmax.bf16 %v4043, %v4047
      %v4082 = vmax.bf16 %v4044, %v4048
      %v4083 = vmax.bf16 %v4045, %v4049
      %v4084 = vmax.bf16 %v4050, %v4052
      %v4085 = vmax.bf16 %v4051, %v4053
      %v4086 = vmax.bf16 %v4052, %v4054
      %v4087 = vmax.bf16 %v4053, %v4055
      %v4088 = vmax.bf16 %v4054, %v4056
      %v4089 = vmax.bf16 %v4055, %v4057
      %v4090 = vmax.bf16 %v4056, %v4058
      %v4091 = vmax.bf16 %v4057, %v4059
      %v4092 = vmax.bf16 %v4058, %v4060
      %v4093 = vmax.bf16 %v4059, %v4061
      %v4094 = vmax.bf16 %v4060, %v4062
      %v4095 = vmax.bf16 %v4061, %v4063
      %v4096 = vmax.bf16 %v4062, %v4064
      %v4097 = vmax.bf16 %v4063, %v4065
      %v4098 = vmax.bf16 %v4064, %v4066
      %v4099 = vmax.bf16 %v4065, %v4067
      %v4100 = vmax.bf16 %v4066, %v4068
      %v4101 = vmax.bf16 %v4067, %v4069
      %v4102 = vmax.bf16 %v4068, %v4070
      %v4103 = vmax.bf16 %v4069, %v4071
      %v4104 = vmax.bf16 %v4070, %v4072
      %v4105 = vmax.bf16 %v4071, %v4073
      %v4106 = vmax.bf16 %v4072, %v4074
      %v4107 = vmax.bf16 %v4073, %v4075
      %v4108 = vmax.bf16 %v4074, %v4076
      %v4109 = vmax.bf16 %v4075, %v4077
      %v4110 = vmax.bf16 %v4076, %v4078
      %v4111 = vmax.bf16 %v4077, %v4079
      %v4112 = vmax.bf16 %v4078, %v4080
      %v4113 = vmax.bf16 %v4079, %v4081
      %v4114 = vmax.bf16 %v4080, %v4082
      %v4115 = vmax.bf16 %v4081, %v4083
      %v4117 = vshrl.u32 %v4084, 16
      %v4119 = vshll.u32 %v4084, 16
      %v4121 = vrot.slane %v4119, 1
      %v4122 = vor.u32 %v4117, %v4121
      %v4124 = vshll.u32 %v4085, 16
      %v4126 = vrot.slane %v4124, 1
      %v4127 = vsel %vm1316, %v4122, %v4126
      %v4128 = vshrl.u32 %v4085, 16
      %v4130 = vor.u32 %v4128, %v4126
      %v4132 = vshrl.u32 %v4086, 16
      %v4134 = vshll.u32 %v4086, 16
      %v4136 = vrot.slane %v4134, 1
      %v4137 = vor.u32 %v4132, %v4136
      %v4139 = vshll.u32 %v4087, 16
      %v4141 = vrot.slane %v4139, 1
      %v4142 = vsel %vm1316, %v4137, %v4141
      %v4143 = vshrl.u32 %v4087, 16
      %v4145 = vor.u32 %v4143, %v4141
      %v4147 = vshrl.u32 %v4088, 16
      %v4149 = vshll.u32 %v4088, 16
      %v4151 = vrot.slane %v4149, 1
      %v4152 = vor.u32 %v4147, %v4151
      %v4154 = vshll.u32 %v4089, 16
      %v4156 = vrot.slane %v4154, 1
      %v4157 = vsel %vm1316, %v4152, %v4156
      %v4158 = vshrl.u32 %v4089, 16
      %v4160 = vor.u32 %v4158, %v4156
      %v4162 = vshrl.u32 %v4090, 16
      %v4164 = vshll.u32 %v4090, 16
      %v4166 = vrot.slane %v4164, 1
      %v4167 = vor.u32 %v4162, %v4166
      %v4169 = vshll.u32 %v4091, 16
      %v4171 = vrot.slane %v4169, 1
      %v4172 = vsel %vm1316, %v4167, %v4171
      %v4173 = vshrl.u32 %v4091, 16
      %v4175 = vor.u32 %v4173, %v4171
      %v4177 = vshrl.u32 %v4092, 16
      %v4179 = vshll.u32 %v4092, 16
      %v4181 = vrot.slane %v4179, 1
      %v4182 = vor.u32 %v4177, %v4181
      %v4184 = vshll.u32 %v4093, 16
      %v4186 = vrot.slane %v4184, 1
      %v4187 = vsel %vm1316, %v4182, %v4186
      %v4188 = vshrl.u32 %v4093, 16
      %v4190 = vor.u32 %v4188, %v4186
      %v4192 = vshrl.u32 %v4094, 16
      %v4194 = vshll.u32 %v4094, 16
      %v4196 = vrot.slane %v4194, 1
      %v4197 = vor.u32 %v4192, %v4196
      %v4199 = vshll.u32 %v4095, 16
      %v4201 = vrot.slane %v4199, 1
      %v4202 = vsel %vm1316, %v4197, %v4201
      %v4203 = vshrl.u32 %v4095, 16
      %v4205 = vor.u32 %v4203, %v4201
      %v4207 = vshrl.u32 %v4096, 16
      %v4209 = vshll.u32 %v4096, 16
      %v4211 = vrot.slane %v4209, 1
      %v4212 = vor.u32 %v4207, %v4211
      %v4214 = vshll.u32 %v4097, 16
      %v4216 = vrot.slane %v4214, 1
      %v4217 = vsel %vm1316, %v4212, %v4216
      %v4218 = vshrl.u32 %v4097, 16
      %v4220 = vor.u32 %v4218, %v4216
      %v4222 = vshrl.u32 %v4098, 16
      %v4224 = vshll.u32 %v4098, 16
      %v4226 = vrot.slane %v4224, 1
      %v4227 = vor.u32 %v4222, %v4226
      %v4229 = vshll.u32 %v4099, 16
      %v4231 = vrot.slane %v4229, 1
      %v4232 = vsel %vm1316, %v4227, %v4231
      %v4233 = vshrl.u32 %v4099, 16
      %v4235 = vor.u32 %v4233, %v4231
      %v4237 = vshrl.u32 %v4100, 16
      %v4239 = vshll.u32 %v4100, 16
      %v4241 = vrot.slane %v4239, 1
      %v4242 = vor.u32 %v4237, %v4241
      %v4244 = vshll.u32 %v4101, 16
      %v4246 = vrot.slane %v4244, 1
      %v4247 = vsel %vm1316, %v4242, %v4246
      %v4248 = vshrl.u32 %v4101, 16
      %v4250 = vor.u32 %v4248, %v4246
      %v4252 = vshrl.u32 %v4102, 16
      %v4254 = vshll.u32 %v4102, 16
      %v4256 = vrot.slane %v4254, 1
      %v4257 = vor.u32 %v4252, %v4256
      %v4259 = vshll.u32 %v4103, 16
      %v4261 = vrot.slane %v4259, 1
      %v4262 = vsel %vm1316, %v4257, %v4261
      %v4263 = vshrl.u32 %v4103, 16
      %v4265 = vor.u32 %v4263, %v4261
      %v4267 = vshrl.u32 %v4104, 16
      %v4269 = vshll.u32 %v4104, 16
      %v4271 = vrot.slane %v4269, 1
      %v4272 = vor.u32 %v4267, %v4271
      %v4274 = vshll.u32 %v4105, 16
      %v4276 = vrot.slane %v4274, 1
      %v4277 = vsel %vm1316, %v4272, %v4276
      %v4278 = vshrl.u32 %v4105, 16
      %v4280 = vor.u32 %v4278, %v4276
      %v4282 = vshrl.u32 %v4106, 16
      %v4284 = vshll.u32 %v4106, 16
      %v4286 = vrot.slane %v4284, 1
      %v4287 = vor.u32 %v4282, %v4286
      %v4289 = vshll.u32 %v4107, 16
      %v4291 = vrot.slane %v4289, 1
      %v4292 = vsel %vm1316, %v4287, %v4291
      %v4293 = vshrl.u32 %v4107, 16
      %v4295 = vor.u32 %v4293, %v4291
      %v4297 = vshrl.u32 %v4108, 16
      %v4299 = vshll.u32 %v4108, 16
      %v4301 = vrot.slane %v4299, 1
      %v4302 = vor.u32 %v4297, %v4301
      %v4304 = vshll.u32 %v4109, 16
      %v4306 = vrot.slane %v4304, 1
      %v4307 = vsel %vm1316, %v4302, %v4306
      %v4308 = vshrl.u32 %v4109, 16
      %v4310 = vor.u32 %v4308, %v4306
      %v4312 = vshrl.u32 %v4110, 16
      %v4314 = vshll.u32 %v4110, 16
      %v4316 = vrot.slane %v4314, 1
      %v4317 = vor.u32 %v4312, %v4316
      %v4319 = vshll.u32 %v4111, 16
      %v4321 = vrot.slane %v4319, 1
      %v4322 = vsel %vm1316, %v4317, %v4321
      %v4323 = vshrl.u32 %v4111, 16
      %v4325 = vor.u32 %v4323, %v4321
      %v4327 = vshrl.u32 %v4112, 16
      %v4329 = vshll.u32 %v4112, 16
      %v4331 = vrot.slane %v4329, 1
      %v4332 = vor.u32 %v4327, %v4331
      %v4334 = vshll.u32 %v4113, 16
      %v4336 = vrot.slane %v4334, 1
      %v4337 = vsel %vm1316, %v4332, %v4336
      %v4338 = vshrl.u32 %v4113, 16
      %v4340 = vor.u32 %v4338, %v4336
      %v4342 = vshrl.u32 %v4114, 16
      %v4344 = vshll.u32 %v4114, 16
      %v4346 = vrot.slane %v4344, 1
      %v4347 = vor.u32 %v4342, %v4346
      %v4349 = vshll.u32 %v4115, 16
      %v4351 = vrot.slane %v4349, 1
      %v4352 = vsel %vm1316, %v4347, %v4351
      %v4353 = vshrl.u32 %v4115, 16
      %v4355 = vor.u32 %v4353, %v4351
      %v4388 = vmax.bf16 %v4084, %v4127
      %v4389 = vmax.bf16 %v4085, %v4130
      %v4390 = vmax.bf16 %v4086, %v4142
      %v4391 = vmax.bf16 %v4087, %v4145
      %v4392 = vmax.bf16 %v4088, %v4157
      %v4393 = vmax.bf16 %v4089, %v4160
      %v4394 = vmax.bf16 %v4090, %v4172
      %v4395 = vmax.bf16 %v4091, %v4175
      %v4396 = vmax.bf16 %v4092, %v4187
      %v4397 = vmax.bf16 %v4093, %v4190
      %v4398 = vmax.bf16 %v4094, %v4202
      %v4399 = vmax.bf16 %v4095, %v4205
      %v4400 = vmax.bf16 %v4096, %v4217
      %v4401 = vmax.bf16 %v4097, %v4220
      %v4402 = vmax.bf16 %v4098, %v4232
      %v4403 = vmax.bf16 %v4099, %v4235
      %v4404 = vmax.bf16 %v4100, %v4247
      %v4405 = vmax.bf16 %v4101, %v4250
      %v4406 = vmax.bf16 %v4102, %v4262
      %v4407 = vmax.bf16 %v4103, %v4265
      %v4408 = vmax.bf16 %v4104, %v4277
      %v4409 = vmax.bf16 %v4105, %v4280
      %v4410 = vmax.bf16 %v4106, %v4292
      %v4411 = vmax.bf16 %v4107, %v4295
      %v4412 = vmax.bf16 %v4108, %v4307
      %v4413 = vmax.bf16 %v4109, %v4310
      %v4414 = vmax.bf16 %v4110, %v4322
      %v4415 = vmax.bf16 %v4111, %v4325
      %v4416 = vmax.bf16 %v4112, %v4337
      %v4417 = vmax.bf16 %v4113, %v4340
      %v4418 = vmax.bf16 %v4114, %v4352
      %v4419 = vmax.bf16 %v4115, %v4355
      %v4452 = vrot.slane %v4388, 1
      %v4453 = vrot.slane %v4389, 1
      %v4454 = vsel %vm1653, %v4452, %v4453
      %v4455 = vrot.slane %v4390, 1
      %v4456 = vrot.slane %v4391, 1
      %v4457 = vsel %vm1653, %v4455, %v4456
      %v4458 = vrot.slane %v4392, 1
      %v4459 = vrot.slane %v4393, 1
      %v4460 = vsel %vm1653, %v4458, %v4459
      %v4461 = vrot.slane %v4394, 1
      %v4462 = vrot.slane %v4395, 1
      %v4463 = vsel %vm1653, %v4461, %v4462
      %v4464 = vrot.slane %v4396, 1
      %v4465 = vrot.slane %v4397, 1
      %v4466 = vsel %vm1653, %v4464, %v4465
      %v4467 = vrot.slane %v4398, 1
      %v4468 = vrot.slane %v4399, 1
      %v4469 = vsel %vm1653, %v4467, %v4468
      %v4470 = vrot.slane %v4400, 1
      %v4471 = vrot.slane %v4401, 1
      %v4472 = vsel %vm1653, %v4470, %v4471
      %v4473 = vrot.slane %v4402, 1
      %v4474 = vrot.slane %v4403, 1
      %v4475 = vsel %vm1653, %v4473, %v4474
      %v4476 = vrot.slane %v4404, 1
      %v4477 = vrot.slane %v4405, 1
      %v4478 = vsel %vm1653, %v4476, %v4477
      %v4479 = vrot.slane %v4406, 1
      %v4480 = vrot.slane %v4407, 1
      %v4481 = vsel %vm1653, %v4479, %v4480
      %v4482 = vrot.slane %v4408, 1
      %v4483 = vrot.slane %v4409, 1
      %v4484 = vsel %vm1653, %v4482, %v4483
      %v4485 = vrot.slane %v4410, 1
      %v4486 = vrot.slane %v4411, 1
      %v4487 = vsel %vm1653, %v4485, %v4486
      %v4488 = vrot.slane %v4412, 1
      %v4489 = vrot.slane %v4413, 1
      %v4490 = vsel %vm1653, %v4488, %v4489
      %v4491 = vrot.slane %v4414, 1
      %v4492 = vrot.slane %v4415, 1
      %v4493 = vsel %vm1653, %v4491, %v4492
      %v4494 = vrot.slane %v4416, 1
      %v4495 = vrot.slane %v4417, 1
      %v4496 = vsel %vm1653, %v4494, %v4495
      %v4497 = vrot.slane %v4418, 1
      %v4498 = vrot.slane %v4419, 1
      %v4499 = vsel %vm1653, %v4497, %v4498
      %v4532 = vmax.bf16 %v4388, %v4454
      %v4533 = vmax.bf16 %v4389, %v4453
      %v4534 = vmax.bf16 %v4390, %v4457
      %v4535 = vmax.bf16 %v4391, %v4456
      %v4536 = vmax.bf16 %v4392, %v4460
      %v4537 = vmax.bf16 %v4393, %v4459
      %v4538 = vmax.bf16 %v4394, %v4463
      %v4539 = vmax.bf16 %v4395, %v4462
      %v4540 = vmax.bf16 %v4396, %v4466
      %v4541 = vmax.bf16 %v4397, %v4465
      %v4542 = vmax.bf16 %v4398, %v4469
      %v4543 = vmax.bf16 %v4399, %v4468
      %v4544 = vmax.bf16 %v4400, %v4472
      %v4545 = vmax.bf16 %v4401, %v4471
      %v4546 = vmax.bf16 %v4402, %v4475
      %v4547 = vmax.bf16 %v4403, %v4474
      %v4548 = vmax.bf16 %v4404, %v4478
      %v4549 = vmax.bf16 %v4405, %v4477
      %v4550 = vmax.bf16 %v4406, %v4481
      %v4551 = vmax.bf16 %v4407, %v4480
      %v4552 = vmax.bf16 %v4408, %v4484
      %v4553 = vmax.bf16 %v4409, %v4483
      %v4554 = vmax.bf16 %v4410, %v4487
      %v4555 = vmax.bf16 %v4411, %v4486
      %v4556 = vmax.bf16 %v4412, %v4490
      %v4557 = vmax.bf16 %v4413, %v4489
      %v4558 = vmax.bf16 %v4414, %v4493
      %v4559 = vmax.bf16 %v4415, %v4492
      %v4560 = vmax.bf16 %v4416, %v4496
      %v4561 = vmax.bf16 %v4417, %v4495
      %v4562 = vmax.bf16 %v4418, %v4499
      %v4563 = vmax.bf16 %v4419, %v4498
      %v4565 = vshrl.u32 %v4532, 16
      %v4567 = vshll.u32 %v4532, 16
      %v4569 = vrot.slane %v4567, 1
      %v4570 = vor.u32 %v4565, %v4569
      %v4572 = vshll.u32 %v4533, 16
      %v4574 = vrot.slane %v4572, 1
      %v4575 = vsel %vm1316, %v4570, %v4574
      %v4576 = vshrl.u32 %v4533, 16
      %v4578 = vor.u32 %v4576, %v4574
      %v4580 = vshrl.u32 %v4534, 16
      %v4582 = vshll.u32 %v4534, 16
      %v4584 = vrot.slane %v4582, 1
      %v4585 = vor.u32 %v4580, %v4584
      %v4587 = vshll.u32 %v4535, 16
      %v4589 = vrot.slane %v4587, 1
      %v4590 = vsel %vm1316, %v4585, %v4589
      %v4591 = vshrl.u32 %v4535, 16
      %v4593 = vor.u32 %v4591, %v4589
      %v4595 = vshrl.u32 %v4536, 16
      %v4597 = vshll.u32 %v4536, 16
      %v4599 = vrot.slane %v4597, 1
      %v4600 = vor.u32 %v4595, %v4599
      %v4602 = vshll.u32 %v4537, 16
      %v4604 = vrot.slane %v4602, 1
      %v4605 = vsel %vm1316, %v4600, %v4604
      %v4606 = vshrl.u32 %v4537, 16
      %v4608 = vor.u32 %v4606, %v4604
      %v4610 = vshrl.u32 %v4538, 16
      %v4612 = vshll.u32 %v4538, 16
      %v4614 = vrot.slane %v4612, 1
      %v4615 = vor.u32 %v4610, %v4614
      %v4617 = vshll.u32 %v4539, 16
      %v4619 = vrot.slane %v4617, 1
      %v4620 = vsel %vm1316, %v4615, %v4619
      %v4621 = vshrl.u32 %v4539, 16
      %v4623 = vor.u32 %v4621, %v4619
      %v4625 = vshrl.u32 %v4540, 16
      %v4627 = vshll.u32 %v4540, 16
      %v4629 = vrot.slane %v4627, 1
      %v4630 = vor.u32 %v4625, %v4629
      %v4632 = vshll.u32 %v4541, 16
      %v4634 = vrot.slane %v4632, 1
      %v4635 = vsel %vm1316, %v4630, %v4634
      %v4636 = vshrl.u32 %v4541, 16
      %v4638 = vor.u32 %v4636, %v4634
      %v4640 = vshrl.u32 %v4542, 16
      %v4642 = vshll.u32 %v4542, 16
      %v4644 = vrot.slane %v4642, 1
      %v4645 = vor.u32 %v4640, %v4644
      %v4647 = vshll.u32 %v4543, 16
      %v4649 = vrot.slane %v4647, 1
      %v4650 = vsel %vm1316, %v4645, %v4649
      %v4651 = vshrl.u32 %v4543, 16
      %v4653 = vor.u32 %v4651, %v4649
      %v4655 = vshrl.u32 %v4544, 16
      %v4657 = vshll.u32 %v4544, 16
      %v4659 = vrot.slane %v4657, 1
      %v4660 = vor.u32 %v4655, %v4659
      %v4662 = vshll.u32 %v4545, 16
      %v4664 = vrot.slane %v4662, 1
      %v4665 = vsel %vm1316, %v4660, %v4664
      %v4666 = vshrl.u32 %v4545, 16
      %v4668 = vor.u32 %v4666, %v4664
      %v4670 = vshrl.u32 %v4546, 16
      %v4672 = vshll.u32 %v4546, 16
      %v4674 = vrot.slane %v4672, 1
      %v4675 = vor.u32 %v4670, %v4674
      %v4677 = vshll.u32 %v4547, 16
      %v4679 = vrot.slane %v4677, 1
      %v4680 = vsel %vm1316, %v4675, %v4679
      %v4681 = vshrl.u32 %v4547, 16
      %v4683 = vor.u32 %v4681, %v4679
      %v4685 = vshrl.u32 %v4548, 16
      %v4687 = vshll.u32 %v4548, 16
      %v4689 = vrot.slane %v4687, 1
      %v4690 = vor.u32 %v4685, %v4689
      %v4692 = vshll.u32 %v4549, 16
      %v4694 = vrot.slane %v4692, 1
      %v4695 = vsel %vm1316, %v4690, %v4694
      %v4696 = vshrl.u32 %v4549, 16
      %v4698 = vor.u32 %v4696, %v4694
      %v4700 = vshrl.u32 %v4550, 16
      %v4702 = vshll.u32 %v4550, 16
      %v4704 = vrot.slane %v4702, 1
      %v4705 = vor.u32 %v4700, %v4704
      %v4707 = vshll.u32 %v4551, 16
      %v4709 = vrot.slane %v4707, 1
      %v4710 = vsel %vm1316, %v4705, %v4709
      %v4711 = vshrl.u32 %v4551, 16
      %v4713 = vor.u32 %v4711, %v4709
      %v4715 = vshrl.u32 %v4552, 16
      %v4717 = vshll.u32 %v4552, 16
      %v4719 = vrot.slane %v4717, 1
      %v4720 = vor.u32 %v4715, %v4719
      %v4722 = vshll.u32 %v4553, 16
      %v4724 = vrot.slane %v4722, 1
      %v4725 = vsel %vm1316, %v4720, %v4724
      %v4726 = vshrl.u32 %v4553, 16
      %v4728 = vor.u32 %v4726, %v4724
      %v4730 = vshrl.u32 %v4554, 16
      %v4732 = vshll.u32 %v4554, 16
      %v4734 = vrot.slane %v4732, 1
      %v4735 = vor.u32 %v4730, %v4734
      %v4737 = vshll.u32 %v4555, 16
      %v4739 = vrot.slane %v4737, 1
      %v4740 = vsel %vm1316, %v4735, %v4739
      %v4741 = vshrl.u32 %v4555, 16
      %v4743 = vor.u32 %v4741, %v4739
      %v4745 = vshrl.u32 %v4556, 16
      %v4747 = vshll.u32 %v4556, 16
      %v4749 = vrot.slane %v4747, 1
      %v4750 = vor.u32 %v4745, %v4749
      %v4752 = vshll.u32 %v4557, 16
      %v4754 = vrot.slane %v4752, 1
      %v4755 = vsel %vm1316, %v4750, %v4754
      %v4756 = vshrl.u32 %v4557, 16
      %v4758 = vor.u32 %v4756, %v4754
      %v4760 = vshrl.u32 %v4558, 16
      %v4762 = vshll.u32 %v4558, 16
      %v4764 = vrot.slane %v4762, 1
      %v4765 = vor.u32 %v4760, %v4764
      %v4767 = vshll.u32 %v4559, 16
      %v4769 = vrot.slane %v4767, 1
      %v4770 = vsel %vm1316, %v4765, %v4769
      %v4771 = vshrl.u32 %v4559, 16
      %v4773 = vor.u32 %v4771, %v4769
      %v4775 = vshrl.u32 %v4560, 16
      %v4777 = vshll.u32 %v4560, 16
      %v4779 = vrot.slane %v4777, 1
      %v4780 = vor.u32 %v4775, %v4779
      %v4782 = vshll.u32 %v4561, 16
      %v4784 = vrot.slane %v4782, 1
      %v4785 = vsel %vm1316, %v4780, %v4784
      %v4786 = vshrl.u32 %v4561, 16
      %v4788 = vor.u32 %v4786, %v4784
      %v4790 = vshrl.u32 %v4562, 16
      %v4792 = vshll.u32 %v4562, 16
      %v4794 = vrot.slane %v4792, 1
      %v4795 = vor.u32 %v4790, %v4794
      %v4797 = vshll.u32 %v4563, 16
      %v4799 = vrot.slane %v4797, 1
      %v4800 = vsel %vm1316, %v4795, %v4799
      %v4801 = vshrl.u32 %v4563, 16
      %v4803 = vor.u32 %v4801, %v4799
      %v4836 = vmax.bf16 %v4532, %v4575
      %v4837 = vmax.bf16 %v4533, %v4578
      %v4838 = vmax.bf16 %v4534, %v4590
      %v4839 = vmax.bf16 %v4535, %v4593
      %v4840 = vmax.bf16 %v4536, %v4605
      %v4841 = vmax.bf16 %v4537, %v4608
      %v4842 = vmax.bf16 %v4538, %v4620
      %v4843 = vmax.bf16 %v4539, %v4623
      %v4844 = vmax.bf16 %v4540, %v4635
      %v4845 = vmax.bf16 %v4541, %v4638
      %v4846 = vmax.bf16 %v4542, %v4650
      %v4847 = vmax.bf16 %v4543, %v4653
      %v4848 = vmax.bf16 %v4544, %v4665
      %v4849 = vmax.bf16 %v4545, %v4668
      %v4850 = vmax.bf16 %v4546, %v4680
      %v4851 = vmax.bf16 %v4547, %v4683
      %v4852 = vmax.bf16 %v4548, %v4695
      %v4853 = vmax.bf16 %v4549, %v4698
      %v4854 = vmax.bf16 %v4550, %v4710
      %v4855 = vmax.bf16 %v4551, %v4713
      %v4856 = vmax.bf16 %v4552, %v4725
      %v4857 = vmax.bf16 %v4553, %v4728
      %v4858 = vmax.bf16 %v4554, %v4740
      %v4859 = vmax.bf16 %v4555, %v4743
      %v4860 = vmax.bf16 %v4556, %v4755
      %v4861 = vmax.bf16 %v4557, %v4758
      %v4862 = vmax.bf16 %v4558, %v4770
      %v4863 = vmax.bf16 %v4559, %v4773
      %v4864 = vmax.bf16 %v4560, %v4785
      %v4865 = vmax.bf16 %v4561, %v4788
      %v4866 = vmax.bf16 %v4562, %v4800
      %v4867 = vmax.bf16 %v4563, %v4803
      %v4868 = vld [vmem:[#allocation3] sm:$0xff]
      %v4869 = vld [vmem:[#allocation3 + $0x8] sm:$0xff]
      %v4870 = vld [vmem:[#allocation3 + $0x10] sm:$0xff]
      %v4871 = vld [vmem:[#allocation3 + $0x18] sm:$0xff]
      %v4872 = vld [vmem:[#allocation3 + $0x20] sm:$0xff]
      %v4873 = vld [vmem:[#allocation3 + $0x28] sm:$0xff]
      %v4874 = vld [vmem:[#allocation3 + $0x30] sm:$0xff]
      %v4875 = vld [vmem:[#allocation3 + $0x38] sm:$0xff]
      %v4876 = vld [vmem:[#allocation3 + $0x40] sm:$0xff]
      %v4877 = vld [vmem:[#allocation3 + $0x48] sm:$0xff]
      %v4878 = vld [vmem:[#allocation3 + $0x50] sm:$0xff]
      %v4879 = vld [vmem:[#allocation3 + $0x58] sm:$0xff]
      %v4880 = vld [vmem:[#allocation3 + $0x60] sm:$0xff]
      %v4881 = vld [vmem:[#allocation3 + $0x68] sm:$0xff]
      %v4882 = vld [vmem:[#allocation3 + $0x70] sm:$0xff]
      %v4883 = vld [vmem:[#allocation3 + $0x78] sm:$0xff]
      %v4884 = vld [vmem:[#allocation3 + $0x80] sm:$0xff]
      %v4885 = vld [vmem:[#allocation3 + $0x88] sm:$0xff]
      %v4886 = vld [vmem:[#allocation3 + $0x90] sm:$0xff]
      %v4887 = vld [vmem:[#allocation3 + $0x98] sm:$0xff]
      %v4888 = vld [vmem:[#allocation3 + $0xa0] sm:$0xff]
      %v4889 = vld [vmem:[#allocation3 + $0xa8] sm:$0xff]
      %v4890 = vld [vmem:[#allocation3 + $0xb0] sm:$0xff]
      %v4891 = vld [vmem:[#allocation3 + $0xb8] sm:$0xff]
      %v4892 = vld [vmem:[#allocation3 + $0xc0] sm:$0xff]
      %v4893 = vld [vmem:[#allocation3 + $0xc8] sm:$0xff]
      %v4894 = vld [vmem:[#allocation3 + $0xd0] sm:$0xff]
      %v4895 = vld [vmem:[#allocation3 + $0xd8] sm:$0xff]
      %v4896 = vld [vmem:[#allocation3 + $0xe0] sm:$0xff]
      %v4897 = vld [vmem:[#allocation3 + $0xe8] sm:$0xff]
      %v4898 = vld [vmem:[#allocation3 + $0xf0] sm:$0xff]
      %v4899 = vld [vmem:[#allocation3 + $0xf8] sm:$0xff]
      %v4932 = vrot.slane %v4836, 3
      %v4933 = vrot.slane %v4837, 3
      %v4934 = vsel %vm2134, %v4932, %v4933
      %v4935 = vrot.slane %v4838, 3
      %v4936 = vrot.slane %v4839, 3
      %v4937 = vsel %vm2134, %v4935, %v4936
      %v4938 = vrot.slane %v4840, 3
      %v4939 = vrot.slane %v4841, 3
      %v4940 = vsel %vm2134, %v4938, %v4939
      %v4941 = vrot.slane %v4842, 3
      %v4942 = vrot.slane %v4843, 3
      %v4943 = vsel %vm2134, %v4941, %v4942
      %v4944 = vrot.slane %v4844, 3
      %v4945 = vrot.slane %v4845, 3
      %v4946 = vsel %vm2134, %v4944, %v4945
      %v4947 = vrot.slane %v4846, 3
      %v4948 = vrot.slane %v4847, 3
      %v4949 = vsel %vm2134, %v4947, %v4948
      %v4950 = vrot.slane %v4848, 3
      %v4951 = vrot.slane %v4849, 3
      %v4952 = vsel %vm2134, %v4950, %v4951
      %v4953 = vrot.slane %v4850, 3
      %v4954 = vrot.slane %v4851, 3
      %v4955 = vsel %vm2134, %v4953, %v4954
      %v4956 = vrot.slane %v4852, 3
      %v4957 = vrot.slane %v4853, 3
      %v4958 = vsel %vm2134, %v4956, %v4957
      %v4959 = vrot.slane %v4854, 3
      %v4960 = vrot.slane %v4855, 3
      %v4961 = vsel %vm2134, %v4959, %v4960
      %v4962 = vrot.slane %v4856, 3
      %v4963 = vrot.slane %v4857, 3
      %v4964 = vsel %vm2134, %v4962, %v4963
      %v4965 = vrot.slane %v4858, 3
      %v4966 = vrot.slane %v4859, 3
      %v4967 = vsel %vm2134, %v4965, %v4966
      %v4968 = vrot.slane %v4860, 3
      %v4969 = vrot.slane %v4861, 3
      %v4970 = vsel %vm2134, %v4968, %v4969
      %v4971 = vrot.slane %v4862, 3
      %v4972 = vrot.slane %v4863, 3
      %v4973 = vsel %vm2134, %v4971, %v4972
      %v4974 = vrot.slane %v4864, 3
      %v4975 = vrot.slane %v4865, 3
      %v4976 = vsel %vm2134, %v4974, %v4975
      %v4977 = vrot.slane %v4866, 3
      %v4978 = vrot.slane %v4867, 3
      %v4979 = vsel %vm2134, %v4977, %v4978
      %s4980 = scalar_lea.vmem %s3, 6
      %v4981 = vld [vmem:[%s4980] sm:$0x3]
      %v4983 = vsel %vm227, %v4934, 0
      %v4986 = vsel %vm227, %v4937, 0
      %v4989 = vsel %vm227, %v4940, 0
      %v4992 = vsel %vm227, %v4943, 0
      %v4995 = vsel %vm227, %v4946, 0
      %v4998 = vsel %vm227, %v4949, 0
      %v5001 = vsel %vm227, %v4952, 0
      %v5004 = vsel %vm227, %v4955, 0
      %v5007 = vsel %vm227, %v4958, 0
      %v5010 = vsel %vm227, %v4961, 0
      %v5013 = vsel %vm227, %v4964, 0
      %v5016 = vsel %vm227, %v4967, 0
      %v5019 = vsel %vm227, %v4970, 0
      %v5022 = vsel %vm227, %v4973, 0
      %v5025 = vsel %vm227, %v4976, 0
      %v5028 = vsel %vm227, %v4979, 0
      %v5031 = vsel %vm895, %v4981, 0
      %5033 = vmatprep.subr.bf16.mxu0 0
      %5034 = vmatpush1.bf16.msra.mxu0 %v5031
      %5035 = vmatprep.subr.bf16.mxu0 0
      %5036 = vmatpush1.bf16.msra.mxu0 0
      %5037 = vmatprep.subr.bf16.mxu0 0
      %5038 = vmatpush1.bf16.msra.mxu0 0
      %5039 = vmatprep.subr.bf16.mxu0 0
      %5040 = vmatpush1.bf16.msra.mxu0 0
      %5041 = vmatprep.subr.bf16.mxu0 0
      %5042 = vmatpush1.bf16.msra.mxu0 0
      %5043 = vmatprep.subr.bf16.mxu0 0
      %5044 = vmatpush1.bf16.msra.mxu0 0
      %5045 = vmatprep.subr.bf16.mxu0 0
      %5046 = vmatpush1.bf16.msra.mxu0 0
      %5047 = vmatprep.subr.bf16.mxu0 0
      %5048 = vmatpush1.bf16.msra.mxu0 0
      %5049 = vmatprep.subr.bf16.mxu0 0
      %5050 = vmatpush1.bf16.msra.mxu0 0
      %5051 = vmatprep.subr.bf16.mxu0 0
      %5052 = vmatpush1.bf16.msra.mxu0 0
      %5053 = vmatprep.subr.bf16.mxu0 0
      %5054 = vmatpush1.bf16.msra.mxu0 0
      %5055 = vmatprep.subr.bf16.mxu0 0
      %5056 = vmatpush1.bf16.msra.mxu0 0
      %5057 = vmatprep.subr.bf16.mxu0 0
      %5058 = vmatpush1.bf16.msra.mxu0 0
      %5059 = vmatprep.subr.bf16.mxu0 0
      %5060 = vmatpush1.bf16.msra.mxu0 0
      %5061 = vmatprep.subr.bf16.mxu0 0
      %5062 = vmatpush1.bf16.msra.mxu0 0
      %5063 = vmatprep.subr.bf16.mxu0 0
      %5064 = vmatpush1.bf16.msra.mxu0 0
      %5065 = vmatprep.mubr.bf16.mxu0 0
      %5066 = vmatmul.mubr.bf16.gmra.mrb[0].mxu0 %v4983
      %v5067 = vpop.f32.mrb[0].mxu0
      %v5068 = vadd.f32 0.0, %v5067
      %v5069 = vpop.f32.mrb[0].mxu0
      %v5070 = vpop.f32.mrb[0].mxu0
      %v5071 = vadd.f32 0.0, %v5070
      %v5072 = vpop.f32.mrb[0].mxu0
      %5073 = vmatprep.mubr.bf16.mxu0 0
      %5074 = vmatmul.mubr.bf16.gmra.mrb[0].mxu0 %v4986
      %v5075 = vpop.f32.mrb[0].mxu0
      %v5076 = vadd.f32 0.0, %v5075
      %v5077 = vpop.f32.mrb[0].mxu0
      %v5078 = vpop.f32.mrb[0].mxu0
      %v5079 = vadd.f32 0.0, %v5078
      %v5080 = vpop.f32.mrb[0].mxu0
      %5081 = vmatprep.mubr.bf16.mxu0 0
      %5082 = vmatmul.mubr.bf16.gmra.mrb[0].mxu0 %v4989
      %v5083 = vpop.f32.mrb[0].mxu0
      %v5084 = vadd.f32 0.0, %v5083
      %v5085 = vpop.f32.mrb[0].mxu0
      %v5086 = vpop.f32.mrb[0].mxu0
      %v5087 = vadd.f32 0.0, %v5086
      %v5088 = vpop.f32.mrb[0].mxu0
      %5089 = vmatprep.mubr.bf16.mxu0 0
      %5090 = vmatmul.mubr.bf16.gmra.mrb[0].mxu0 %v4992
      %v5091 = vpop.f32.mrb[0].mxu0
      %v5092 = vadd.f32 0.0, %v5091
      %v5093 = vpop.f32.mrb[0].mxu0
      %v5094 = vpop.f32.mrb[0].mxu0
      %v5095 = vadd.f32 0.0, %v5094
      %v5096 = vpop.f32.mrb[0].mxu0
      %5097 = vmatprep.mubr.bf16.mxu0 0
      %5098 = vmatmul.mubr.bf16.gmra.mrb[0].mxu0 %v4995
      %v5099 = vpop.f32.mrb[0].mxu0
      %v5100 = vadd.f32 0.0, %v5099
      %v5101 = vpop.f32.mrb[0].mxu0
      %v5102 = vpop.f32.mrb[0].mxu0
      %v5103 = vadd.f32 0.0, %v5102
      %v5104 = vpop.f32.mrb[0].mxu0
      %5105 = vmatprep.mubr.bf16.mxu0 0
      %5106 = vmatmul.mubr.bf16.gmra.mrb[0].mxu0 %v4998
      %v5107 = vpop.f32.mrb[0].mxu0
      %v5108 = vadd.f32 0.0, %v5107
      %v5109 = vpop.f32.mrb[0].mxu0
      %v5110 = vpop.f32.mrb[0].mxu0
      %v5111 = vadd.f32 0.0, %v5110
      %v5112 = vpop.f32.mrb[0].mxu0
      %5113 = vmatprep.mubr.bf16.mxu0 0
      %5114 = vmatmul.mubr.bf16.gmra.mrb[0].mxu0 %v5001
      %v5115 = vpop.f32.mrb[0].mxu0
      %v5116 = vadd.f32 0.0, %v5115
      %v5117 = vpop.f32.mrb[0].mxu0
      %v5118 = vpop.f32.mrb[0].mxu0
      %v5119 = vadd.f32 0.0, %v5118
      %v5120 = vpop.f32.mrb[0].mxu0
      %5121 = vmatprep.mubr.bf16.mxu0 0
      %5122 = vmatmul.mubr.bf16.gmra.mrb[0].mxu0 %v5004
      %v5123 = vpop.f32.mrb[0].mxu0
      %v5124 = vadd.f32 0.0, %v5123
      %v5125 = vpop.f32.mrb[0].mxu0
      %v5126 = vpop.f32.mrb[0].mxu0
      %v5127 = vadd.f32 0.0, %v5126
      %v5128 = vpop.f32.mrb[0].mxu0
      %5129 = vmatprep.mubr.bf16.mxu0 0
      %5130 = vmatmul.mubr.bf16.gmra.mrb[0].mxu0 %v5007
      %v5131 = vpop.f32.mrb[0].mxu0
      %v5132 = vadd.f32 0.0, %v5131
      %v5133 = vpop.f32.mrb[0].mxu0
      %v5134 = vpop.f32.mrb[0].mxu0
      %v5135 = vadd.f32 0.0, %v5134
      %v5136 = vpop.f32.mrb[0].mxu0
      %5137 = vmatprep.mubr.bf16.mxu0 0
      %5138 = vmatmul.mubr.bf16.gmra.mrb[0].mxu0 %v5010
      %v5139 = vpop.f32.mrb[0].mxu0
      %v5140 = vadd.f32 0.0, %v5139
      %v5141 = vpop.f32.mrb[0].mxu0
      %v5142 = vpop.f32.mrb[0].mxu0
      %v5143 = vadd.f32 0.0, %v5142
      %v5144 = vpop.f32.mrb[0].mxu0
      %5145 = vmatprep.mubr.bf16.mxu0 0
      %5146 = vmatmul.mubr.bf16.gmra.mrb[0].mxu0 %v5013
      %v5147 = vpop.f32.mrb[0].mxu0
      %v5148 = vadd.f32 0.0, %v5147
      %v5149 = vpop.f32.mrb[0].mxu0
      %v5150 = vpop.f32.mrb[0].mxu0
      %v5151 = vadd.f32 0.0, %v5150
      %v5152 = vpop.f32.mrb[0].mxu0
      %5153 = vmatprep.mubr.bf16.mxu0 0
      %5154 = vmatmul.mubr.bf16.gmra.mrb[0].mxu0 %v5016
      %v5155 = vpop.f32.mrb[0].mxu0
      %v5156 = vadd.f32 0.0, %v5155
      %v5157 = vpop.f32.mrb[0].mxu0
      %v5158 = vpop.f32.mrb[0].mxu0
      %v5159 = vadd.f32 0.0, %v5158
      %v5160 = vpop.f32.mrb[0].mxu0
      %5161 = vmatprep.mubr.bf16.mxu0 0
      %5162 = vmatmul.mubr.bf16.gmra.mrb[0].mxu0 %v5019
      %v5163 = vpop.f32.mrb[0].mxu0
      %v5164 = vadd.f32 0.0, %v5163
      %v5165 = vpop.f32.mrb[0].mxu0
      %v5166 = vpop.f32.mrb[0].mxu0
      %v5167 = vadd.f32 0.0, %v5166
      %v5168 = vpop.f32.mrb[0].mxu0
      %5169 = vmatprep.mubr.bf16.mxu0 0
      %5170 = vmatmul.mubr.bf16.gmra.mrb[0].mxu0 %v5022
      %v5171 = vpop.f32.mrb[0].mxu0
      %v5172 = vadd.f32 0.0, %v5171
      %v5173 = vpop.f32.mrb[0].mxu0
      %v5174 = vpop.f32.mrb[0].mxu0
      %v5175 = vadd.f32 0.0, %v5174
      %v5176 = vpop.f32.mrb[0].mxu0
      %5177 = vmatprep.mubr.bf16.mxu0 0
      %5178 = vmatmul.mubr.bf16.gmra.mrb[0].mxu0 %v5025
      %v5179 = vpop.f32.mrb[0].mxu0
      %v5180 = vadd.f32 0.0, %v5179
      %v5181 = vpop.f32.mrb[0].mxu0
      %v5182 = vpop.f32.mrb[0].mxu0
      %v5183 = vadd.f32 0.0, %v5182
      %v5184 = vpop.f32.mrb[0].mxu0
      %5185 = vmatprep.mubr.bf16.mxu0 0
      %5186 = vmatmul.mubr.bf16.gmra.mrb[0].mxu0 %v5028
      %v5187 = vpop.f32.mrb[0].mxu0
      %v5188 = vadd.f32 0.0, %v5187
      %v5189 = vpop.f32.mrb[0].mxu0
      %v5190 = vpop.f32.mrb[0].mxu0
      %v5191 = vadd.f32 0.0, %v5190
      %v5192 = vpop.f32.mrb[0].mxu0
      %5193 = vdwg.mxu0
      %v5194 = vadd.f32 %v4868, %v5068
      %v5195 = vadd.f32 %v4869, %v5071
      %v5196 = vadd.f32 %v4870, %v5076
      %v5197 = vadd.f32 %v4871, %v5079
      %v5198 = vadd.f32 %v4872, %v5084
      %v5199 = vadd.f32 %v4873, %v5087
      %v5200 = vadd.f32 %v4874, %v5092
      %v5201 = vadd.f32 %v4875, %v5095
      %v5202 = vadd.f32 %v4876, %v5100
      %v5203 = vadd.f32 %v4877, %v5103
      %v5204 = vadd.f32 %v4878, %v5108
      %v5205 = vadd.f32 %v4879, %v5111
      %v5206 = vadd.f32 %v4880, %v5116
      %v5207 = vadd.f32 %v4881, %v5119
      %v5208 = vadd.f32 %v4882, %v5124
      %v5209 = vadd.f32 %v4883, %v5127
      %v5210 = vadd.f32 %v4884, %v5132
      %v5211 = vadd.f32 %v4885, %v5135
      %v5212 = vadd.f32 %v4886, %v5140
      %v5213 = vadd.f32 %v4887, %v5143
      %v5214 = vadd.f32 %v4888, %v5148
      %v5215 = vadd.f32 %v4889, %v5151
      %v5216 = vadd.f32 %v4890, %v5156
      %v5217 = vadd.f32 %v4891, %v5159
      %v5218 = vadd.f32 %v4892, %v5164
      %v5219 = vadd.f32 %v4893, %v5167
      %v5220 = vadd.f32 %v4894, %v5172
      %v5221 = vadd.f32 %v4895, %v5175
      %v5222 = vadd.f32 %v4896, %v5180
      %v5223 = vadd.f32 %v4897, %v5183
      %v5224 = vadd.f32 %v4898, %v5188
      %v5225 = vadd.f32 %v4899, %v5191
      %5226 = vst.msk [vmem:[#allocation3] sm:$0xff] %vm392, %v5194
      %5227 = vst.msk [vmem:[#allocation3 + $0x8] sm:$0xff] %vm392, %v5195
      %5228 = vst.msk [vmem:[#allocation3 + $0x10] sm:$0xff] %vm392, %v5196
      %5229 = vst.msk [vmem:[#allocation3 + $0x18] sm:$0xff] %vm392, %v5197
      %5230 = vst.msk [vmem:[#allocation3 + $0x20] sm:$0xff] %vm392, %v5198
      %5231 = vst.msk [vmem:[#allocation3 + $0x28] sm:$0xff] %vm392, %v5199
      %5232 = vst.msk [vmem:[#allocation3 + $0x30] sm:$0xff] %vm392, %v5200
      %5233 = vst.msk [vmem:[#allocation3 + $0x38] sm:$0xff] %vm392, %v5201
      %5234 = vst.msk [vmem:[#allocation3 + $0x40] sm:$0xff] %vm392, %v5202
      %5235 = vst.msk [vmem:[#allocation3 + $0x48] sm:$0xff] %vm392, %v5203
      %5236 = vst.msk [vmem:[#allocation3 + $0x50] sm:$0xff] %vm392, %v5204
      %5237 = vst.msk [vmem:[#allocation3 + $0x58] sm:$0xff] %vm392, %v5205
      %5238 = vst.msk [vmem:[#allocation3 + $0x60] sm:$0xff] %vm392, %v5206
      %5239 = vst.msk [vmem:[#allocation3 + $0x68] sm:$0xff] %vm392, %v5207
      %5240 = vst.msk [vmem:[#allocation3 + $0x70] sm:$0xff] %vm392, %v5208
      %5241 = vst.msk [vmem:[#allocation3 + $0x78] sm:$0xff] %vm392, %v5209
      %5242 = vst.msk [vmem:[#allocation3 + $0x80] sm:$0xff] %vm392, %v5210
      %5243 = vst.msk [vmem:[#allocation3 + $0x88] sm:$0xff] %vm392, %v5211
      %5244 = vst.msk [vmem:[#allocation3 + $0x90] sm:$0xff] %vm392, %v5212
      %5245 = vst.msk [vmem:[#allocation3 + $0x98] sm:$0xff] %vm392, %v5213
      %5246 = vst.msk [vmem:[#allocation3 + $0xa0] sm:$0xff] %vm392, %v5214
      %5247 = vst.msk [vmem:[#allocation3 + $0xa8] sm:$0xff] %vm392, %v5215
      %5248 = vst.msk [vmem:[#allocation3 + $0xb0] sm:$0xff] %vm392, %v5216
      %5249 = vst.msk [vmem:[#allocation3 + $0xb8] sm:$0xff] %vm392, %v5217
      %5250 = vst.msk [vmem:[#allocation3 + $0xc0] sm:$0xff] %vm392, %v5218
      %5251 = vst.msk [vmem:[#allocation3 + $0xc8] sm:$0xff] %vm392, %v5219
      %5252 = vst.msk [vmem:[#allocation3 + $0xd0] sm:$0xff] %vm392, %v5220
      %5253 = vst.msk [vmem:[#allocation3 + $0xd8] sm:$0xff] %vm392, %v5221
      %5254 = vst.msk [vmem:[#allocation3 + $0xe0] sm:$0xff] %vm392, %v5222
      %5255 = vst.msk [vmem:[#allocation3 + $0xe8] sm:$0xff] %vm392, %v5223
      %5256 = vst.msk [vmem:[#allocation3 + $0xf0] sm:$0xff] %vm392, %v5224
      %5257 = vst.msk [vmem:[#allocation3 + $0xf8] sm:$0xff] %vm392, %v5225
      %v5258 = vld [vmem:[#allocation3] sm:$0xff]
      %v5259 = vld [vmem:[#allocation3 + $0x8] sm:$0xff]
      %v5260 = vld [vmem:[#allocation3 + $0x10] sm:$0xff]
      %v5261 = vld [vmem:[#allocation3 + $0x18] sm:$0xff]
      %v5262 = vld [vmem:[#allocation3 + $0x20] sm:$0xff]
      %v5263 = vld [vmem:[#allocation3 + $0x28] sm:$0xff]
      %v5264 = vld [vmem:[#allocation3 + $0x30] sm:$0xff]
      %v5265 = vld [vmem:[#allocation3 + $0x38] sm:$0xff]
      %v5266 = vld [vmem:[#allocation3 + $0x40] sm:$0xff]
      %v5267 = vld [vmem:[#allocation3 + $0x48] sm:$0xff]
      %v5268 = vld [vmem:[#allocation3 + $0x50] sm:$0xff]
      %v5269 = vld [vmem:[#allocation3 + $0x58] sm:$0xff]
      %v5270 = vld [vmem:[#allocation3 + $0x60] sm:$0xff]
      %v5271 = vld [vmem:[#allocation3 + $0x68] sm:$0xff]
      %v5272 = vld [vmem:[#allocation3 + $0x70] sm:$0xff]
      %v5273 = vld [vmem:[#allocation3 + $0x78] sm:$0xff]
      %v5274 = vld [vmem:[#allocation3 + $0x80] sm:$0xff]
      %v5275 = vld [vmem:[#allocation3 + $0x88] sm:$0xff]
      %v5276 = vld [vmem:[#allocation3 + $0x90] sm:$0xff]
      %v5277 = vld [vmem:[#allocation3 + $0x98] sm:$0xff]
      %v5278 = vld [vmem:[#allocation3 + $0xa0] sm:$0xff]
      %v5279 = vld [vmem:[#allocation3 + $0xa8] sm:$0xff]
      %v5280 = vld [vmem:[#allocation3 + $0xb0] sm:$0xff]
      %v5281 = vld [vmem:[#allocation3 + $0xb8] sm:$0xff]
      %v5282 = vld [vmem:[#allocation3 + $0xc0] sm:$0xff]
      %v5283 = vld [vmem:[#allocation3 + $0xc8] sm:$0xff]
      %v5284 = vld [vmem:[#allocation3 + $0xd0] sm:$0xff]
      %v5285 = vld [vmem:[#allocation3 + $0xd8] sm:$0xff]
      %v5286 = vld [vmem:[#allocation3 + $0xe0] sm:$0xff]
      %v5287 = vld [vmem:[#allocation3 + $0xe8] sm:$0xff]
      %v5288 = vld [vmem:[#allocation3 + $0xf0] sm:$0xff]
      %v5289 = vld [vmem:[#allocation3 + $0xf8] sm:$0xff]
      %v5290 = vld [vmem:[%s4] sm:$0x1]
      %v5292 = vlaneseq
      %v5293 = vshrl.u32 %v5292, 7
      %v5294 = vsub.s32 0, %v5293
      %v5295 = vrot.slane %v5290, %v5294
      %v5297 = vadd.f32 %v5258, %v5295
      %v5298 = vadd.f32 %v5259, %v5295
      %v5299 = vadd.f32 %v5260, %v5295
      %v5300 = vadd.f32 %v5261, %v5295
      %v5301 = vadd.f32 %v5262, %v5295
      %v5302 = vadd.f32 %v5263, %v5295
      %v5303 = vadd.f32 %v5264, %v5295
      %v5304 = vadd.f32 %v5265, %v5295
      %v5305 = vadd.f32 %v5266, %v5295
      %v5306 = vadd.f32 %v5267, %v5295
      %v5307 = vadd.f32 %v5268, %v5295
      %v5308 = vadd.f32 %v5269, %v5295
      %v5309 = vadd.f32 %v5270, %v5295
      %v5310 = vadd.f32 %v5271, %v5295
      %v5311 = vadd.f32 %v5272, %v5295
      %v5312 = vadd.f32 %v5273, %v5295
      %v5313 = vadd.f32 %v5274, %v5295
      %v5314 = vadd.f32 %v5275, %v5295
      %v5315 = vadd.f32 %v5276, %v5295
      %v5316 = vadd.f32 %v5277, %v5295
      %v5317 = vadd.f32 %v5278, %v5295
      %v5318 = vadd.f32 %v5279, %v5295
      %v5319 = vadd.f32 %v5280, %v5295
      %v5320 = vadd.f32 %v5281, %v5295
      %v5321 = vadd.f32 %v5282, %v5295
      %v5322 = vadd.f32 %v5283, %v5295
      %v5323 = vadd.f32 %v5284, %v5295
      %v5324 = vadd.f32 %v5285, %v5295
      %v5325 = vadd.f32 %v5286, %v5295
      %v5326 = vadd.f32 %v5287, %v5295
      %v5327 = vadd.f32 %v5288, %v5295
      %v5328 = vadd.f32 %v5289, %v5295
      %v5329 = vxor.u32 %v5297, 2147483648
      %v5330 = vxor.u32 %v5298, 2147483648
      %v5331 = vxor.u32 %v5299, 2147483648
      %v5332 = vxor.u32 %v5300, 2147483648
      %v5333 = vxor.u32 %v5301, 2147483648
      %v5334 = vxor.u32 %v5302, 2147483648
      %v5335 = vxor.u32 %v5303, 2147483648
      %v5336 = vxor.u32 %v5304, 2147483648
      %v5337 = vxor.u32 %v5305, 2147483648
      %v5338 = vxor.u32 %v5306, 2147483648
      %v5339 = vxor.u32 %v5307, 2147483648
      %v5340 = vxor.u32 %v5308, 2147483648
      %v5341 = vxor.u32 %v5309, 2147483648
      %v5342 = vxor.u32 %v5310, 2147483648
      %v5343 = vxor.u32 %v5311, 2147483648
      %v5344 = vxor.u32 %v5312, 2147483648
      %v5345 = vxor.u32 %v5313, 2147483648
      %v5346 = vxor.u32 %v5314, 2147483648
      %v5347 = vxor.u32 %v5315, 2147483648
      %v5348 = vxor.u32 %v5316, 2147483648
      %v5349 = vxor.u32 %v5317, 2147483648
      %v5350 = vxor.u32 %v5318, 2147483648
      %v5351 = vxor.u32 %v5319, 2147483648
      %v5352 = vxor.u32 %v5320, 2147483648
      %v5353 = vxor.u32 %v5321, 2147483648
      %v5354 = vxor.u32 %v5322, 2147483648
      %v5355 = vxor.u32 %v5323, 2147483648
      %v5356 = vxor.u32 %v5324, 2147483648
      %v5357 = vxor.u32 %v5325, 2147483648
      %v5358 = vxor.u32 %v5326, 2147483648
      %v5359 = vxor.u32 %v5327, 2147483648
      %v5360 = vxor.u32 %v5328, 2147483648
      %v5361 = vmul.f32 %v5329, 1.442695
      %v5362 = vpow.pop %v5361
      %v5363 = vmul.f32 %v5330, 1.442695
      %v5364 = vpow.pop %v5363
      %v5365 = vmul.f32 %v5331, 1.442695
      %v5366 = vpow.pop %v5365
      %v5367 = vmul.f32 %v5332, 1.442695
      %v5368 = vpow.pop %v5367
      %v5369 = vmul.f32 %v5333, 1.442695
      %v5370 = vpow.pop %v5369
      %v5371 = vmul.f32 %v5334, 1.442695
      %v5372 = vpow.pop %v5371
      %v5373 = vmul.f32 %v5335, 1.442695
      %v5374 = vpow.pop %v5373
      %v5375 = vmul.f32 %v5336, 1.442695
      %v5376 = vpow.pop %v5375
      %v5377 = vmul.f32 %v5337, 1.442695
      %v5378 = vpow.pop %v5377
      %v5379 = vmul.f32 %v5338, 1.442695
      %v5380 = vpow.pop %v5379
      %v5381 = vmul.f32 %v5339, 1.442695
      %v5382 = vpow.pop %v5381
      %v5383 = vmul.f32 %v5340, 1.442695
      %v5384 = vpow.pop %v5383
      %v5385 = vmul.f32 %v5341, 1.442695
      %v5386 = vpow.pop %v5385
      %v5387 = vmul.f32 %v5342, 1.442695
      %v5388 = vpow.pop %v5387
      %v5389 = vmul.f32 %v5343, 1.442695
      %v5390 = vpow.pop %v5389
      %v5391 = vmul.f32 %v5344, 1.442695
      %v5392 = vpow.pop %v5391
      %v5393 = vmul.f32 %v5345, 1.442695
      %v5394 = vpow.pop %v5393
      %v5395 = vmul.f32 %v5346, 1.442695
      %v5396 = vpow.pop %v5395
      %v5397 = vmul.f32 %v5347, 1.442695
      %v5398 = vpow.pop %v5397
      %v5399 = vmul.f32 %v5348, 1.442695
      %v5400 = vpow.pop %v5399
      %v5401 = vmul.f32 %v5349, 1.442695
      %v5402 = vpow.pop %v5401
      %v5403 = vmul.f32 %v5350, 1.442695
      %v5404 = vpow.pop %v5403
      %v5405 = vmul.f32 %v5351, 1.442695
      %v5406 = vpow.pop %v5405
      %v5407 = vmul.f32 %v5352, 1.442695
      %v5408 = vpow.pop %v5407
      %v5409 = vmul.f32 %v5353, 1.442695
      %v5410 = vpow.pop %v5409
      %v5411 = vmul.f32 %v5354, 1.442695
      %v5412 = vpow.pop %v5411
      %v5413 = vmul.f32 %v5355, 1.442695
      %v5414 = vpow.pop %v5413
      %v5415 = vmul.f32 %v5356, 1.442695
      %v5416 = vpow.pop %v5415
      %v5417 = vmul.f32 %v5357, 1.442695
      %v5418 = vpow.pop %v5417
      %v5419 = vmul.f32 %v5358, 1.442695
      %v5420 = vpow.pop %v5419
      %v5421 = vmul.f32 %v5359, 1.442695
      %v5422 = vpow.pop %v5421
      %v5423 = vmul.f32 %v5360, 1.442695
      %v5424 = vpow.pop %v5423
      %v5425 = vadd.f32 %v5362, 1.0
      %v5426 = vadd.f32 %v5364, 1.0
      %v5427 = vadd.f32 %v5366, 1.0
      %v5428 = vadd.f32 %v5368, 1.0
      %v5429 = vadd.f32 %v5370, 1.0
      %v5430 = vadd.f32 %v5372, 1.0
      %v5431 = vadd.f32 %v5374, 1.0
      %v5432 = vadd.f32 %v5376, 1.0
      %v5433 = vadd.f32 %v5378, 1.0
      %v5434 = vadd.f32 %v5380, 1.0
      %v5435 = vadd.f32 %v5382, 1.0
      %v5436 = vadd.f32 %v5384, 1.0
      %v5437 = vadd.f32 %v5386, 1.0
      %v5438 = vadd.f32 %v5388, 1.0
      %v5439 = vadd.f32 %v5390, 1.0
      %v5440 = vadd.f32 %v5392, 1.0
      %v5441 = vadd.f32 %v5394, 1.0
      %v5442 = vadd.f32 %v5396, 1.0
      %v5443 = vadd.f32 %v5398, 1.0
      %v5444 = vadd.f32 %v5400, 1.0
      %v5445 = vadd.f32 %v5402, 1.0
      %v5446 = vadd.f32 %v5404, 1.0
      %v5447 = vadd.f32 %v5406, 1.0
      %v5448 = vadd.f32 %v5408, 1.0
      %v5449 = vadd.f32 %v5410, 1.0
      %v5450 = vadd.f32 %v5412, 1.0
      %v5451 = vadd.f32 %v5414, 1.0
      %v5452 = vadd.f32 %v5416, 1.0
      %v5453 = vadd.f32 %v5418, 1.0
      %v5454 = vadd.f32 %v5420, 1.0
      %v5455 = vadd.f32 %v5422, 1.0
      %v5456 = vadd.f32 %v5424, 1.0
      %v5457 = vrcp.pop %v5425
      %v5458 = vmul.f32 1.0, %v5457
      %v5459 = vrcp.pop %v5426
      %v5460 = vmul.f32 1.0, %v5459
      %v5461 = vrcp.pop %v5427
      %v5462 = vmul.f32 1.0, %v5461
      %v5463 = vrcp.pop %v5428
      %v5464 = vmul.f32 1.0, %v5463
      %v5465 = vrcp.pop %v5429
      %v5466 = vmul.f32 1.0, %v5465
      %v5467 = vrcp.pop %v5430
      %v5468 = vmul.f32 1.0, %v5467
      %v5469 = vrcp.pop %v5431
      %v5470 = vmul.f32 1.0, %v5469
      %v5471 = vrcp.pop %v5432
      %v5472 = vmul.f32 1.0, %v5471
      %v5473 = vrcp.pop %v5433
      %v5474 = vmul.f32 1.0, %v5473
      %v5475 = vrcp.pop %v5434
      %v5476 = vmul.f32 1.0, %v5475
      %v5477 = vrcp.pop %v5435
      %v5478 = vmul.f32 1.0, %v5477
      %v5479 = vrcp.pop %v5436
      %v5480 = vmul.f32 1.0, %v5479
      %v5481 = vrcp.pop %v5437
      %v5482 = vmul.f32 1.0, %v5481
      %v5483 = vrcp.pop %v5438
      %v5484 = vmul.f32 1.0, %v5483
      %v5485 = vrcp.pop %v5439
      %v5486 = vmul.f32 1.0, %v5485
      %v5487 = vrcp.pop %v5440
      %v5488 = vmul.f32 1.0, %v5487
      %v5489 = vrcp.pop %v5441
      %v5490 = vmul.f32 1.0, %v5489
      %v5491 = vrcp.pop %v5442
      %v5492 = vmul.f32 1.0, %v5491
      %v5493 = vrcp.pop %v5443
      %v5494 = vmul.f32 1.0, %v5493
      %v5495 = vrcp.pop %v5444
      %v5496 = vmul.f32 1.0, %v5495
      %v5497 = vrcp.pop %v5445
      %v5498 = vmul.f32 1.0, %v5497
      %v5499 = vrcp.pop %v5446
      %v5500 = vmul.f32 1.0, %v5499
      %v5501 = vrcp.pop %v5447
      %v5502 = vmul.f32 1.0, %v5501
      %v5503 = vrcp.pop %v5448
      %v5504 = vmul.f32 1.0, %v5503
      %v5505 = vrcp.pop %v5449
      %v5506 = vmul.f32 1.0, %v5505
      %v5507 = vrcp.pop %v5450
      %v5508 = vmul.f32 1.0, %v5507
      %v5509 = vrcp.pop %v5451
      %v5510 = vmul.f32 1.0, %v5509
      %v5511 = vrcp.pop %v5452
      %v5512 = vmul.f32 1.0, %v5511
      %v5513 = vrcp.pop %v5453
      %v5514 = vmul.f32 1.0, %v5513
      %v5515 = vrcp.pop %v5454
      %v5516 = vmul.f32 1.0, %v5515
      %v5517 = vrcp.pop %v5455
      %v5518 = vmul.f32 1.0, %v5517
      %v5519 = vrcp.pop %v5456
      %v5520 = vmul.f32 1.0, %v5519
      %v5521 = vmul.f32 %v5297, %v5458
      %v5522 = vmul.f32 %v5298, %v5460
      %v5523 = vmul.f32 %v5299, %v5462
      %v5524 = vmul.f32 %v5300, %v5464
      %v5525 = vmul.f32 %v5301, %v5466
      %v5526 = vmul.f32 %v5302, %v5468
      %v5527 = vmul.f32 %v5303, %v5470
      %v5528 = vmul.f32 %v5304, %v5472
      %v5529 = vmul.f32 %v5305, %v5474
      %v5530 = vmul.f32 %v5306, %v5476
      %v5531 = vmul.f32 %v5307, %v5478
      %v5532 = vmul.f32 %v5308, %v5480
      %v5533 = vmul.f32 %v5309, %v5482
      %v5534 = vmul.f32 %v5310, %v5484
      %v5535 = vmul.f32 %v5311, %v5486
      %v5536 = vmul.f32 %v5312, %v5488
      %v5537 = vmul.f32 %v5313, %v5490
      %v5538 = vmul.f32 %v5314, %v5492
      %v5539 = vmul.f32 %v5315, %v5494
      %v5540 = vmul.f32 %v5316, %v5496
      %v5541 = vmul.f32 %v5317, %v5498
      %v5542 = vmul.f32 %v5318, %v5500
      %v5543 = vmul.f32 %v5319, %v5502
      %v5544 = vmul.f32 %v5320, %v5504
      %v5545 = vmul.f32 %v5321, %v5506
      %v5546 = vmul.f32 %v5322, %v5508
      %v5547 = vmul.f32 %v5323, %v5510
      %v5548 = vmul.f32 %v5324, %v5512
      %v5549 = vmul.f32 %v5325, %v5514
      %v5550 = vmul.f32 %v5326, %v5516
      %v5551 = vmul.f32 %v5327, %v5518
      %v5552 = vmul.f32 %v5328, %v5520
      %5553 = vst.msk [vmem:[%s224] sm:$0xff] %vm392, %v5521
      %5554 = vst.msk [vmem:[%s224 + $0x8] sm:$0xff] %vm392, %v5522
      %5555 = vst.msk [vmem:[%s224 + $0x10] sm:$0xff] %vm392, %v5523
      %5556 = vst.msk [vmem:[%s224 + $0x18] sm:$0xff] %vm392, %v5524
      %5557 = vst.msk [vmem:[%s224 + $0x20] sm:$0xff] %vm392, %v5525
      %5558 = vst.msk [vmem:[%s224 + $0x28] sm:$0xff] %vm392, %v5526
      %5559 = vst.msk [vmem:[%s224 + $0x30] sm:$0xff] %vm392, %v5527
      %5560 = vst.msk [vmem:[%s224 + $0x38] sm:$0xff] %vm392, %v5528
      %5561 = vst.msk [vmem:[%s224 + $0x40] sm:$0xff] %vm392, %v5529
      %5562 = vst.msk [vmem:[%s224 + $0x48] sm:$0xff] %vm392, %v5530
      %5563 = vst.msk [vmem:[%s224 + $0x50] sm:$0xff] %vm392, %v5531
      %5564 = vst.msk [vmem:[%s224 + $0x58] sm:$0xff] %vm392, %v5532
      %5565 = vst.msk [vmem:[%s224 + $0x60] sm:$0xff] %vm392, %v5533
      %5566 = vst.msk [vmem:[%s224 + $0x68] sm:$0xff] %vm392, %v5534
      %5567 = vst.msk [vmem:[%s224 + $0x70] sm:$0xff] %vm392, %v5535
      %5568 = vst.msk [vmem:[%s224 + $0x78] sm:$0xff] %vm392, %v5536
      %5569 = vst.msk [vmem:[%s224 + $0x80] sm:$0xff] %vm392, %v5537
      %5570 = vst.msk [vmem:[%s224 + $0x88] sm:$0xff] %vm392, %v5538
      %5571 = vst.msk [vmem:[%s224 + $0x90] sm:$0xff] %vm392, %v5539
      %5572 = vst.msk [vmem:[%s224 + $0x98] sm:$0xff] %vm392, %v5540
      %5573 = vst.msk [vmem:[%s224 + $0xa0] sm:$0xff] %vm392, %v5541
      %5574 = vst.msk [vmem:[%s224 + $0xa8] sm:$0xff] %vm392, %v5542
      %5575 = vst.msk [vmem:[%s224 + $0xb0] sm:$0xff] %vm392, %v5543
      %5576 = vst.msk [vmem:[%s224 + $0xb8] sm:$0xff] %vm392, %v5544
      %5577 = vst.msk [vmem:[%s224 + $0xc0] sm:$0xff] %vm392, %v5545
      %5578 = vst.msk [vmem:[%s224 + $0xc8] sm:$0xff] %vm392, %v5546
      %5579 = vst.msk [vmem:[%s224 + $0xd0] sm:$0xff] %vm392, %v5547
      %5580 = vst.msk [vmem:[%s224 + $0xd8] sm:$0xff] %vm392, %v5548
      %5581 = vst.msk [vmem:[%s224 + $0xe0] sm:$0xff] %vm392, %v5549
      %5582 = vst.msk [vmem:[%s224 + $0xe8] sm:$0xff] %vm392, %v5550
      %5583 = vst.msk [vmem:[%s224 + $0xf0] sm:$0xff] %vm392, %v5551
      %5584 = vst.msk [vmem:[%s224 + $0xf8] sm:$0xff] %vm392, %v5552
      %p5585 = scmp.lt.s32.totalorder %s16, 1
      %s5586 = scalar_select %p5585, %s16, 1
      %s5587 = smul.addr %s5586, 32
      %s5588 = smul.addr %s5587, 8
      %s5589 = scalar_lea.vmem %s5, %s5588
      // Predicated region
      $region41: #{_spp_impl.1} parent=39 // pred_check
        %p5590 = pneg %p144
      $region42: #{_spp_impl.1} parent=39 // pred_check_branch
        %5592 = sbr.rel (%p5590) target = $region44
      $region43: #{_spp_impl.1} parent=39 // pred_region
        _
      $region44: #{_spp_impl.1} parent=39 // pred_fallthru
        _
    $region40: #{_spp_impl.1} parent=5 // pred_fallthru
      _
    %p5593 = scmp.le.s32.totalorder 2, %s11
    // Predicated region
    $region45: #{_spp_impl.1} parent=5 // pred_check
      %p5594 = pneg %p5593
    $region46: #{_spp_impl.1} parent=5 // pred_check_branch
      %5596 = sbr.rel (%p5594) target = $region48
    $region47: #{_spp_impl.1} parent=5 // pred_region
      %s5597 = ssub.s32 %s11, 2
      // Predicated region
      $region49: #{_spp_impl.1} parent=47 // pred_check
        %p5598 = pneg %p150
      $region50: #{_spp_impl.1} parent=47 // pred_check_branch
        %5600 = sbr.rel (%p5598) target = $region52
      $region51: #{_spp_impl.1} parent=47 // pred_region
        %p5601 = scmp.lt.s32.totalorder %s17, 1
        %s5602 = scalar_select %p5601, %s17, 1
        %s5603 = smul.addr %s5602, 32
        %s5604 = smul.addr %s5603, 8
        %s5605 = scalar_lea.vmem %s5, %s5604
      $region52: #{_spp_impl.1} parent=47 // pred_fallthru
        _
    $region48: #{_spp_impl.1} parent=5 // pred_fallthru
      _
  $region6: #{_spp_impl.1} parent=0 // loop_footer
    %s15 = sadd.s32 1, %s11
  $region7: #{_spp_impl.1} parent=0 // loop_footer_branch
    %10 = sbr.rel target = $region3
  $region8: #{_spp_impl.1} parent=0 // loop_exit
    _

</llo_original>
